<compile_context>
chip_gen: v7x
topology: tpu7x:2x2x1
jax: 0.10.0
libtpu: 0.0.40
codegen_flags: <defaults>
</compile_context>

<pallas_src>
import functools

import jax
import jax.numpy as jnp
from jax.experimental import pallas as pl
from jax.experimental.pallas import tpu as pltpu


INPUT_SIZE = 784
H1_SIZE = 512
H2_SIZE = 256
LATENT_SIZE = 128
MAX_TILE_B = 1024                 # rows per grid step for large batches
VMEM_LIMIT_BYTES = 48 << 20       # safe on v7x (64 MiB physical), ample on v5e/v6e


def _cdiv(a, b):
    return -(-a // b)


def _round_up(x, m):
    return ((x + m - 1) // m) * m


def _ae_kernel(x_ref, w1t_ref, w2t_ref, w3p3_ref, p2t_ref, p1t_ref, out_ref):
    # x arrives f32 straight from HBM (no wrapper pad/cast pass); cast once in
    # VMEM so every matmul runs at native bf16 MXU rate with f32 accumulation.
    x = x_ref[...].astype(jnp.bfloat16)                      # (TB, 784)

    # ---- encoder (LeakyReLU(0.2) in f32) ----
    e1 = jnp.dot(x, w1t_ref[...], preferred_element_type=jnp.float32)
    e1 = jnp.where(e1 < 0, 0.2 * e1, e1)

    e2 = jnp.dot(e1.astype(jnp.bfloat16), w2t_ref[...],
                 preferred_element_type=jnp.float32)
    e2 = jnp.where(e2 < 0, 0.2 * e2, e2)

    # ---- fused encoder-3 / decoder-1 ----
    # No nonlinearity between them, so (e2 @ w3.T) @ pinv(w3).T
    # == e2 @ (w3.T @ pinv(w3).T): one full-width 256x256 MXU op.
    d1 = jnp.dot(e2.astype(jnp.bfloat16), w3p3_ref[...],
                 preferred_element_type=jnp.float32)
    d1 = jnp.where(d1 < 0, d1 * 5.0, d1)        # inverse LeakyReLU: /0.2 == *5

    d2 = jnp.dot(d1.astype(jnp.bfloat16), p2t_ref[...],
                 preferred_element_type=jnp.float32)
    d2 = jnp.where(d2 < 0, d2 * 5.0, d2)

    dec = jnp.dot(d2.astype(jnp.bfloat16), p1t_ref[...],
                  preferred_element_type=jnp.float32)

    # sigmoid = 1 / (1 + exp(-x)); EUP exp + approx vrcp keeps EUP cheap.
    out_ref[...] = pl.reciprocal(1.0 + jnp.exp(-dec), approx=True)


def _xavier_uniform(key, out_features, in_features, dtype=jnp.float32):
    """nn.init.xavier_uniform_ for a (out, in) Linear weight."""
    bound = (6.0 / (in_features + out_features)) ** 0.5
    return jax.random.uniform(key, (out_features, in_features), dtype,
                              minval=-bound, maxval=bound)


def init_params(key):
    k1, k2, k3 = jax.random.split(key, 3)
    w1 = _xavier_uniform(k1, H1_SIZE, INPUT_SIZE)     # (512, 784)
    w2 = _xavier_uniform(k2, H2_SIZE, H1_SIZE)        # (256, 512)
    w3 = _xavier_uniform(k3, LATENT_SIZE, H2_SIZE)    # (128, 256)
    return w1, w2, w3


def prepare_params(w1, w2, w3):
    """One-time parameter prep: pinv, transpose, latent-pair fold, bf16 cast.

    Call once outside the forward so the SVD-based pseudoinverse never runs
    per-step.
    """
    # TODO(synk): torch.pinverse (SVD) has no clean Pallas equivalent; computed
    # once here in plain JAX, only the resulting matmuls run in the kernel.
    p3 = jnp.linalg.pinv(w3)                          # (256, 128)
    p2 = jnp.linalg.pinv(w2)                          # (512, 256)
    p1 = jnp.linalg.pinv(w1)                          # (784, 512)

    w1t = w1.T                                        # (784, 512)
    w2t = w2.T                                        # (512, 256)
    w3p3 = w3.T @ p3.T                                # (256, 256) fused enc3+dec1
    p2t = p2.T                                        # (256, 512)
    p1t = p1.T                                        # (512, 784)

    to_bf16 = lambda a: a.astype(jnp.bfloat16)
    return tuple(map(to_bf16, (w1t, w2t, w3p3, p2t, p1t)))


@functools.partial(jax.jit, static_argnames=("tile_b",))
def _forward_blocked(x2d, params, *, tile_b):
    b_pad = x2d.shape[0]
    grid = (b_pad // tile_b,)

    x_spec = pl.BlockSpec((tile_b, INPUT_SIZE), lambda i: (i, 0))
    out_spec = pl.BlockSpec((tile_b, INPUT_SIZE), lambda i: (i, 0))
    # Full-array weight blocks; constant index_map -> fetched once, kept
    # VMEM-resident across every grid step.
    w_specs = [pl.BlockSpec(w.shape, lambda i: (0, 0)) for w in params]

    return pl.pallas_call(
        _ae_kernel,
        out_shape=jax.ShapeDtypeStruct((b_pad, INPUT_SIZE), jnp.float32),
        grid=grid,
        in_specs=[x_spec] + w_specs,
        out_specs=out_spec,
        compiler_params=pltpu.CompilerParams(
            dimension_semantics=("parallel",),
            vmem_limit_bytes=VMEM_LIMIT_BYTES,
        ),
    )(x2d, *params)


def _select_tiling(b):
    """Return (tile_b, b_pad): sublane-aligned, >= 2 grid steps when possible
    (so v7x's dual TensorCores both get work), minimal row padding."""
    if b <= 16:
        tile = _round_up(max(b, 1), 8)
        return tile, tile
    n_steps = max(2, _cdiv(b, MAX_TILE_B))
    tile = min(MAX_TILE_B, _round_up(_cdiv(b, n_steps), 16))
    return tile, _round_up(b, tile)


def pseudoinverse_autoencoder_forward(x, params):
    """Forward pass matching PseudoinverseAutoencoder.forward.

    x: (B, 1, 28, 28) float32 (NCHW) or any shape whose trailing dims flatten
       to 784.  `params` is the tuple returned by prepare_params().
    Returns: (B, 784) float32 in [0, 1].
    """
    b = x.shape[0]
    x2d = x.reshape(b, -1).astype(jnp.float32)        # torch .view(B, -1)
    assert x2d.shape[1] == INPUT_SIZE

    tile_b, b_pad = _select_tiling(b)
    if b_pad != b:
        x2d = jnp.pad(x2d, ((0, b_pad - b), (0, 0)))

    out = _forward_blocked(x2d, params, tile_b=tile_b)
    return out if b_pad == b else out[:b]


def _reference_forward(x, w1, w2, w3):
    """Pure-JAX f32 reference of the PyTorch module (for validation)."""
    b = x.shape[0]
    xf = x.reshape(b, -1).astype(jnp.float32)
    lrelu = lambda v: jnp.where(v < 0, 0.2 * v, v)
    inv_lrelu = lambda v: jnp.where(v < 0, v / 0.2, v)
    e1 = lrelu(xf @ w1.T)
    e2 = lrelu(e1 @ w2.T)
    enc = e2 @ w3.T
    d1 = inv_lrelu(enc @ jnp.linalg.pinv(w3).T)
    d2 = inv_lrelu(d1 @ jnp.linalg.pinv(w2).T)
    return jax.nn.sigmoid(d2 @ jnp.linalg.pinv(w1).T)


if __name__ == "__main__":
    key = jax.random.PRNGKey(0)
    k_params, k_x = jax.random.split(key)

    w1, w2, w3 = init_params(k_params)
    params = prepare_params(w1, w2, w3)               # one-time prep (pinv etc.)

    # Small MNIST-like batch: (B, C, H, W) = (8, 1, 28, 28) -> flattens to 784.
    x = jax.random.uniform(k_x, (8, 1, 28, 28), jnp.float32)

    decoded = pseudoinverse_autoencoder_forward(x, params)
    decoded = jax.block_until_ready(decoded)

    assert decoded.shape == (8, INPUT_SIZE)
    assert decoded.dtype == jnp.float32
    assert bool(jnp.all(jnp.isfinite(decoded)))

    # Validate against the f32 pure-JAX reference (bf16 matmul chain -> loose tol).
    ref = _reference_forward(x, w1, w2, w3)
    max_err = float(jnp.max(jnp.abs(decoded - ref)))
    assert max_err < 0.1, f"max abs error vs reference too large: {max_err}"

    print("KERNEL_OK")
</pallas_src>

<mosaic_0001>
module attributes {stable_mosaic.version = 11 : i64} {
  func.func @_ae_kernel(%arg0: i32, %arg1: memref<8x784xf32, #tpu.memory_space<vmem>>, %arg2: memref<784x512xbf16, #tpu.memory_space<vmem>>, %arg3: memref<512x256xbf16, #tpu.memory_space<vmem>>, %arg4: memref<256x256xbf16, #tpu.memory_space<vmem>>, %arg5: memref<256x512xbf16, #tpu.memory_space<vmem>>, %arg6: memref<512x784xbf16, #tpu.memory_space<vmem>>, %arg7: memref<8x784xf32, #tpu.memory_space<vmem>>) attributes {dimension_semantics = [#tpu.dimension_semantics<parallel>], iteration_bounds = array<i64: 1>, scalar_prefetch = 0 : i64, scratch_operands = 0 : i64, tpu.core_type = #tpu.core_type<tc>, window_params = [{transform_indices = @transform_0, window_bounds = array<i64: 8, 784>}, {pipeline_mode = #tpu.pipeline_mode<synchronous>, transform_indices = @transform_1, window_bounds = array<i64: 784, 512>}, {pipeline_mode = #tpu.pipeline_mode<synchronous>, transform_indices = @transform_2, window_bounds = array<i64: 512, 256>}, {pipeline_mode = #tpu.pipeline_mode<synchronous>, transform_indices = @transform_3, window_bounds = array<i64: 256, 256>}, {pipeline_mode = #tpu.pipeline_mode<synchronous>, transform_indices = @transform_4, window_bounds = array<i64: 256, 512>}, {pipeline_mode = #tpu.pipeline_mode<synchronous>, transform_indices = @transform_5, window_bounds = array<i64: 512, 784>}, {transform_indices = @transform_6, window_bounds = array<i64: 8, 784>}]} {
    %c0 = arith.constant 0 : index
    %c0_0 = arith.constant 0 : index
    %0 = vector.load %arg1[%c0, %c0_0] : memref<8x784xf32, #tpu.memory_space<vmem>>, vector<8x784xf32>
    %1 = arith.truncf %0 : vector<8x784xf32> to vector<8x784xbf16>
    %c0_1 = arith.constant 0 : index
    %c0_2 = arith.constant 0 : index
    %2 = vector.load %arg2[%c0_1, %c0_2] : memref<784x512xbf16, #tpu.memory_space<vmem>>, vector<784x512xbf16>
    %cst = arith.constant dense<0.000000e+00> : vector<8x512xf32>
    %3 = tpu.matmul %1, %2, %cst {dimension_numbers = #tpu.dot_dimension_numbers<[1], [0], [0], [1], [0, 0, 1, 1], [], []>} : vector<8x784xbf16>, vector<784x512xbf16>, vector<8x512xf32> -> vector<8x512xf32>
    %cst_3 = arith.constant 0.000000e+00 : f32
    %4 = vector.broadcast %cst_3 : f32 to vector<8x512xf32>
    %5 = arith.cmpf olt, %3, %4 : vector<8x512xf32>
    %cst_4 = arith.constant 2.000000e-01 : f32
    %6 = vector.broadcast %cst_4 : f32 to vector<8x512xf32>
    %7 = arith.mulf %6, %3 : vector<8x512xf32>
    %8 = arith.select %5, %7, %3 : vector<8x512xi1>, vector<8x512xf32>
    %9 = arith.truncf %8 : vector<8x512xf32> to vector<8x512xbf16>
    %c0_5 = arith.constant 0 : index
    %c0_6 = arith.constant 0 : index
    %10 = vector.load %arg3[%c0_5, %c0_6] : memref<512x256xbf16, #tpu.memory_space<vmem>>, vector<512x256xbf16>
    %cst_7 = arith.constant dense<0.000000e+00> : vector<8x256xf32>
    %11 = tpu.matmul %9, %10, %cst_7 {dimension_numbers = #tpu.dot_dimension_numbers<[1], [0], [0], [1], [0, 0, 1, 1], [], []>} : vector<8x512xbf16>, vector<512x256xbf16>, vector<8x256xf32> -> vector<8x256xf32>
    %cst_8 = arith.constant 0.000000e+00 : f32
    %12 = vector.broadcast %cst_8 : f32 to vector<8x256xf32>
    %13 = arith.cmpf olt, %11, %12 : vector<8x256xf32>
    %cst_9 = arith.constant 2.000000e-01 : f32
    %14 = vector.broadcast %cst_9 : f32 to vector<8x256xf32>
    %15 = arith.mulf %14, %11 : vector<8x256xf32>
    %16 = arith.select %13, %15, %11 : vector<8x256xi1>, vector<8x256xf32>
    %17 = arith.truncf %16 : vector<8x256xf32> to vector<8x256xbf16>
    %c0_10 = arith.constant 0 : index
    %c0_11 = arith.constant 0 : index
    %18 = vector.load %arg4[%c0_10, %c0_11] : memref<256x256xbf16, #tpu.memory_space<vmem>>, vector<256x256xbf16>
    %cst_12 = arith.constant dense<0.000000e+00> : vector<8x256xf32>
    %19 = tpu.matmul %17, %18, %cst_12 {dimension_numbers = #tpu.dot_dimension_numbers<[1], [0], [0], [1], [0, 0, 1, 1], [], []>} : vector<8x256xbf16>, vector<256x256xbf16>, vector<8x256xf32> -> vector<8x256xf32>
    %cst_13 = arith.constant 0.000000e+00 : f32
    %20 = vector.broadcast %cst_13 : f32 to vector<8x256xf32>
    %21 = arith.cmpf olt, %19, %20 : vector<8x256xf32>
    %cst_14 = arith.constant 5.000000e+00 : f32
    %22 = vector.broadcast %cst_14 : f32 to vector<8x256xf32>
    %23 = arith.mulf %19, %22 : vector<8x256xf32>
    %24 = arith.select %21, %23, %19 : vector<8x256xi1>, vector<8x256xf32>
    %25 = arith.truncf %24 : vector<8x256xf32> to vector<8x256xbf16>
    %c0_15 = arith.constant 0 : index
    %c0_16 = arith.constant 0 : index
    %26 = vector.load %arg5[%c0_15, %c0_16] : memref<256x512xbf16, #tpu.memory_space<vmem>>, vector<256x512xbf16>
    %cst_17 = arith.constant dense<0.000000e+00> : vector<8x512xf32>
    %27 = tpu.matmul %25, %26, %cst_17 {dimension_numbers = #tpu.dot_dimension_numbers<[1], [0], [0], [1], [0, 0, 1, 1], [], []>} : vector<8x256xbf16>, vector<256x512xbf16>, vector<8x512xf32> -> vector<8x512xf32>
    %cst_18 = arith.constant 0.000000e+00 : f32
    %28 = vector.broadcast %cst_18 : f32 to vector<8x512xf32>
    %29 = arith.cmpf olt, %27, %28 : vector<8x512xf32>
    %cst_19 = arith.constant 5.000000e+00 : f32
    %30 = vector.broadcast %cst_19 : f32 to vector<8x512xf32>
    %31 = arith.mulf %27, %30 : vector<8x512xf32>
    %32 = arith.select %29, %31, %27 : vector<8x512xi1>, vector<8x512xf32>
    %33 = arith.truncf %32 : vector<8x512xf32> to vector<8x512xbf16>
    %c0_20 = arith.constant 0 : index
    %c0_21 = arith.constant 0 : index
    %34 = vector.load %arg6[%c0_20, %c0_21] : memref<512x784xbf16, #tpu.memory_space<vmem>>, vector<512x784xbf16>
    %cst_22 = arith.constant dense<0.000000e+00> : vector<8x784xf32>
    %35 = tpu.matmul %33, %34, %cst_22 {dimension_numbers = #tpu.dot_dimension_numbers<[1], [0], [0], [1], [0, 0, 1, 1], [], []>} : vector<8x512xbf16>, vector<512x784xbf16>, vector<8x784xf32> -> vector<8x784xf32>
    %cst_23 = arith.constant 0.000000e+00 : f32
    %36 = vector.broadcast %cst_23 : f32 to vector<8x784xf32>
    %37 = arith.subf %36, %35 : vector<8x784xf32>
    %38 = math.exp %37 : vector<8x784xf32>
    %cst_24 = arith.constant 1.000000e+00 : f32
    %39 = vector.broadcast %cst_24 : f32 to vector<8x784xf32>
    %40 = arith.addf %39, %38 : vector<8x784xf32>
    %41 = tpu.reciprocal %40 {approx = true} : vector<8x784xf32> -> vector<8x784xf32>
    %c0_25 = arith.constant 0 : index
    %c0_26 = arith.constant 0 : index
    %42 = vector.load %arg7[%c0_25, %c0_26] : memref<8x784xf32, #tpu.memory_space<vmem>>, vector<8x784xf32>
    tpu.vector_store %arg7[%c0_25, %c0_26], %41 {strides = array<i32>} : memref<8x784xf32, #tpu.memory_space<vmem>>, vector<8x784xf32>,
    return
  }
  func.func @transform_0(%arg0: i32) -> (i32, i32) {
    %c0_i32 = arith.constant 0 : i32
    %c0_i32_0 = arith.constant 0 : i32
    return %arg0, %c0_i32 : i32, i32
  }
  func.func @transform_1(%arg0: i32) -> (i32, i32) {
    %c0_i32 = arith.constant 0 : i32
    %c0_i32_0 = arith.constant 0 : i32
    %c0_i32_1 = arith.constant 0 : i32
    return %c0_i32, %c0_i32_0 : i32, i32
  }
  func.func @transform_2(%arg0: i32) -> (i32, i32) {
    %c0_i32 = arith.constant 0 : i32
    %c0_i32_0 = arith.constant 0 : i32
    %c0_i32_1 = arith.constant 0 : i32
    return %c0_i32, %c0_i32_0 : i32, i32
  }
  func.func @transform_3(%arg0: i32) -> (i32, i32) {
    %c0_i32 = arith.constant 0 : i32
    %c0_i32_0 = arith.constant 0 : i32
    %c0_i32_1 = arith.constant 0 : i32
    return %c0_i32, %c0_i32_0 : i32, i32
  }
  func.func @transform_4(%arg0: i32) -> (i32, i32) {
    %c0_i32 = arith.constant 0 : i32
    %c0_i32_0 = arith.constant 0 : i32
    %c0_i32_1 = arith.constant 0 : i32
    return %c0_i32, %c0_i32_0 : i32, i32
  }
  func.func @transform_5(%arg0: i32) -> (i32, i32) {
    %c0_i32 = arith.constant 0 : i32
    %c0_i32_0 = arith.constant 0 : i32
    %c0_i32_1 = arith.constant 0 : i32
    return %c0_i32, %c0_i32_0 : i32, i32
  }
  func.func @transform_6(%arg0: i32) -> (i32, i32) {
    %c0_i32 = arith.constant 0 : i32
    %c0_i32_0 = arith.constant 0 : i32
    return %arg0, %c0_i32 : i32, i32
  }
}

</mosaic_0001>

<llo_original>
// kernel: _forward_blocked.1
$region0: #{_forward_blocked.1}
  #allocation0 [shape = 'u32[]', space=smem, size = 0x4, offset = 0x4, fixed_abs, tag = 'smem constant byte address 0x4 - core index']
  #allocation1 [shape = 'u32[144,128]{1,0:T(1,128)}', space=vmem, size = 0x12000, scoped, tag = 'internal scratch']
  %s0 = inlined_call_operand.vmem [shape: f32[8,784], index: 0, kind: input, shape index: {}]
  %s1 = inlined_call_operand.vmem [shape: bf16[784,512], index: 1, kind: input, shape index: {}]
  %s2 = inlined_call_operand.vmem [shape: bf16[512,256], index: 2, kind: input, shape index: {}]
  %s3 = inlined_call_operand.vmem [shape: bf16[256,256], index: 3, kind: input, shape index: {}]
  %s4 = inlined_call_operand.vmem [shape: bf16[256,512], index: 4, kind: input, shape index: {}]
  %s5 = inlined_call_operand.vmem [shape: bf16[512,784], index: 5, kind: input, shape index: {}]
  %s6 = inlined_call_operand.hbm [shape: f32[8,784], index: 6, kind: output, shape index: {}]
  %s7 = sld [smem:[#allocation0]]
  $region34: #{_forward_blocked.1} parent=0
    _
  %s9 = ssub.s32 1, %s7
  %s10 = scalar_select 0, %s9, %s7
  $region1: #{_forward_blocked.1} parent=0
    #allocation2 [shape = 'u8[28672]{0}', space=vmem, size = 0x7000, scoped, tag = 'output window, operand 0, single buffered']
    #allocation3 [shape = 's32[1]{0}', space=sflag, size = 0x4, scoped, tag = 'scoped memory for _forward_blocked.1']
    %11 = vsyncpa [#allocation3], 0
    // Predicated region
    $region2: #{_forward_blocked.1} parent=1 // pred_check
      _
    $region3: #{_forward_blocked.1} parent=1 // pred_check_branch
      %13 = sbr.rel (0) target = $region5
    $region4: #{_forward_blocked.1} parent=1 // pred_region
      _
    $region5: #{_forward_blocked.1} parent=1 // pred_fallthru
      _
    // Predicated region
    $region6: #{_forward_blocked.1} parent=1 // pred_check
      _
    $region7: #{_forward_blocked.1} parent=1 // pred_check_branch
      %15 = sbr.rel (0) target = $region9
    $region8: #{_forward_blocked.1} parent=1 // pred_region
      _
    $region9: #{_forward_blocked.1} parent=1 // pred_fallthru
      _
    // Predicated region
    $region10: #{_forward_blocked.1} parent=1 // pred_check
      _
    $region11: #{_forward_blocked.1} parent=1 // pred_check_branch
      %17 = sbr.rel (0) target = $region13
    $region12: #{_forward_blocked.1} parent=1 // pred_region
      _
    $region13: #{_forward_blocked.1} parent=1 // pred_fallthru
      _
    // Predicated region
    $region14: #{_forward_blocked.1} parent=1 // pred_check
      _
    $region15: #{_forward_blocked.1} parent=1 // pred_check_branch
      %19 = sbr.rel (0) target = $region17
    $region16: #{_forward_blocked.1} parent=1 // pred_region
      _
    $region17: #{_forward_blocked.1} parent=1 // pred_fallthru
      _
    // Predicated region
    $region18: #{_forward_blocked.1} parent=1 // pred_check
      _
    $region19: #{_forward_blocked.1} parent=1 // pred_check_branch
      %21 = sbr.rel (0) target = $region21
    $region20: #{_forward_blocked.1} parent=1 // pred_region
      _
    $region21: #{_forward_blocked.1} parent=1 // pred_fallthru
      _
    // Predicated region
    $region22: #{_forward_blocked.1} parent=1 // pred_check
      _
    $region23: #{_forward_blocked.1} parent=1 // pred_check_branch
      %23 = sbr.rel (0) target = $region25
    $region24: #{_forward_blocked.1} parent=1 // pred_region
      _
    $region25: #{_forward_blocked.1} parent=1 // pred_fallthru
      _
    %v25 = vld [vmem:[%s0] sm:$0xff]
    %v26 = vld [vmem:[%s0 + $0x8] sm:$0xff]
    %v27 = vld [vmem:[%s0 + $0x10] sm:$0xff]
    %v28 = vld [vmem:[%s0 + $0x18] sm:$0xff]
    %v29 = vld [vmem:[%s0 + $0x20] sm:$0xff]
    %v30 = vld [vmem:[%s0 + $0x28] sm:$0xff]
    %v31 = vld [vmem:[%s0 + $0x30] sm:$0xff]
    %v32 = vpack.c.bf16 %v25, %v25
    %v33 = vpack.c.bf16 %v26, %v26
    %v34 = vpack.c.bf16 %v27, %v27
    %v35 = vpack.c.bf16 %v28, %v28
    %v36 = vpack.c.bf16 %v29, %v29
    %v37 = vpack.c.bf16 %v30, %v30
    %v38 = vpack.c.bf16 %v31, %v31
    %v39 = vld [vmem:[%s1] sm:$0xff]
    %v40 = vld [vmem:[%s1 + $0x8] sm:$0xff]
    %v41 = vld [vmem:[%s1 + $0x10] sm:$0xff]
    %v42 = vld [vmem:[%s1 + $0x18] sm:$0xff]
    %v43 = vld [vmem:[%s1 + $0x20] sm:$0xff]
    %v44 = vld [vmem:[%s1 + $0x28] sm:$0xff]
    %v45 = vld [vmem:[%s1 + $0x30] sm:$0xff]
    %v46 = vld [vmem:[%s1 + $0x38] sm:$0xff]
    %v47 = vld [vmem:[%s1 + $0x40] sm:$0xff]
    %v48 = vld [vmem:[%s1 + $0x48] sm:$0xff]
    %v49 = vld [vmem:[%s1 + $0x50] sm:$0xff]
    %v50 = vld [vmem:[%s1 + $0x58] sm:$0xff]
    %v51 = vld [vmem:[%s1 + $0x60] sm:$0xff]
    %v52 = vld [vmem:[%s1 + $0x68] sm:$0xff]
    %v53 = vld [vmem:[%s1 + $0x70] sm:$0xff]
    %v54 = vld [vmem:[%s1 + $0x78] sm:$0xff]
    %v55 = vld [vmem:[%s1 + $0x80] sm:$0xff]
    %v56 = vld [vmem:[%s1 + $0x88] sm:$0xff]
    %v57 = vld [vmem:[%s1 + $0x90] sm:$0xff]
    %v58 = vld [vmem:[%s1 + $0x98] sm:$0xff]
    %v59 = vld [vmem:[%s1 + $0xa0] sm:$0xff]
    %v60 = vld [vmem:[%s1 + $0xa8] sm:$0xff]
    %v61 = vld [vmem:[%s1 + $0xb0] sm:$0xff]
    %v62 = vld [vmem:[%s1 + $0xb8] sm:$0xff]
    %v63 = vld [vmem:[%s1 + $0xc0] sm:$0xff]
    %v64 = vld [vmem:[%s1 + $0xc8] sm:$0xff]
    %v65 = vld [vmem:[%s1 + $0xd0] sm:$0xff]
    %v66 = vld [vmem:[%s1 + $0xd8] sm:$0xff]
    %v67 = vld [vmem:[%s1 + $0xe0] sm:$0xff]
    %v68 = vld [vmem:[%s1 + $0xe8] sm:$0xff]
    %v69 = vld [vmem:[%s1 + $0xf0] sm:$0xff]
    %v70 = vld [vmem:[%s1 + $0xf8] sm:$0xff]
    %v71 = vld [vmem:[%s1 + $0x100] sm:$0xff]
    %v72 = vld [vmem:[%s1 + $0x108] sm:$0xff]
    %v73 = vld [vmem:[%s1 + $0x110] sm:$0xff]
    %v74 = vld [vmem:[%s1 + $0x118] sm:$0xff]
    %v75 = vld [vmem:[%s1 + $0x120] sm:$0xff]
    %v76 = vld [vmem:[%s1 + $0x128] sm:$0xff]
    %v77 = vld [vmem:[%s1 + $0x130] sm:$0xff]
    %v78 = vld [vmem:[%s1 + $0x138] sm:$0xff]
    %v79 = vld [vmem:[%s1 + $0x140] sm:$0xff]
    %v80 = vld [vmem:[%s1 + $0x148] sm:$0xff]
    %v81 = vld [vmem:[%s1 + $0x150] sm:$0xff]
    %v82 = vld [vmem:[%s1 + $0x158] sm:$0xff]
    %v83 = vld [vmem:[%s1 + $0x160] sm:$0xff]
    %v84 = vld [vmem:[%s1 + $0x168] sm:$0xff]
    %v85 = vld [vmem:[%s1 + $0x170] sm:$0xff]
    %v86 = vld [vmem:[%s1 + $0x178] sm:$0xff]
    %v87 = vld [vmem:[%s1 + $0x180] sm:$0xff]
    %v88 = vld [vmem:[%s1 + $0x188] sm:$0xff]
    %v89 = vld [vmem:[%s1 + $0x190] sm:$0xff]
    %v90 = vld [vmem:[%s1 + $0x198] sm:$0xff]
    %v91 = vld [vmem:[%s1 + $0x1a0] sm:$0xff]
    %v92 = vld [vmem:[%s1 + $0x1a8] sm:$0xff]
    %v93 = vld [vmem:[%s1 + $0x1b0] sm:$0xff]
    %v94 = vld [vmem:[%s1 + $0x1b8] sm:$0xff]
    %v95 = vld [vmem:[%s1 + $0x1c0] sm:$0xff]
    %v96 = vld [vmem:[%s1 + $0x1c8] sm:$0xff]
    %v97 = vld [vmem:[%s1 + $0x1d0] sm:$0xff]
    %v98 = vld [vmem:[%s1 + $0x1d8] sm:$0xff]
    %v99 = vld [vmem:[%s1 + $0x1e0] sm:$0xff]
    %v100 = vld [vmem:[%s1 + $0x1e8] sm:$0xff]
    %v101 = vld [vmem:[%s1 + $0x1f0] sm:$0xff]
    %v102 = vld [vmem:[%s1 + $0x1f8] sm:$0xff]
    %v103 = vld [vmem:[%s1 + $0x200] sm:$0xff]
    %v104 = vld [vmem:[%s1 + $0x208] sm:$0xff]
    %v105 = vld [vmem:[%s1 + $0x210] sm:$0xff]
    %v106 = vld [vmem:[%s1 + $0x218] sm:$0xff]
    %v107 = vld [vmem:[%s1 + $0x220] sm:$0xff]
    %v108 = vld [vmem:[%s1 + $0x228] sm:$0xff]
    %v109 = vld [vmem:[%s1 + $0x230] sm:$0xff]
    %v110 = vld [vmem:[%s1 + $0x238] sm:$0xff]
    %v111 = vld [vmem:[%s1 + $0x240] sm:$0xff]
    %v112 = vld [vmem:[%s1 + $0x248] sm:$0xff]
    %v113 = vld [vmem:[%s1 + $0x250] sm:$0xff]
    %v114 = vld [vmem:[%s1 + $0x258] sm:$0xff]
    %v115 = vld [vmem:[%s1 + $0x260] sm:$0xff]
    %v116 = vld [vmem:[%s1 + $0x268] sm:$0xff]
    %v117 = vld [vmem:[%s1 + $0x270] sm:$0xff]
    %v118 = vld [vmem:[%s1 + $0x278] sm:$0xff]
    %v119 = vld [vmem:[%s1 + $0x280] sm:$0xff]
    %v120 = vld [vmem:[%s1 + $0x288] sm:$0xff]
    %v121 = vld [vmem:[%s1 + $0x290] sm:$0xff]
    %v122 = vld [vmem:[%s1 + $0x298] sm:$0xff]
    %v123 = vld [vmem:[%s1 + $0x2a0] sm:$0xff]
    %v124 = vld [vmem:[%s1 + $0x2a8] sm:$0xff]
    %v125 = vld [vmem:[%s1 + $0x2b0] sm:$0xff]
    %v126 = vld [vmem:[%s1 + $0x2b8] sm:$0xff]
    %v127 = vld [vmem:[%s1 + $0x2c0] sm:$0xff]
    %v128 = vld [vmem:[%s1 + $0x2c8] sm:$0xff]
    %v129 = vld [vmem:[%s1 + $0x2d0] sm:$0xff]
    %v130 = vld [vmem:[%s1 + $0x2d8] sm:$0xff]
    %v131 = vld [vmem:[%s1 + $0x2e0] sm:$0xff]
    %v132 = vld [vmem:[%s1 + $0x2e8] sm:$0xff]
    %v133 = vld [vmem:[%s1 + $0x2f0] sm:$0xff]
    %v134 = vld [vmem:[%s1 + $0x2f8] sm:$0xff]
    %v135 = vld [vmem:[%s1 + $0x300] sm:$0xff]
    %v136 = vld [vmem:[%s1 + $0x308] sm:$0xff]
    %v137 = vld [vmem:[%s1 + $0x310] sm:$0xff]
    %v138 = vld [vmem:[%s1 + $0x318] sm:$0xff]
    %v139 = vld [vmem:[%s1 + $0x320] sm:$0xff]
    %v140 = vld [vmem:[%s1 + $0x328] sm:$0xff]
    %v141 = vld [vmem:[%s1 + $0x330] sm:$0xff]
    %v142 = vld [vmem:[%s1 + $0x338] sm:$0xff]
    %v143 = vld [vmem:[%s1 + $0x340] sm:$0xff]
    %v144 = vld [vmem:[%s1 + $0x348] sm:$0xff]
    %v145 = vld [vmem:[%s1 + $0x350] sm:$0xff]
    %v146 = vld [vmem:[%s1 + $0x358] sm:$0xff]
    %v147 = vld [vmem:[%s1 + $0x360] sm:$0xff]
    %v148 = vld [vmem:[%s1 + $0x368] sm:$0xff]
    %v149 = vld [vmem:[%s1 + $0x370] sm:$0xff]
    %v150 = vld [vmem:[%s1 + $0x378] sm:$0xff]
    %v151 = vld [vmem:[%s1 + $0x380] sm:$0xff]
    %v152 = vld [vmem:[%s1 + $0x388] sm:$0xff]
    %v153 = vld [vmem:[%s1 + $0x390] sm:$0xff]
    %v154 = vld [vmem:[%s1 + $0x398] sm:$0xff]
    %v155 = vld [vmem:[%s1 + $0x3a0] sm:$0xff]
    %v156 = vld [vmem:[%s1 + $0x3a8] sm:$0xff]
    %v157 = vld [vmem:[%s1 + $0x3b0] sm:$0xff]
    %v158 = vld [vmem:[%s1 + $0x3b8] sm:$0xff]
    %v159 = vld [vmem:[%s1 + $0x3c0] sm:$0xff]
    %v160 = vld [vmem:[%s1 + $0x3c8] sm:$0xff]
    %v161 = vld [vmem:[%s1 + $0x3d0] sm:$0xff]
    %v162 = vld [vmem:[%s1 + $0x3d8] sm:$0xff]
    %v163 = vld [vmem:[%s1 + $0x3e0] sm:$0xff]
    %v164 = vld [vmem:[%s1 + $0x3e8] sm:$0xff]
    %v165 = vld [vmem:[%s1 + $0x3f0] sm:$0xff]
    %v166 = vld [vmem:[%s1 + $0x3f8] sm:$0xff]
    %v167 = vld [vmem:[%s1 + $0x400] sm:$0xff]
    %v168 = vld [vmem:[%s1 + $0x408] sm:$0xff]
    %v169 = vld [vmem:[%s1 + $0x410] sm:$0xff]
    %v170 = vld [vmem:[%s1 + $0x418] sm:$0xff]
    %v171 = vld [vmem:[%s1 + $0x420] sm:$0xff]
    %v172 = vld [vmem:[%s1 + $0x428] sm:$0xff]
    %v173 = vld [vmem:[%s1 + $0x430] sm:$0xff]
    %v174 = vld [vmem:[%s1 + $0x438] sm:$0xff]
    %v175 = vld [vmem:[%s1 + $0x440] sm:$0xff]
    %v176 = vld [vmem:[%s1 + $0x448] sm:$0xff]
    %v177 = vld [vmem:[%s1 + $0x450] sm:$0xff]
    %v178 = vld [vmem:[%s1 + $0x458] sm:$0xff]
    %v179 = vld [vmem:[%s1 + $0x460] sm:$0xff]
    %v180 = vld [vmem:[%s1 + $0x468] sm:$0xff]
    %v181 = vld [vmem:[%s1 + $0x470] sm:$0xff]
    %v182 = vld [vmem:[%s1 + $0x478] sm:$0xff]
    %v183 = vld [vmem:[%s1 + $0x480] sm:$0xff]
    %v184 = vld [vmem:[%s1 + $0x488] sm:$0xff]
    %v185 = vld [vmem:[%s1 + $0x490] sm:$0xff]
    %v186 = vld [vmem:[%s1 + $0x498] sm:$0xff]
    %v187 = vld [vmem:[%s1 + $0x4a0] sm:$0xff]
    %v188 = vld [vmem:[%s1 + $0x4a8] sm:$0xff]
    %v189 = vld [vmem:[%s1 + $0x4b0] sm:$0xff]
    %v190 = vld [vmem:[%s1 + $0x4b8] sm:$0xff]
    %v191 = vld [vmem:[%s1 + $0x4c0] sm:$0xff]
    %v192 = vld [vmem:[%s1 + $0x4c8] sm:$0xff]
    %v193 = vld [vmem:[%s1 + $0x4d0] sm:$0xff]
    %v194 = vld [vmem:[%s1 + $0x4d8] sm:$0xff]
    %v195 = vld [vmem:[%s1 + $0x4e0] sm:$0xff]
    %v196 = vld [vmem:[%s1 + $0x4e8] sm:$0xff]
    %v197 = vld [vmem:[%s1 + $0x4f0] sm:$0xff]
    %v198 = vld [vmem:[%s1 + $0x4f8] sm:$0xff]
    %v199 = vld [vmem:[%s1 + $0x500] sm:$0xff]
    %v200 = vld [vmem:[%s1 + $0x508] sm:$0xff]
    %v201 = vld [vmem:[%s1 + $0x510] sm:$0xff]
    %v202 = vld [vmem:[%s1 + $0x518] sm:$0xff]
    %v203 = vld [vmem:[%s1 + $0x520] sm:$0xff]
    %v204 = vld [vmem:[%s1 + $0x528] sm:$0xff]
    %v205 = vld [vmem:[%s1 + $0x530] sm:$0xff]
    %v206 = vld [vmem:[%s1 + $0x538] sm:$0xff]
    %v207 = vld [vmem:[%s1 + $0x540] sm:$0xff]
    %v208 = vld [vmem:[%s1 + $0x548] sm:$0xff]
    %v209 = vld [vmem:[%s1 + $0x550] sm:$0xff]
    %v210 = vld [vmem:[%s1 + $0x558] sm:$0xff]
    %v211 = vld [vmem:[%s1 + $0x560] sm:$0xff]
    %v212 = vld [vmem:[%s1 + $0x568] sm:$0xff]
    %v213 = vld [vmem:[%s1 + $0x570] sm:$0xff]
    %v214 = vld [vmem:[%s1 + $0x578] sm:$0xff]
    %v215 = vld [vmem:[%s1 + $0x580] sm:$0xff]
    %v216 = vld [vmem:[%s1 + $0x588] sm:$0xff]
    %v217 = vld [vmem:[%s1 + $0x590] sm:$0xff]
    %v218 = vld [vmem:[%s1 + $0x598] sm:$0xff]
    %v219 = vld [vmem:[%s1 + $0x5a0] sm:$0xff]
    %v220 = vld [vmem:[%s1 + $0x5a8] sm:$0xff]
    %v221 = vld [vmem:[%s1 + $0x5b0] sm:$0xff]
    %v222 = vld [vmem:[%s1 + $0x5b8] sm:$0xff]
    %v223 = vld [vmem:[%s1 + $0x5c0] sm:$0xff]
    %v224 = vld [vmem:[%s1 + $0x5c8] sm:$0xff]
    %v225 = vld [vmem:[%s1 + $0x5d0] sm:$0xff]
    %v226 = vld [vmem:[%s1 + $0x5d8] sm:$0xff]
    %v227 = vld [vmem:[%s1 + $0x5e0] sm:$0xff]
    %v228 = vld [vmem:[%s1 + $0x5e8] sm:$0xff]
    %v229 = vld [vmem:[%s1 + $0x5f0] sm:$0xff]
    %v230 = vld [vmem:[%s1 + $0x5f8] sm:$0xff]
    %v231 = vld [vmem:[%s1 + $0x600] sm:$0xff]
    %v232 = vld [vmem:[%s1 + $0x608] sm:$0xff]
    %v233 = vld [vmem:[%s1 + $0x610] sm:$0xff]
    %v234 = vld [vmem:[%s1 + $0x618] sm:$0xff]
    %v431 = vunpack.c.l.b16 %v39
    %v432 = vunpack.c.h.b16 %v39
    %v433 = vunpack.c.l.b16 %v40
    %v434 = vunpack.c.h.b16 %v40
    %v435 = vunpack.c.l.b16 %v41
    %v436 = vunpack.c.h.b16 %v41
    %v437 = vunpack.c.l.b16 %v42
    %v438 = vunpack.c.h.b16 %v42
    %v439 = vunpack.c.l.b16 %v43
    %v440 = vunpack.c.h.b16 %v43
    %v441 = vunpack.c.l.b16 %v44
    %v442 = vunpack.c.h.b16 %v44
    %v443 = vunpack.c.l.b16 %v45
    %v444 = vunpack.c.h.b16 %v45
    %v445 = vunpack.c.l.b16 %v46
    %v446 = vunpack.c.h.b16 %v46
    %v447 = vunpack.c.l.b16 %v47
    %v448 = vunpack.c.h.b16 %v47
    %v449 = vunpack.c.l.b16 %v48
    %v450 = vunpack.c.h.b16 %v48
    %v451 = vunpack.c.l.b16 %v49
    %v452 = vunpack.c.h.b16 %v49
    %v453 = vunpack.c.l.b16 %v50
    %v454 = vunpack.c.h.b16 %v50
    %v455 = vunpack.c.l.b16 %v51
    %v456 = vunpack.c.h.b16 %v51
    %v457 = vunpack.c.l.b16 %v52
    %v458 = vunpack.c.h.b16 %v52
    %v459 = vunpack.c.l.b16 %v53
    %v460 = vunpack.c.h.b16 %v53
    %v461 = vunpack.c.l.b16 %v54
    %v462 = vunpack.c.h.b16 %v54
    %v463 = vunpack.c.l.b16 %v55
    %v464 = vunpack.c.h.b16 %v55
    %v465 = vunpack.c.l.b16 %v56
    %v466 = vunpack.c.h.b16 %v56
    %v467 = vunpack.c.l.b16 %v57
    %v468 = vunpack.c.h.b16 %v57
    %v469 = vunpack.c.l.b16 %v58
    %v470 = vunpack.c.h.b16 %v58
    %v471 = vunpack.c.l.b16 %v59
    %v472 = vunpack.c.h.b16 %v59
    %v473 = vunpack.c.l.b16 %v60
    %v474 = vunpack.c.h.b16 %v60
    %v475 = vunpack.c.l.b16 %v61
    %v476 = vunpack.c.h.b16 %v61
    %v477 = vunpack.c.l.b16 %v62
    %v478 = vunpack.c.h.b16 %v62
    %v479 = vunpack.c.l.b16 %v63
    %v480 = vunpack.c.h.b16 %v63
    %v481 = vunpack.c.l.b16 %v64
    %v482 = vunpack.c.h.b16 %v64
    %v483 = vunpack.c.l.b16 %v65
    %v484 = vunpack.c.h.b16 %v65
    %v485 = vunpack.c.l.b16 %v66
    %v486 = vunpack.c.h.b16 %v66
    %v487 = vunpack.c.l.b16 %v67
    %v488 = vunpack.c.h.b16 %v67
    %v489 = vunpack.c.l.b16 %v68
    %v490 = vunpack.c.h.b16 %v68
    %v491 = vunpack.c.l.b16 %v69
    %v492 = vunpack.c.h.b16 %v69
    %v493 = vunpack.c.l.b16 %v70
    %v494 = vunpack.c.h.b16 %v70
    %v495 = vunpack.c.l.b16 %v71
    %v496 = vunpack.c.h.b16 %v71
    %v497 = vunpack.c.l.b16 %v72
    %v498 = vunpack.c.h.b16 %v72
    %v499 = vunpack.c.l.b16 %v73
    %v500 = vunpack.c.h.b16 %v73
    %v501 = vunpack.c.l.b16 %v74
    %v502 = vunpack.c.h.b16 %v74
    %v503 = vunpack.c.l.b16 %v75
    %v504 = vunpack.c.h.b16 %v75
    %v505 = vunpack.c.l.b16 %v76
    %v506 = vunpack.c.h.b16 %v76
    %v507 = vunpack.c.l.b16 %v77
    %v508 = vunpack.c.h.b16 %v77
    %v509 = vunpack.c.l.b16 %v78
    %v510 = vunpack.c.h.b16 %v78
    %v511 = vunpack.c.l.b16 %v79
    %v512 = vunpack.c.h.b16 %v79
    %v513 = vunpack.c.l.b16 %v80
    %v514 = vunpack.c.h.b16 %v80
    %v515 = vunpack.c.l.b16 %v81
    %v516 = vunpack.c.h.b16 %v81
    %v517 = vunpack.c.l.b16 %v82
    %v518 = vunpack.c.h.b16 %v82
    %v519 = vunpack.c.l.b16 %v83
    %v520 = vunpack.c.h.b16 %v83
    %v521 = vunpack.c.l.b16 %v84
    %v522 = vunpack.c.h.b16 %v84
    %v523 = vunpack.c.l.b16 %v85
    %v524 = vunpack.c.h.b16 %v85
    %v525 = vunpack.c.l.b16 %v86
    %v526 = vunpack.c.h.b16 %v86
    %v527 = vunpack.c.l.b16 %v87
    %v528 = vunpack.c.h.b16 %v87
    %v529 = vunpack.c.l.b16 %v88
    %v530 = vunpack.c.h.b16 %v88
    %v531 = vunpack.c.l.b16 %v89
    %v532 = vunpack.c.h.b16 %v89
    %v533 = vunpack.c.l.b16 %v90
    %v534 = vunpack.c.h.b16 %v90
    %v535 = vunpack.c.l.b16 %v91
    %v536 = vunpack.c.h.b16 %v91
    %v537 = vunpack.c.l.b16 %v92
    %v538 = vunpack.c.h.b16 %v92
    %v539 = vunpack.c.l.b16 %v93
    %v540 = vunpack.c.h.b16 %v93
    %v541 = vunpack.c.l.b16 %v94
    %v542 = vunpack.c.h.b16 %v94
    %v543 = vunpack.c.l.b16 %v95
    %v544 = vunpack.c.h.b16 %v95
    %v545 = vunpack.c.l.b16 %v96
    %v546 = vunpack.c.h.b16 %v96
    %v547 = vunpack.c.l.b16 %v97
    %v548 = vunpack.c.h.b16 %v97
    %v549 = vunpack.c.l.b16 %v98
    %v550 = vunpack.c.h.b16 %v98
    %v551 = vunpack.c.l.b16 %v99
    %v552 = vunpack.c.h.b16 %v99
    %v553 = vunpack.c.l.b16 %v100
    %v554 = vunpack.c.h.b16 %v100
    %v555 = vunpack.c.l.b16 %v101
    %v556 = vunpack.c.h.b16 %v101
    %v557 = vunpack.c.l.b16 %v102
    %v558 = vunpack.c.h.b16 %v102
    %v559 = vunpack.c.l.b16 %v103
    %v560 = vunpack.c.h.b16 %v103
    %v561 = vunpack.c.l.b16 %v104
    %v562 = vunpack.c.h.b16 %v104
    %v563 = vunpack.c.l.b16 %v105
    %v564 = vunpack.c.h.b16 %v105
    %v565 = vunpack.c.l.b16 %v106
    %v566 = vunpack.c.h.b16 %v106
    %v567 = vunpack.c.l.b16 %v107
    %v568 = vunpack.c.h.b16 %v107
    %v569 = vunpack.c.l.b16 %v108
    %v570 = vunpack.c.h.b16 %v108
    %v571 = vunpack.c.l.b16 %v109
    %v572 = vunpack.c.h.b16 %v109
    %v573 = vunpack.c.l.b16 %v110
    %v574 = vunpack.c.h.b16 %v110
    %v575 = vunpack.c.l.b16 %v111
    %v576 = vunpack.c.h.b16 %v111
    %v577 = vunpack.c.l.b16 %v112
    %v578 = vunpack.c.h.b16 %v112
    %v579 = vunpack.c.l.b16 %v113
    %v580 = vunpack.c.h.b16 %v113
    %v581 = vunpack.c.l.b16 %v114
    %v582 = vunpack.c.h.b16 %v114
    %v583 = vunpack.c.l.b16 %v115
    %v584 = vunpack.c.h.b16 %v115
    %v585 = vunpack.c.l.b16 %v116
    %v586 = vunpack.c.h.b16 %v116
    %v587 = vunpack.c.l.b16 %v117
    %v588 = vunpack.c.h.b16 %v117
    %v589 = vunpack.c.l.b16 %v118
    %v590 = vunpack.c.h.b16 %v118
    %v591 = vunpack.c.l.b16 %v119
    %v592 = vunpack.c.h.b16 %v119
    %v593 = vunpack.c.l.b16 %v120
    %v594 = vunpack.c.h.b16 %v120
    %v595 = vunpack.c.l.b16 %v121
    %v596 = vunpack.c.h.b16 %v121
    %v597 = vunpack.c.l.b16 %v122
    %v598 = vunpack.c.h.b16 %v122
    %v599 = vunpack.c.l.b16 %v123
    %v600 = vunpack.c.h.b16 %v123
    %v601 = vunpack.c.l.b16 %v124
    %v602 = vunpack.c.h.b16 %v124
    %v603 = vunpack.c.l.b16 %v125
    %v604 = vunpack.c.h.b16 %v125
    %v605 = vunpack.c.l.b16 %v126
    %v606 = vunpack.c.h.b16 %v126
    %v607 = vunpack.c.l.b16 %v127
    %v608 = vunpack.c.h.b16 %v127
    %v609 = vunpack.c.l.b16 %v128
    %v610 = vunpack.c.h.b16 %v128
    %v611 = vunpack.c.l.b16 %v129
    %v612 = vunpack.c.h.b16 %v129
    %v613 = vunpack.c.l.b16 %v130
    %v614 = vunpack.c.h.b16 %v130
    %v615 = vunpack.c.l.b16 %v131
    %v616 = vunpack.c.h.b16 %v131
    %v617 = vunpack.c.l.b16 %v132
    %v618 = vunpack.c.h.b16 %v132
    %v619 = vunpack.c.l.b16 %v133
    %v620 = vunpack.c.h.b16 %v133
    %v621 = vunpack.c.l.b16 %v134
    %v622 = vunpack.c.h.b16 %v134
    %v623 = vunpack.c.l.b16 %v135
    %v624 = vunpack.c.h.b16 %v135
    %v625 = vunpack.c.l.b16 %v136
    %v626 = vunpack.c.h.b16 %v136
    %v627 = vunpack.c.l.b16 %v137
    %v628 = vunpack.c.h.b16 %v137
    %v629 = vunpack.c.l.b16 %v138
    %v630 = vunpack.c.h.b16 %v138
    %v631 = vunpack.c.l.b16 %v139
    %v632 = vunpack.c.h.b16 %v139
    %v633 = vunpack.c.l.b16 %v140
    %v634 = vunpack.c.h.b16 %v140
    %v635 = vunpack.c.l.b16 %v141
    %v636 = vunpack.c.h.b16 %v141
    %v637 = vunpack.c.l.b16 %v142
    %v638 = vunpack.c.h.b16 %v142
    %v639 = vunpack.c.l.b16 %v143
    %v640 = vunpack.c.h.b16 %v143
    %v641 = vunpack.c.l.b16 %v144
    %v642 = vunpack.c.h.b16 %v144
    %v643 = vunpack.c.l.b16 %v145
    %v644 = vunpack.c.h.b16 %v145
    %v645 = vunpack.c.l.b16 %v146
    %v646 = vunpack.c.h.b16 %v146
    %v647 = vunpack.c.l.b16 %v147
    %v648 = vunpack.c.h.b16 %v147
    %v649 = vunpack.c.l.b16 %v148
    %v650 = vunpack.c.h.b16 %v148
    %v651 = vunpack.c.l.b16 %v149
    %v652 = vunpack.c.h.b16 %v149
    %v653 = vunpack.c.l.b16 %v150
    %v654 = vunpack.c.h.b16 %v150
    %v655 = vunpack.c.l.b16 %v151
    %v656 = vunpack.c.h.b16 %v151
    %v657 = vunpack.c.l.b16 %v152
    %v658 = vunpack.c.h.b16 %v152
    %v659 = vunpack.c.l.b16 %v153
    %v660 = vunpack.c.h.b16 %v153
    %v661 = vunpack.c.l.b16 %v154
    %v662 = vunpack.c.h.b16 %v154
    %v663 = vunpack.c.l.b16 %v155
    %v664 = vunpack.c.h.b16 %v155
    %v665 = vunpack.c.l.b16 %v156
    %v666 = vunpack.c.h.b16 %v156
    %v667 = vunpack.c.l.b16 %v157
    %v668 = vunpack.c.h.b16 %v157
    %v669 = vunpack.c.l.b16 %v158
    %v670 = vunpack.c.h.b16 %v158
    %v671 = vunpack.c.l.b16 %v159
    %v672 = vunpack.c.h.b16 %v159
    %v673 = vunpack.c.l.b16 %v160
    %v674 = vunpack.c.h.b16 %v160
    %v675 = vunpack.c.l.b16 %v161
    %v676 = vunpack.c.h.b16 %v161
    %v677 = vunpack.c.l.b16 %v162
    %v678 = vunpack.c.h.b16 %v162
    %v679 = vunpack.c.l.b16 %v163
    %v680 = vunpack.c.h.b16 %v163
    %v681 = vunpack.c.l.b16 %v164
    %v682 = vunpack.c.h.b16 %v164
    %v683 = vunpack.c.l.b16 %v165
    %v684 = vunpack.c.h.b16 %v165
    %v685 = vunpack.c.l.b16 %v166
    %v686 = vunpack.c.h.b16 %v166
    %v687 = vunpack.c.l.b16 %v167
    %v688 = vunpack.c.h.b16 %v167
    %v689 = vunpack.c.l.b16 %v168
    %v690 = vunpack.c.h.b16 %v168
    %v691 = vunpack.c.l.b16 %v169
    %v692 = vunpack.c.h.b16 %v169
    %v693 = vunpack.c.l.b16 %v170
    %v694 = vunpack.c.h.b16 %v170
    %v695 = vunpack.c.l.b16 %v171
    %v696 = vunpack.c.h.b16 %v171
    %v697 = vunpack.c.l.b16 %v172
    %v698 = vunpack.c.h.b16 %v172
    %v699 = vunpack.c.l.b16 %v173
    %v700 = vunpack.c.h.b16 %v173
    %v701 = vunpack.c.l.b16 %v174
    %v702 = vunpack.c.h.b16 %v174
    %v703 = vunpack.c.l.b16 %v175
    %v704 = vunpack.c.h.b16 %v175
    %v705 = vunpack.c.l.b16 %v176
    %v706 = vunpack.c.h.b16 %v176
    %v707 = vunpack.c.l.b16 %v177
    %v708 = vunpack.c.h.b16 %v177
    %v709 = vunpack.c.l.b16 %v178
    %v710 = vunpack.c.h.b16 %v178
    %v711 = vunpack.c.l.b16 %v179
    %v712 = vunpack.c.h.b16 %v179
    %v713 = vunpack.c.l.b16 %v180
    %v714 = vunpack.c.h.b16 %v180
    %v715 = vunpack.c.l.b16 %v181
    %v716 = vunpack.c.h.b16 %v181
    %v717 = vunpack.c.l.b16 %v182
    %v718 = vunpack.c.h.b16 %v182
    %v719 = vunpack.c.l.b16 %v183
    %v720 = vunpack.c.h.b16 %v183
    %v721 = vunpack.c.l.b16 %v184
    %v722 = vunpack.c.h.b16 %v184
    %v723 = vunpack.c.l.b16 %v185
    %v724 = vunpack.c.h.b16 %v185
    %v725 = vunpack.c.l.b16 %v186
    %v726 = vunpack.c.h.b16 %v186
    %v727 = vunpack.c.l.b16 %v187
    %v728 = vunpack.c.h.b16 %v187
    %v729 = vunpack.c.l.b16 %v188
    %v730 = vunpack.c.h.b16 %v188
    %v731 = vunpack.c.l.b16 %v189
    %v732 = vunpack.c.h.b16 %v189
    %v733 = vunpack.c.l.b16 %v190
    %v734 = vunpack.c.h.b16 %v190
    %v735 = vunpack.c.l.b16 %v191
    %v736 = vunpack.c.h.b16 %v191
    %v737 = vunpack.c.l.b16 %v192
    %v738 = vunpack.c.h.b16 %v192
    %v739 = vunpack.c.l.b16 %v193
    %v740 = vunpack.c.h.b16 %v193
    %v741 = vunpack.c.l.b16 %v194
    %v742 = vunpack.c.h.b16 %v194
    %v743 = vunpack.c.l.b16 %v195
    %v744 = vunpack.c.h.b16 %v195
    %v745 = vunpack.c.l.b16 %v196
    %v746 = vunpack.c.h.b16 %v196
    %v747 = vunpack.c.l.b16 %v197
    %v748 = vunpack.c.h.b16 %v197
    %v749 = vunpack.c.l.b16 %v198
    %v750 = vunpack.c.h.b16 %v198
    %v751 = vunpack.c.l.b16 %v199
    %v752 = vunpack.c.h.b16 %v199
    %v753 = vunpack.c.l.b16 %v200
    %v754 = vunpack.c.h.b16 %v200
    %v755 = vunpack.c.l.b16 %v201
    %v756 = vunpack.c.h.b16 %v201
    %v757 = vunpack.c.l.b16 %v202
    %v758 = vunpack.c.h.b16 %v202
    %v759 = vunpack.c.l.b16 %v203
    %v760 = vunpack.c.h.b16 %v203
    %v761 = vunpack.c.l.b16 %v204
    %v762 = vunpack.c.h.b16 %v204
    %v763 = vunpack.c.l.b16 %v205
    %v764 = vunpack.c.h.b16 %v205
    %v765 = vunpack.c.l.b16 %v206
    %v766 = vunpack.c.h.b16 %v206
    %v767 = vunpack.c.l.b16 %v207
    %v768 = vunpack.c.h.b16 %v207
    %v769 = vunpack.c.l.b16 %v208
    %v770 = vunpack.c.h.b16 %v208
    %v771 = vunpack.c.l.b16 %v209
    %v772 = vunpack.c.h.b16 %v209
    %v773 = vunpack.c.l.b16 %v210
    %v774 = vunpack.c.h.b16 %v210
    %v775 = vunpack.c.l.b16 %v211
    %v776 = vunpack.c.h.b16 %v211
    %v777 = vunpack.c.l.b16 %v212
    %v778 = vunpack.c.h.b16 %v212
    %v779 = vunpack.c.l.b16 %v213
    %v780 = vunpack.c.h.b16 %v213
    %v781 = vunpack.c.l.b16 %v214
    %v782 = vunpack.c.h.b16 %v214
    %v783 = vunpack.c.l.b16 %v215
    %v784 = vunpack.c.h.b16 %v215
    %v785 = vunpack.c.l.b16 %v216
    %v786 = vunpack.c.h.b16 %v216
    %v787 = vunpack.c.l.b16 %v217
    %v788 = vunpack.c.h.b16 %v217
    %v789 = vunpack.c.l.b16 %v218
    %v790 = vunpack.c.h.b16 %v218
    %v791 = vunpack.c.l.b16 %v219
    %v792 = vunpack.c.h.b16 %v219
    %v793 = vunpack.c.l.b16 %v220
    %v794 = vunpack.c.h.b16 %v220
    %v795 = vunpack.c.l.b16 %v221
    %v796 = vunpack.c.h.b16 %v221
    %v797 = vunpack.c.l.b16 %v222
    %v798 = vunpack.c.h.b16 %v222
    %v799 = vunpack.c.l.b16 %v223
    %v800 = vunpack.c.h.b16 %v223
    %v801 = vunpack.c.l.b16 %v224
    %v802 = vunpack.c.h.b16 %v224
    %v803 = vunpack.c.l.b16 %v225
    %v804 = vunpack.c.h.b16 %v225
    %v805 = vunpack.c.l.b16 %v226
    %v806 = vunpack.c.h.b16 %v226
    %v807 = vunpack.c.l.b16 %v227
    %v808 = vunpack.c.h.b16 %v227
    %v809 = vunpack.c.l.b16 %v228
    %v810 = vunpack.c.h.b16 %v228
    %v811 = vunpack.c.l.b16 %v229
    %v812 = vunpack.c.h.b16 %v229
    %v813 = vunpack.c.l.b16 %v230
    %v814 = vunpack.c.h.b16 %v230
    %v815 = vunpack.c.l.b16 %v231
    %v816 = vunpack.c.h.b16 %v231
    %v817 = vunpack.c.l.b16 %v232
    %v818 = vunpack.c.h.b16 %v232
    %v819 = vunpack.c.l.b16 %v233
    %v820 = vunpack.c.h.b16 %v233
    %v821 = vunpack.c.l.b16 %v234
    %v822 = vunpack.c.h.b16 %v234
    %v823 = vpack.c.b16 %v435, %v431
    %v824 = vpack.c.b16 %v436, %v432
    %v825 = vpack.c.b16 %v437, %v433
    %v826 = vpack.c.b16 %v438, %v434
    %v827 = vpack.c.b16 %v443, %v439
    %v828 = vpack.c.b16 %v444, %v440
    %v829 = vpack.c.b16 %v445, %v441
    %v830 = vpack.c.b16 %v446, %v442
    %v831 = vpack.c.b16 %v451, %v447
    %v832 = vpack.c.b16 %v452, %v448
    %v833 = vpack.c.b16 %v453, %v449
    %v834 = vpack.c.b16 %v454, %v450
    %v835 = vpack.c.b16 %v459, %v455
    %v836 = vpack.c.b16 %v460, %v456
    %v837 = vpack.c.b16 %v461, %v457
    %v838 = vpack.c.b16 %v462, %v458
    %v839 = vpack.c.b16 %v467, %v463
    %v840 = vpack.c.b16 %v468, %v464
    %v841 = vpack.c.b16 %v469, %v465
    %v842 = vpack.c.b16 %v470, %v466
    %v843 = vpack.c.b16 %v475, %v471
    %v844 = vpack.c.b16 %v476, %v472
    %v845 = vpack.c.b16 %v477, %v473
    %v846 = vpack.c.b16 %v478, %v474
    %v847 = vpack.c.b16 %v483, %v479
    %v848 = vpack.c.b16 %v484, %v480
    %v849 = vpack.c.b16 %v485, %v481
    %v850 = vpack.c.b16 %v486, %v482
    %v851 = vpack.c.b16 %v491, %v487
    %v852 = vpack.c.b16 %v492, %v488
    %v853 = vpack.c.b16 %v493, %v489
    %v854 = vpack.c.b16 %v494, %v490
    %v855 = vpack.c.b16 %v499, %v495
    %v856 = vpack.c.b16 %v500, %v496
    %v857 = vpack.c.b16 %v501, %v497
    %v858 = vpack.c.b16 %v502, %v498
    %v859 = vpack.c.b16 %v507, %v503
    %v860 = vpack.c.b16 %v508, %v504
    %v861 = vpack.c.b16 %v509, %v505
    %v862 = vpack.c.b16 %v510, %v506
    %v863 = vpack.c.b16 %v515, %v511
    %v864 = vpack.c.b16 %v516, %v512
    %v865 = vpack.c.b16 %v517, %v513
    %v866 = vpack.c.b16 %v518, %v514
    %v867 = vpack.c.b16 %v523, %v519
    %v868 = vpack.c.b16 %v524, %v520
    %v869 = vpack.c.b16 %v525, %v521
    %v870 = vpack.c.b16 %v526, %v522
    %v871 = vpack.c.b16 %v531, %v527
    %v872 = vpack.c.b16 %v532, %v528
    %v873 = vpack.c.b16 %v533, %v529
    %v874 = vpack.c.b16 %v534, %v530
    %v875 = vpack.c.b16 %v539, %v535
    %v876 = vpack.c.b16 %v540, %v536
    %v877 = vpack.c.b16 %v541, %v537
    %v878 = vpack.c.b16 %v542, %v538
    %v879 = vpack.c.b16 %v547, %v543
    %v880 = vpack.c.b16 %v548, %v544
    %v881 = vpack.c.b16 %v549, %v545
    %v882 = vpack.c.b16 %v550, %v546
    %v883 = vpack.c.b16 %v555, %v551
    %v884 = vpack.c.b16 %v556, %v552
    %v885 = vpack.c.b16 %v557, %v553
    %v886 = vpack.c.b16 %v558, %v554
    %v887 = vpack.c.b16 %v563, %v559
    %v888 = vpack.c.b16 %v564, %v560
    %v889 = vpack.c.b16 %v565, %v561
    %v890 = vpack.c.b16 %v566, %v562
    %v891 = vpack.c.b16 %v571, %v567
    %v892 = vpack.c.b16 %v572, %v568
    %v893 = vpack.c.b16 %v573, %v569
    %v894 = vpack.c.b16 %v574, %v570
    %v895 = vpack.c.b16 %v579, %v575
    %v896 = vpack.c.b16 %v580, %v576
    %v897 = vpack.c.b16 %v581, %v577
    %v898 = vpack.c.b16 %v582, %v578
    %v899 = vpack.c.b16 %v587, %v583
    %v900 = vpack.c.b16 %v588, %v584
    %v901 = vpack.c.b16 %v589, %v585
    %v902 = vpack.c.b16 %v590, %v586
    %v903 = vpack.c.b16 %v595, %v591
    %v904 = vpack.c.b16 %v596, %v592
    %v905 = vpack.c.b16 %v597, %v593
    %v906 = vpack.c.b16 %v598, %v594
    %v907 = vpack.c.b16 %v603, %v599
    %v908 = vpack.c.b16 %v604, %v600
    %v909 = vpack.c.b16 %v605, %v601
    %v910 = vpack.c.b16 %v606, %v602
    %v911 = vpack.c.b16 %v611, %v607
    %v912 = vpack.c.b16 %v612, %v608
    %v913 = vpack.c.b16 %v613, %v609
    %v914 = vpack.c.b16 %v614, %v610
    %v915 = vpack.c.b16 %v619, %v615
    %v916 = vpack.c.b16 %v620, %v616
    %v917 = vpack.c.b16 %v621, %v617
    %v918 = vpack.c.b16 %v622, %v618
    %v919 = vpack.c.b16 %v627, %v623
    %v920 = vpack.c.b16 %v628, %v624
    %v921 = vpack.c.b16 %v629, %v625
    %v922 = vpack.c.b16 %v630, %v626
    %v923 = vpack.c.b16 %v635, %v631
    %v924 = vpack.c.b16 %v636, %v632
    %v925 = vpack.c.b16 %v637, %v633
    %v926 = vpack.c.b16 %v638, %v634
    %v927 = vpack.c.b16 %v643, %v639
    %v928 = vpack.c.b16 %v644, %v640
    %v929 = vpack.c.b16 %v645, %v641
    %v930 = vpack.c.b16 %v646, %v642
    %v931 = vpack.c.b16 %v651, %v647
    %v932 = vpack.c.b16 %v652, %v648
    %v933 = vpack.c.b16 %v653, %v649
    %v934 = vpack.c.b16 %v654, %v650
    %v935 = vpack.c.b16 %v659, %v655
    %v936 = vpack.c.b16 %v660, %v656
    %v937 = vpack.c.b16 %v661, %v657
    %v938 = vpack.c.b16 %v662, %v658
    %v939 = vpack.c.b16 %v667, %v663
    %v940 = vpack.c.b16 %v668, %v664
    %v941 = vpack.c.b16 %v669, %v665
    %v942 = vpack.c.b16 %v670, %v666
    %v943 = vpack.c.b16 %v675, %v671
    %v944 = vpack.c.b16 %v676, %v672
    %v945 = vpack.c.b16 %v677, %v673
    %v946 = vpack.c.b16 %v678, %v674
    %v947 = vpack.c.b16 %v683, %v679
    %v948 = vpack.c.b16 %v684, %v680
    %v949 = vpack.c.b16 %v685, %v681
    %v950 = vpack.c.b16 %v686, %v682
    %v951 = vpack.c.b16 %v691, %v687
    %v952 = vpack.c.b16 %v692, %v688
    %v953 = vpack.c.b16 %v693, %v689
    %v954 = vpack.c.b16 %v694, %v690
    %v955 = vpack.c.b16 %v699, %v695
    %v956 = vpack.c.b16 %v700, %v696
    %v957 = vpack.c.b16 %v701, %v697
    %v958 = vpack.c.b16 %v702, %v698
    %v959 = vpack.c.b16 %v707, %v703
    %v960 = vpack.c.b16 %v708, %v704
    %v961 = vpack.c.b16 %v709, %v705
    %v962 = vpack.c.b16 %v710, %v706
    %v963 = vpack.c.b16 %v715, %v711
    %v964 = vpack.c.b16 %v716, %v712
    %v965 = vpack.c.b16 %v717, %v713
    %v966 = vpack.c.b16 %v718, %v714
    %v967 = vpack.c.b16 %v723, %v719
    %v968 = vpack.c.b16 %v724, %v720
    %v969 = vpack.c.b16 %v725, %v721
    %v970 = vpack.c.b16 %v726, %v722
    %v971 = vpack.c.b16 %v731, %v727
    %v972 = vpack.c.b16 %v732, %v728
    %v973 = vpack.c.b16 %v733, %v729
    %v974 = vpack.c.b16 %v734, %v730
    %v975 = vpack.c.b16 %v739, %v735
    %v976 = vpack.c.b16 %v740, %v736
    %v977 = vpack.c.b16 %v741, %v737
    %v978 = vpack.c.b16 %v742, %v738
    %v979 = vpack.c.b16 %v747, %v743
    %v980 = vpack.c.b16 %v748, %v744
    %v981 = vpack.c.b16 %v749, %v745
    %v982 = vpack.c.b16 %v750, %v746
    %v983 = vpack.c.b16 %v755, %v751
    %v984 = vpack.c.b16 %v756, %v752
    %v985 = vpack.c.b16 %v757, %v753
    %v986 = vpack.c.b16 %v758, %v754
    %v987 = vpack.c.b16 %v763, %v759
    %v988 = vpack.c.b16 %v764, %v760
    %v989 = vpack.c.b16 %v765, %v761
    %v990 = vpack.c.b16 %v766, %v762
    %v991 = vpack.c.b16 %v771, %v767
    %v992 = vpack.c.b16 %v772, %v768
    %v993 = vpack.c.b16 %v773, %v769
    %v994 = vpack.c.b16 %v774, %v770
    %v995 = vpack.c.b16 %v779, %v775
    %v996 = vpack.c.b16 %v780, %v776
    %v997 = vpack.c.b16 %v781, %v777
    %v998 = vpack.c.b16 %v782, %v778
    %v999 = vpack.c.b16 %v787, %v783
    %v1000 = vpack.c.b16 %v788, %v784
    %v1001 = vpack.c.b16 %v789, %v785
    %v1002 = vpack.c.b16 %v790, %v786
    %v1003 = vpack.c.b16 %v795, %v791
    %v1004 = vpack.c.b16 %v796, %v792
    %v1005 = vpack.c.b16 %v797, %v793
    %v1006 = vpack.c.b16 %v798, %v794
    %v1007 = vpack.c.b16 %v803, %v799
    %v1008 = vpack.c.b16 %v804, %v800
    %v1009 = vpack.c.b16 %v805, %v801
    %v1010 = vpack.c.b16 %v806, %v802
    %v1011 = vpack.c.b16 %v811, %v807
    %v1012 = vpack.c.b16 %v812, %v808
    %v1013 = vpack.c.b16 %v813, %v809
    %v1014 = vpack.c.b16 %v814, %v810
    %v1015 = vpack.c.b16 %v819, %v815
    %v1016 = vpack.c.b16 %v820, %v816
    %v1017 = vpack.c.b16 %v821, %v817
    %v1018 = vpack.c.b16 %v822, %v818
    %vm1215 = vcmask 130048
    %v1217 = vsel %vm1215, %v38, 0
    %1219 = vmatprep.subr.bf16.mxu0 %v824
    %1220 = vmatpush1.bf16.msra.mxu0 %v823
    %1221 = vmatprep.subr.bf16.mxu0 %v828
    %1222 = vmatpush1.bf16.msra.mxu0 %v827
    %1223 = vmatprep.subr.bf16.mxu0 %v832
    %1224 = vmatpush1.bf16.msra.mxu0 %v831
    %1225 = vmatprep.subr.bf16.mxu0 %v836
    %1226 = vmatpush1.bf16.msra.mxu0 %v835
    %1227 = vmatprep.subr.bf16.mxu0 %v840
    %1228 = vmatpush1.bf16.msra.mxu0 %v839
    %1229 = vmatprep.subr.bf16.mxu0 %v844
    %1230 = vmatpush1.bf16.msra.mxu0 %v843
    %1231 = vmatprep.subr.bf16.mxu0 %v848
    %1232 = vmatpush1.bf16.msra.mxu0 %v847
    %1233 = vmatprep.subr.bf16.mxu0 %v852
    %1234 = vmatpush1.bf16.msra.mxu0 %v851
    %1235 = vmatprep.subr.bf16.mxu0 %v856
    %1236 = vmatpush1.bf16.msra.mxu0 %v855
    %1237 = vmatprep.subr.bf16.mxu0 %v860
    %1238 = vmatpush1.bf16.msra.mxu0 %v859
    %1239 = vmatprep.subr.bf16.mxu0 %v864
    %1240 = vmatpush1.bf16.msra.mxu0 %v863
    %1241 = vmatprep.subr.bf16.mxu0 %v868
    %1242 = vmatpush1.bf16.msra.mxu0 %v867
    %1243 = vmatprep.subr.bf16.mxu0 %v872
    %1244 = vmatpush1.bf16.msra.mxu0 %v871
    %1245 = vmatprep.subr.bf16.mxu0 %v876
    %1246 = vmatpush1.bf16.msra.mxu0 %v875
    %1247 = vmatprep.subr.bf16.mxu0 %v880
    %1248 = vmatpush1.bf16.msra.mxu0 %v879
    %1249 = vmatprep.subr.bf16.mxu0 %v884
    %1250 = vmatpush1.bf16.msra.mxu0 %v883
    %1251 = vmatprep.mubr.bf16.mxu0 %v33
    %1252 = vmatmul.mubr.bf16.gmra.mrb[0].mxu0 %v32
    %v1253 = vpop.f32.mrb[0].mxu0
    %v1254 = vadd.f32 0.0, %v1253
    %v1255 = vpop.f32.mrb[0].mxu0
    %v1256 = vadd.f32 0.0, %v1255
    %v1257 = vpop.f32.mrb[0].mxu0
    %v1258 = vpop.f32.mrb[0].mxu0
    %1259 = vdwg.mxu0
    %1260 = vmatprep.subr.bf16.mxu0 %v888
    %1261 = vmatpush1.bf16.msra.mxu0 %v887
    %1262 = vmatprep.subr.bf16.mxu0 %v892
    %1263 = vmatpush1.bf16.msra.mxu0 %v891
    %1264 = vmatprep.subr.bf16.mxu0 %v896
    %1265 = vmatpush1.bf16.msra.mxu0 %v895
    %1266 = vmatprep.subr.bf16.mxu0 %v900
    %1267 = vmatpush1.bf16.msra.mxu0 %v899
    %1268 = vmatprep.subr.bf16.mxu0 %v904
    %1269 = vmatpush1.bf16.msra.mxu0 %v903
    %1270 = vmatprep.subr.bf16.mxu0 %v908
    %1271 = vmatpush1.bf16.msra.mxu0 %v907
    %1272 = vmatprep.subr.bf16.mxu0 %v912
    %1273 = vmatpush1.bf16.msra.mxu0 %v911
    %1274 = vmatprep.subr.bf16.mxu0 %v916
    %1275 = vmatpush1.bf16.msra.mxu0 %v915
    %1276 = vmatprep.subr.bf16.mxu0 %v920
    %1277 = vmatpush1.bf16.msra.mxu0 %v919
    %1278 = vmatprep.subr.bf16.mxu0 %v924
    %1279 = vmatpush1.bf16.msra.mxu0 %v923
    %1280 = vmatprep.subr.bf16.mxu0 %v928
    %1281 = vmatpush1.bf16.msra.mxu0 %v927
    %1282 = vmatprep.subr.bf16.mxu0 %v932
    %1283 = vmatpush1.bf16.msra.mxu0 %v931
    %1284 = vmatprep.subr.bf16.mxu0 %v936
    %1285 = vmatpush1.bf16.msra.mxu0 %v935
    %1286 = vmatprep.subr.bf16.mxu0 %v940
    %1287 = vmatpush1.bf16.msra.mxu0 %v939
    %1288 = vmatprep.subr.bf16.mxu0 %v944
    %1289 = vmatpush1.bf16.msra.mxu0 %v943
    %1290 = vmatprep.subr.bf16.mxu0 %v948
    %1291 = vmatpush1.bf16.msra.mxu0 %v947
    %1292 = vmatprep.mubr.bf16.mxu0 %v35
    %1293 = vmatmul.mubr.bf16.gmra.mrb[0].mxu0 %v34
    %v1294 = vpop.f32.mrb[0].mxu0
    %v1295 = vadd.f32 %v1254, %v1294
    %v1296 = vpop.f32.mrb[0].mxu0
    %v1297 = vadd.f32 %v1256, %v1296
    %v1298 = vpop.f32.mrb[0].mxu0
    %v1299 = vpop.f32.mrb[0].mxu0
    %1300 = vdwg.mxu0
    %1301 = vmatprep.subr.bf16.mxu0 %v952
    %1302 = vmatpush1.bf16.msra.mxu0 %v951
    %1303 = vmatprep.subr.bf16.mxu0 %v956
    %1304 = vmatpush1.bf16.msra.mxu0 %v955
    %1305 = vmatprep.subr.bf16.mxu0 %v960
    %1306 = vmatpush1.bf16.msra.mxu0 %v959
    %1307 = vmatprep.subr.bf16.mxu0 %v964
    %1308 = vmatpush1.bf16.msra.mxu0 %v963
    %1309 = vmatprep.subr.bf16.mxu0 %v968
    %1310 = vmatpush1.bf16.msra.mxu0 %v967
    %1311 = vmatprep.subr.bf16.mxu0 %v972
    %1312 = vmatpush1.bf16.msra.mxu0 %v971
    %1313 = vmatprep.subr.bf16.mxu0 %v976
    %1314 = vmatpush1.bf16.msra.mxu0 %v975
    %1315 = vmatprep.subr.bf16.mxu0 %v980
    %1316 = vmatpush1.bf16.msra.mxu0 %v979
    %1317 = vmatprep.subr.bf16.mxu0 %v984
    %1318 = vmatpush1.bf16.msra.mxu0 %v983
    %1319 = vmatprep.subr.bf16.mxu0 %v988
    %1320 = vmatpush1.bf16.msra.mxu0 %v987
    %1321 = vmatprep.subr.bf16.mxu0 %v992
    %1322 = vmatpush1.bf16.msra.mxu0 %v991
    %1323 = vmatprep.subr.bf16.mxu0 %v996
    %1324 = vmatpush1.bf16.msra.mxu0 %v995
    %1325 = vmatprep.subr.bf16.mxu0 %v1000
    %1326 = vmatpush1.bf16.msra.mxu0 %v999
    %1327 = vmatprep.subr.bf16.mxu0 %v1004
    %1328 = vmatpush1.bf16.msra.mxu0 %v1003
    %1329 = vmatprep.subr.bf16.mxu0 %v1008
    %1330 = vmatpush1.bf16.msra.mxu0 %v1007
    %1331 = vmatprep.subr.bf16.mxu0 %v1012
    %1332 = vmatpush1.bf16.msra.mxu0 %v1011
    %1333 = vmatprep.mubr.bf16.mxu0 %v37
    %1334 = vmatmul.mubr.bf16.gmra.mrb[0].mxu0 %v36
    %v1335 = vpop.f32.mrb[0].mxu0
    %v1336 = vadd.f32 %v1295, %v1335
    %v1337 = vpop.f32.mrb[0].mxu0
    %v1338 = vadd.f32 %v1297, %v1337
    %v1339 = vpop.f32.mrb[0].mxu0
    %v1340 = vpop.f32.mrb[0].mxu0
    %1341 = vdwg.mxu0
    %1342 = vmatprep.subr.bf16.mxu0 %v1016
    %1343 = vmatpush1.bf16.msra.mxu0 %v1015
    %1344 = vmatprep.subr.bf16.mxu0 0
    %1345 = vmatpush1.bf16.msra.mxu0 0
    %1346 = vmatprep.subr.bf16.mxu0 0
    %1347 = vmatpush1.bf16.msra.mxu0 0
    %1348 = vmatprep.subr.bf16.mxu0 0
    %1349 = vmatpush1.bf16.msra.mxu0 0
    %1350 = vmatprep.subr.bf16.mxu0 0
    %1351 = vmatpush1.bf16.msra.mxu0 0
    %1352 = vmatprep.subr.bf16.mxu0 0
    %1353 = vmatpush1.bf16.msra.mxu0 0
    %1354 = vmatprep.subr.bf16.mxu0 0
    %1355 = vmatpush1.bf16.msra.mxu0 0
    %1356 = vmatprep.subr.bf16.mxu0 0
    %1357 = vmatpush1.bf16.msra.mxu0 0
    %1358 = vmatprep.subr.bf16.mxu0 0
    %1359 = vmatpush1.bf16.msra.mxu0 0
    %1360 = vmatprep.subr.bf16.mxu0 0
    %1361 = vmatpush1.bf16.msra.mxu0 0
    %1362 = vmatprep.subr.bf16.mxu0 0
    %1363 = vmatpush1.bf16.msra.mxu0 0
    %1364 = vmatprep.subr.bf16.mxu0 0
    %1365 = vmatpush1.bf16.msra.mxu0 0
    %1366 = vmatprep.subr.bf16.mxu0 0
    %1367 = vmatpush1.bf16.msra.mxu0 0
    %1368 = vmatprep.subr.bf16.mxu0 0
    %1369 = vmatpush1.bf16.msra.mxu0 0
    %1370 = vmatprep.subr.bf16.mxu0 0
    %1371 = vmatpush1.bf16.msra.mxu0 0
    %1372 = vmatprep.subr.bf16.mxu0 0
    %1373 = vmatpush1.bf16.msra.mxu0 0
    %1374 = vmatprep.mubr.bf16.mxu0 0
    %1375 = vmatmul.mubr.bf16.gmra.mrb[0].mxu0 %v1217
    %v1376 = vpop.f32.mrb[0].mxu0
    %v1377 = vadd.f32 %v1336, %v1376
    %v1378 = vpop.f32.mrb[0].mxu0
    %v1379 = vadd.f32 %v1338, %v1378
    %v1380 = vpop.f32.mrb[0].mxu0
    %v1381 = vpop.f32.mrb[0].mxu0
    %1382 = vdwg.mxu0
    %1383 = vmatprep.subr.bf16.mxu0 %v826
    %1384 = vmatpush1.bf16.msra.mxu0 %v825
    %1385 = vmatprep.subr.bf16.mxu0 %v830
    %1386 = vmatpush1.bf16.msra.mxu0 %v829
    %1387 = vmatprep.subr.bf16.mxu0 %v834
    %1388 = vmatpush1.bf16.msra.mxu0 %v833
    %1389 = vmatprep.subr.bf16.mxu0 %v838
    %1390 = vmatpush1.bf16.msra.mxu0 %v837
    %1391 = vmatprep.subr.bf16.mxu0 %v842
    %1392 = vmatpush1.bf16.msra.mxu0 %v841
    %1393 = vmatprep.subr.bf16.mxu0 %v846
    %1394 = vmatpush1.bf16.msra.mxu0 %v845
    %1395 = vmatprep.subr.bf16.mxu0 %v850
    %1396 = vmatpush1.bf16.msra.mxu0 %v849
    %1397 = vmatprep.subr.bf16.mxu0 %v854
    %1398 = vmatpush1.bf16.msra.mxu0 %v853
    %1399 = vmatprep.subr.bf16.mxu0 %v858
    %1400 = vmatpush1.bf16.msra.mxu0 %v857
    %1401 = vmatprep.subr.bf16.mxu0 %v862
    %1402 = vmatpush1.bf16.msra.mxu0 %v861
    %1403 = vmatprep.subr.bf16.mxu0 %v866
    %1404 = vmatpush1.bf16.msra.mxu0 %v865
    %1405 = vmatprep.subr.bf16.mxu0 %v870
    %1406 = vmatpush1.bf16.msra.mxu0 %v869
    %1407 = vmatprep.subr.bf16.mxu0 %v874
    %1408 = vmatpush1.bf16.msra.mxu0 %v873
    %1409 = vmatprep.subr.bf16.mxu0 %v878
    %1410 = vmatpush1.bf16.msra.mxu0 %v877
    %1411 = vmatprep.subr.bf16.mxu0 %v882
    %1412 = vmatpush1.bf16.msra.mxu0 %v881
    %1413 = vmatprep.subr.bf16.mxu0 %v886
    %1414 = vmatpush1.bf16.msra.mxu0 %v885
    %1415 = vmatprep.mubr.bf16.mxu0 %v33
    %1416 = vmatmul.mubr.bf16.gmra.mrb[0].mxu0 %v32
    %v1417 = vpop.f32.mrb[0].mxu0
    %v1418 = vadd.f32 0.0, %v1417
    %v1419 = vpop.f32.mrb[0].mxu0
    %v1420 = vadd.f32 0.0, %v1419
    %v1421 = vpop.f32.mrb[0].mxu0
    %v1422 = vpop.f32.mrb[0].mxu0
    %1423 = vdwg.mxu0
    %1424 = vmatprep.subr.bf16.mxu0 %v890
    %1425 = vmatpush1.bf16.msra.mxu0 %v889
    %1426 = vmatprep.subr.bf16.mxu0 %v894
    %1427 = vmatpush1.bf16.msra.mxu0 %v893
    %1428 = vmatprep.subr.bf16.mxu0 %v898
    %1429 = vmatpush1.bf16.msra.mxu0 %v897
    %1430 = vmatprep.subr.bf16.mxu0 %v902
    %1431 = vmatpush1.bf16.msra.mxu0 %v901
    %1432 = vmatprep.subr.bf16.mxu0 %v906
    %1433 = vmatpush1.bf16.msra.mxu0 %v905
    %1434 = vmatprep.subr.bf16.mxu0 %v910
    %1435 = vmatpush1.bf16.msra.mxu0 %v909
    %1436 = vmatprep.subr.bf16.mxu0 %v914
    %1437 = vmatpush1.bf16.msra.mxu0 %v913
    %1438 = vmatprep.subr.bf16.mxu0 %v918
    %1439 = vmatpush1.bf16.msra.mxu0 %v917
    %1440 = vmatprep.subr.bf16.mxu0 %v922
    %1441 = vmatpush1.bf16.msra.mxu0 %v921
    %1442 = vmatprep.subr.bf16.mxu0 %v926
    %1443 = vmatpush1.bf16.msra.mxu0 %v925
    %1444 = vmatprep.subr.bf16.mxu0 %v930
    %1445 = vmatpush1.bf16.msra.mxu0 %v929
    %1446 = vmatprep.subr.bf16.mxu0 %v934
    %1447 = vmatpush1.bf16.msra.mxu0 %v933
    %1448 = vmatprep.subr.bf16.mxu0 %v938
    %1449 = vmatpush1.bf16.msra.mxu0 %v937
    %1450 = vmatprep.subr.bf16.mxu0 %v942
    %1451 = vmatpush1.bf16.msra.mxu0 %v941
    %1452 = vmatprep.subr.bf16.mxu0 %v946
    %1453 = vmatpush1.bf16.msra.mxu0 %v945
    %1454 = vmatprep.subr.bf16.mxu0 %v950
    %1455 = vmatpush1.bf16.msra.mxu0 %v949
    %1456 = vmatprep.mubr.bf16.mxu0 %v35
    %1457 = vmatmul.mubr.bf16.gmra.mrb[0].mxu0 %v34
    %v1458 = vpop.f32.mrb[0].mxu0
    %v1459 = vadd.f32 %v1418, %v1458
    %v1460 = vpop.f32.mrb[0].mxu0
    %v1461 = vadd.f32 %v1420, %v1460
    %v1462 = vpop.f32.mrb[0].mxu0
    %v1463 = vpop.f32.mrb[0].mxu0
    %1464 = vdwg.mxu0
    %1465 = vmatprep.subr.bf16.mxu0 %v954
    %1466 = vmatpush1.bf16.msra.mxu0 %v953
    %1467 = vmatprep.subr.bf16.mxu0 %v958
    %1468 = vmatpush1.bf16.msra.mxu0 %v957
    %1469 = vmatprep.subr.bf16.mxu0 %v962
    %1470 = vmatpush1.bf16.msra.mxu0 %v961
    %1471 = vmatprep.subr.bf16.mxu0 %v966
    %1472 = vmatpush1.bf16.msra.mxu0 %v965
    %1473 = vmatprep.subr.bf16.mxu0 %v970
    %1474 = vmatpush1.bf16.msra.mxu0 %v969
    %1475 = vmatprep.subr.bf16.mxu0 %v974
    %1476 = vmatpush1.bf16.msra.mxu0 %v973
    %1477 = vmatprep.subr.bf16.mxu0 %v978
    %1478 = vmatpush1.bf16.msra.mxu0 %v977
    %1479 = vmatprep.subr.bf16.mxu0 %v982
    %1480 = vmatpush1.bf16.msra.mxu0 %v981
    %1481 = vmatprep.subr.bf16.mxu0 %v986
    %1482 = vmatpush1.bf16.msra.mxu0 %v985
    %1483 = vmatprep.subr.bf16.mxu0 %v990
    %1484 = vmatpush1.bf16.msra.mxu0 %v989
    %1485 = vmatprep.subr.bf16.mxu0 %v994
    %1486 = vmatpush1.bf16.msra.mxu0 %v993
    %1487 = vmatprep.subr.bf16.mxu0 %v998
    %1488 = vmatpush1.bf16.msra.mxu0 %v997
    %1489 = vmatprep.subr.bf16.mxu0 %v1002
    %1490 = vmatpush1.bf16.msra.mxu0 %v1001
    %1491 = vmatprep.subr.bf16.mxu0 %v1006
    %1492 = vmatpush1.bf16.msra.mxu0 %v1005
    %1493 = vmatprep.subr.bf16.mxu0 %v1010
    %1494 = vmatpush1.bf16.msra.mxu0 %v1009
    %1495 = vmatprep.subr.bf16.mxu0 %v1014
    %1496 = vmatpush1.bf16.msra.mxu0 %v1013
    %1497 = vmatprep.mubr.bf16.mxu0 %v37
    %1498 = vmatmul.mubr.bf16.gmra.mrb[0].mxu0 %v36
    %v1499 = vpop.f32.mrb[0].mxu0
    %v1500 = vadd.f32 %v1459, %v1499
    %v1501 = vpop.f32.mrb[0].mxu0
    %v1502 = vadd.f32 %v1461, %v1501
    %v1503 = vpop.f32.mrb[0].mxu0
    %v1504 = vpop.f32.mrb[0].mxu0
    %1505 = vdwg.mxu0
    %1506 = vmatprep.subr.bf16.mxu0 %v1018
    %1507 = vmatpush1.bf16.msra.mxu0 %v1017
    %1508 = vmatprep.subr.bf16.mxu0 0
    %1509 = vmatpush1.bf16.msra.mxu0 0
    %1510 = vmatprep.subr.bf16.mxu0 0
    %1511 = vmatpush1.bf16.msra.mxu0 0
    %1512 = vmatprep.subr.bf16.mxu0 0
    %1513 = vmatpush1.bf16.msra.mxu0 0
    %1514 = vmatprep.subr.bf16.mxu0 0
    %1515 = vmatpush1.bf16.msra.mxu0 0
    %1516 = vmatprep.subr.bf16.mxu0 0
    %1517 = vmatpush1.bf16.msra.mxu0 0
    %1518 = vmatprep.subr.bf16.mxu0 0
    %1519 = vmatpush1.bf16.msra.mxu0 0
    %1520 = vmatprep.subr.bf16.mxu0 0
    %1521 = vmatpush1.bf16.msra.mxu0 0
    %1522 = vmatprep.subr.bf16.mxu0 0
    %1523 = vmatpush1.bf16.msra.mxu0 0
    %1524 = vmatprep.subr.bf16.mxu0 0
    %1525 = vmatpush1.bf16.msra.mxu0 0
    %1526 = vmatprep.subr.bf16.mxu0 0
    %1527 = vmatpush1.bf16.msra.mxu0 0
    %1528 = vmatprep.subr.bf16.mxu0 0
    %1529 = vmatpush1.bf16.msra.mxu0 0
    %1530 = vmatprep.subr.bf16.mxu0 0
    %1531 = vmatpush1.bf16.msra.mxu0 0
    %1532 = vmatprep.subr.bf16.mxu0 0
    %1533 = vmatpush1.bf16.msra.mxu0 0
    %1534 = vmatprep.subr.bf16.mxu0 0
    %1535 = vmatpush1.bf16.msra.mxu0 0
    %1536 = vmatprep.subr.bf16.mxu0 0
    %1537 = vmatpush1.bf16.msra.mxu0 0
    %1538 = vmatprep.mubr.bf16.mxu0 0
    %1539 = vmatmul.mubr.bf16.gmra.mrb[0].mxu0 %v1217
    %v1540 = vpop.f32.mrb[0].mxu0
    %v1541 = vadd.f32 %v1500, %v1540
    %v1542 = vpop.f32.mrb[0].mxu0
    %v1543 = vadd.f32 %v1502, %v1542
    %v1544 = vpop.f32.mrb[0].mxu0
    %v1545 = vpop.f32.mrb[0].mxu0
    %1546 = vdwg.mxu0
    %vm1547 = vcmp.lt.f32.partialorder %v1377, 0.0
    %vm1548 = vcmp.lt.f32.partialorder %v1379, 0.0
    %vm1549 = vcmp.lt.f32.partialorder %v1541, 0.0
    %vm1550 = vcmp.lt.f32.partialorder %v1543, 0.0
    %v1551 = vmul.f32 %v1377, 0.2
    %v1552 = vmul.f32 %v1379, 0.2
    %v1553 = vmul.f32 %v1541, 0.2
    %v1554 = vmul.f32 %v1543, 0.2
    %v1555 = vsel %vm1547, %v1551, %v1377
    %v1556 = vsel %vm1548, %v1552, %v1379
    %v1557 = vsel %vm1549, %v1553, %v1541
    %v1558 = vsel %vm1550, %v1554, %v1543
    %v1559 = vpack.c.bf16 %v1555, %v1555
    %v1560 = vpack.c.bf16 %v1556, %v1556
    %v1561 = vpack.c.bf16 %v1557, %v1557
    %v1562 = vpack.c.bf16 %v1558, %v1558
    %v1563 = vld [vmem:[%s2] sm:$0xff]
    %v1564 = vld [vmem:[%s2 + $0x8] sm:$0xff]
    %v1565 = vld [vmem:[%s2 + $0x10] sm:$0xff]
    %v1566 = vld [vmem:[%s2 + $0x18] sm:$0xff]
    %v1567 = vld [vmem:[%s2 + $0x20] sm:$0xff]
    %v1568 = vld [vmem:[%s2 + $0x28] sm:$0xff]
    %v1569 = vld [vmem:[%s2 + $0x30] sm:$0xff]
    %v1570 = vld [vmem:[%s2 + $0x38] sm:$0xff]
    %v1571 = vld [vmem:[%s2 + $0x40] sm:$0xff]
    %v1572 = vld [vmem:[%s2 + $0x48] sm:$0xff]
    %v1573 = vld [vmem:[%s2 + $0x50] sm:$0xff]
    %v1574 = vld [vmem:[%s2 + $0x58] sm:$0xff]
    %v1575 = vld [vmem:[%s2 + $0x60] sm:$0xff]
    %v1576 = vld [vmem:[%s2 + $0x68] sm:$0xff]
    %v1577 = vld [vmem:[%s2 + $0x70] sm:$0xff]
    %v1578 = vld [vmem:[%s2 + $0x78] sm:$0xff]
    %v1579 = vld [vmem:[%s2 + $0x80] sm:$0xff]
    %v1580 = vld [vmem:[%s2 + $0x88] sm:$0xff]
    %v1581 = vld [vmem:[%s2 + $0x90] sm:$0xff]
    %v1582 = vld [vmem:[%s2 + $0x98] sm:$0xff]
    %v1583 = vld [vmem:[%s2 + $0xa0] sm:$0xff]
    %v1584 = vld [vmem:[%s2 + $0xa8] sm:$0xff]
    %v1585 = vld [vmem:[%s2 + $0xb0] sm:$0xff]
    %v1586 = vld [vmem:[%s2 + $0xb8] sm:$0xff]
    %v1587 = vld [vmem:[%s2 + $0xc0] sm:$0xff]
    %v1588 = vld [vmem:[%s2 + $0xc8] sm:$0xff]
    %v1589 = vld [vmem:[%s2 + $0xd0] sm:$0xff]
    %v1590 = vld [vmem:[%s2 + $0xd8] sm:$0xff]
    %v1591 = vld [vmem:[%s2 + $0xe0] sm:$0xff]
    %v1592 = vld [vmem:[%s2 + $0xe8] sm:$0xff]
    %v1593 = vld [vmem:[%s2 + $0xf0] sm:$0xff]
    %v1594 = vld [vmem:[%s2 + $0xf8] sm:$0xff]
    %v1595 = vld [vmem:[%s2 + $0x100] sm:$0xff]
    %v1596 = vld [vmem:[%s2 + $0x108] sm:$0xff]
    %v1597 = vld [vmem:[%s2 + $0x110] sm:$0xff]
    %v1598 = vld [vmem:[%s2 + $0x118] sm:$0xff]
    %v1599 = vld [vmem:[%s2 + $0x120] sm:$0xff]
    %v1600 = vld [vmem:[%s2 + $0x128] sm:$0xff]
    %v1601 = vld [vmem:[%s2 + $0x130] sm:$0xff]
    %v1602 = vld [vmem:[%s2 + $0x138] sm:$0xff]
    %v1603 = vld [vmem:[%s2 + $0x140] sm:$0xff]
    %v1604 = vld [vmem:[%s2 + $0x148] sm:$0xff]
    %v1605 = vld [vmem:[%s2 + $0x150] sm:$0xff]
    %v1606 = vld [vmem:[%s2 + $0x158] sm:$0xff]
    %v1607 = vld [vmem:[%s2 + $0x160] sm:$0xff]
    %v1608 = vld [vmem:[%s2 + $0x168] sm:$0xff]
    %v1609 = vld [vmem:[%s2 + $0x170] sm:$0xff]
    %v1610 = vld [vmem:[%s2 + $0x178] sm:$0xff]
    %v1611 = vld [vmem:[%s2 + $0x180] sm:$0xff]
    %v1612 = vld [vmem:[%s2 + $0x188] sm:$0xff]
    %v1613 = vld [vmem:[%s2 + $0x190] sm:$0xff]
    %v1614 = vld [vmem:[%s2 + $0x198] sm:$0xff]
    %v1615 = vld [vmem:[%s2 + $0x1a0] sm:$0xff]
    %v1616 = vld [vmem:[%s2 + $0x1a8] sm:$0xff]
    %v1617 = vld [vmem:[%s2 + $0x1b0] sm:$0xff]
    %v1618 = vld [vmem:[%s2 + $0x1b8] sm:$0xff]
    %v1619 = vld [vmem:[%s2 + $0x1c0] sm:$0xff]
    %v1620 = vld [vmem:[%s2 + $0x1c8] sm:$0xff]
    %v1621 = vld [vmem:[%s2 + $0x1d0] sm:$0xff]
    %v1622 = vld [vmem:[%s2 + $0x1d8] sm:$0xff]
    %v1623 = vld [vmem:[%s2 + $0x1e0] sm:$0xff]
    %v1624 = vld [vmem:[%s2 + $0x1e8] sm:$0xff]
    %v1625 = vld [vmem:[%s2 + $0x1f0] sm:$0xff]
    %v1626 = vld [vmem:[%s2 + $0x1f8] sm:$0xff]
    %v1691 = vunpack.c.l.b16 %v1563
    %v1692 = vunpack.c.h.b16 %v1563
    %v1693 = vunpack.c.l.b16 %v1564
    %v1694 = vunpack.c.h.b16 %v1564
    %v1695 = vunpack.c.l.b16 %v1565
    %v1696 = vunpack.c.h.b16 %v1565
    %v1697 = vunpack.c.l.b16 %v1566
    %v1698 = vunpack.c.h.b16 %v1566
    %v1699 = vunpack.c.l.b16 %v1567
    %v1700 = vunpack.c.h.b16 %v1567
    %v1701 = vunpack.c.l.b16 %v1568
    %v1702 = vunpack.c.h.b16 %v1568
    %v1703 = vunpack.c.l.b16 %v1569
    %v1704 = vunpack.c.h.b16 %v1569
    %v1705 = vunpack.c.l.b16 %v1570
    %v1706 = vunpack.c.h.b16 %v1570
    %v1707 = vunpack.c.l.b16 %v1571
    %v1708 = vunpack.c.h.b16 %v1571
    %v1709 = vunpack.c.l.b16 %v1572
    %v1710 = vunpack.c.h.b16 %v1572
    %v1711 = vunpack.c.l.b16 %v1573
    %v1712 = vunpack.c.h.b16 %v1573
    %v1713 = vunpack.c.l.b16 %v1574
    %v1714 = vunpack.c.h.b16 %v1574
    %v1715 = vunpack.c.l.b16 %v1575
    %v1716 = vunpack.c.h.b16 %v1575
    %v1717 = vunpack.c.l.b16 %v1576
    %v1718 = vunpack.c.h.b16 %v1576
    %v1719 = vunpack.c.l.b16 %v1577
    %v1720 = vunpack.c.h.b16 %v1577
    %v1721 = vunpack.c.l.b16 %v1578
    %v1722 = vunpack.c.h.b16 %v1578
    %v1723 = vunpack.c.l.b16 %v1579
    %v1724 = vunpack.c.h.b16 %v1579
    %v1725 = vunpack.c.l.b16 %v1580
    %v1726 = vunpack.c.h.b16 %v1580
    %v1727 = vunpack.c.l.b16 %v1581
    %v1728 = vunpack.c.h.b16 %v1581
    %v1729 = vunpack.c.l.b16 %v1582
    %v1730 = vunpack.c.h.b16 %v1582
    %v1731 = vunpack.c.l.b16 %v1583
    %v1732 = vunpack.c.h.b16 %v1583
    %v1733 = vunpack.c.l.b16 %v1584
    %v1734 = vunpack.c.h.b16 %v1584
    %v1735 = vunpack.c.l.b16 %v1585
    %v1736 = vunpack.c.h.b16 %v1585
    %v1737 = vunpack.c.l.b16 %v1586
    %v1738 = vunpack.c.h.b16 %v1586
    %v1739 = vunpack.c.l.b16 %v1587
    %v1740 = vunpack.c.h.b16 %v1587
    %v1741 = vunpack.c.l.b16 %v1588
    %v1742 = vunpack.c.h.b16 %v1588
    %v1743 = vunpack.c.l.b16 %v1589
    %v1744 = vunpack.c.h.b16 %v1589
    %v1745 = vunpack.c.l.b16 %v1590
    %v1746 = vunpack.c.h.b16 %v1590
    %v1747 = vunpack.c.l.b16 %v1591
    %v1748 = vunpack.c.h.b16 %v1591
    %v1749 = vunpack.c.l.b16 %v1592
    %v1750 = vunpack.c.h.b16 %v1592
    %v1751 = vunpack.c.l.b16 %v1593
    %v1752 = vunpack.c.h.b16 %v1593
    %v1753 = vunpack.c.l.b16 %v1594
    %v1754 = vunpack.c.h.b16 %v1594
    %v1755 = vunpack.c.l.b16 %v1595
    %v1756 = vunpack.c.h.b16 %v1595
    %v1757 = vunpack.c.l.b16 %v1596
    %v1758 = vunpack.c.h.b16 %v1596
    %v1759 = vunpack.c.l.b16 %v1597
    %v1760 = vunpack.c.h.b16 %v1597
    %v1761 = vunpack.c.l.b16 %v1598
    %v1762 = vunpack.c.h.b16 %v1598
    %v1763 = vunpack.c.l.b16 %v1599
    %v1764 = vunpack.c.h.b16 %v1599
    %v1765 = vunpack.c.l.b16 %v1600
    %v1766 = vunpack.c.h.b16 %v1600
    %v1767 = vunpack.c.l.b16 %v1601
    %v1768 = vunpack.c.h.b16 %v1601
    %v1769 = vunpack.c.l.b16 %v1602
    %v1770 = vunpack.c.h.b16 %v1602
    %v1771 = vunpack.c.l.b16 %v1603
    %v1772 = vunpack.c.h.b16 %v1603
    %v1773 = vunpack.c.l.b16 %v1604
    %v1774 = vunpack.c.h.b16 %v1604
    %v1775 = vunpack.c.l.b16 %v1605
    %v1776 = vunpack.c.h.b16 %v1605
    %v1777 = vunpack.c.l.b16 %v1606
    %v1778 = vunpack.c.h.b16 %v1606
    %v1779 = vunpack.c.l.b16 %v1607
    %v1780 = vunpack.c.h.b16 %v1607
    %v1781 = vunpack.c.l.b16 %v1608
    %v1782 = vunpack.c.h.b16 %v1608
    %v1783 = vunpack.c.l.b16 %v1609
    %v1784 = vunpack.c.h.b16 %v1609
    %v1785 = vunpack.c.l.b16 %v1610
    %v1786 = vunpack.c.h.b16 %v1610
    %v1787 = vunpack.c.l.b16 %v1611
    %v1788 = vunpack.c.h.b16 %v1611
    %v1789 = vunpack.c.l.b16 %v1612
    %v1790 = vunpack.c.h.b16 %v1612
    %v1791 = vunpack.c.l.b16 %v1613
    %v1792 = vunpack.c.h.b16 %v1613
    %v1793 = vunpack.c.l.b16 %v1614
    %v1794 = vunpack.c.h.b16 %v1614
    %v1795 = vunpack.c.l.b16 %v1615
    %v1796 = vunpack.c.h.b16 %v1615
    %v1797 = vunpack.c.l.b16 %v1616
    %v1798 = vunpack.c.h.b16 %v1616
    %v1799 = vunpack.c.l.b16 %v1617
    %v1800 = vunpack.c.h.b16 %v1617
    %v1801 = vunpack.c.l.b16 %v1618
    %v1802 = vunpack.c.h.b16 %v1618
    %v1803 = vunpack.c.l.b16 %v1619
    %v1804 = vunpack.c.h.b16 %v1619
    %v1805 = vunpack.c.l.b16 %v1620
    %v1806 = vunpack.c.h.b16 %v1620
    %v1807 = vunpack.c.l.b16 %v1621
    %v1808 = vunpack.c.h.b16 %v1621
    %v1809 = vunpack.c.l.b16 %v1622
    %v1810 = vunpack.c.h.b16 %v1622
    %v1811 = vunpack.c.l.b16 %v1623
    %v1812 = vunpack.c.h.b16 %v1623
    %v1813 = vunpack.c.l.b16 %v1624
    %v1814 = vunpack.c.h.b16 %v1624
    %v1815 = vunpack.c.l.b16 %v1625
    %v1816 = vunpack.c.h.b16 %v1625
    %v1817 = vunpack.c.l.b16 %v1626
    %v1818 = vunpack.c.h.b16 %v1626
    %v1819 = vpack.c.b16 %v1693, %v1691
    %v1820 = vpack.c.b16 %v1694, %v1692
    %v1821 = vpack.c.b16 %v1697, %v1695
    %v1822 = vpack.c.b16 %v1698, %v1696
    %v1823 = vpack.c.b16 %v1701, %v1699
    %v1824 = vpack.c.b16 %v1702, %v1700
    %v1825 = vpack.c.b16 %v1705, %v1703
    %v1826 = vpack.c.b16 %v1706, %v1704
    %v1827 = vpack.c.b16 %v1709, %v1707
    %v1828 = vpack.c.b16 %v1710, %v1708
    %v1829 = vpack.c.b16 %v1713, %v1711
    %v1830 = vpack.c.b16 %v1714, %v1712
    %v1831 = vpack.c.b16 %v1717, %v1715
    %v1832 = vpack.c.b16 %v1718, %v1716
    %v1833 = vpack.c.b16 %v1721, %v1719
    %v1834 = vpack.c.b16 %v1722, %v1720
    %v1835 = vpack.c.b16 %v1725, %v1723
    %v1836 = vpack.c.b16 %v1726, %v1724
    %v1837 = vpack.c.b16 %v1729, %v1727
    %v1838 = vpack.c.b16 %v1730, %v1728
    %v1839 = vpack.c.b16 %v1733, %v1731
    %v1840 = vpack.c.b16 %v1734, %v1732
    %v1841 = vpack.c.b16 %v1737, %v1735
    %v1842 = vpack.c.b16 %v1738, %v1736
    %v1843 = vpack.c.b16 %v1741, %v1739
    %v1844 = vpack.c.b16 %v1742, %v1740
    %v1845 = vpack.c.b16 %v1745, %v1743
    %v1846 = vpack.c.b16 %v1746, %v1744
    %v1847 = vpack.c.b16 %v1749, %v1747
    %v1848 = vpack.c.b16 %v1750, %v1748
    %v1849 = vpack.c.b16 %v1753, %v1751
    %v1850 = vpack.c.b16 %v1754, %v1752
    %v1851 = vpack.c.b16 %v1757, %v1755
    %v1852 = vpack.c.b16 %v1758, %v1756
    %v1853 = vpack.c.b16 %v1761, %v1759
    %v1854 = vpack.c.b16 %v1762, %v1760
    %v1855 = vpack.c.b16 %v1765, %v1763
    %v1856 = vpack.c.b16 %v1766, %v1764
    %v1857 = vpack.c.b16 %v1769, %v1767
    %v1858 = vpack.c.b16 %v1770, %v1768
    %v1859 = vpack.c.b16 %v1773, %v1771
    %v1860 = vpack.c.b16 %v1774, %v1772
    %v1861 = vpack.c.b16 %v1777, %v1775
    %v1862 = vpack.c.b16 %v1778, %v1776
    %v1863 = vpack.c.b16 %v1781, %v1779
    %v1864 = vpack.c.b16 %v1782, %v1780
    %v1865 = vpack.c.b16 %v1785, %v1783
    %v1866 = vpack.c.b16 %v1786, %v1784
    %v1867 = vpack.c.b16 %v1789, %v1787
    %v1868 = vpack.c.b16 %v1790, %v1788
    %v1869 = vpack.c.b16 %v1793, %v1791
    %v1870 = vpack.c.b16 %v1794, %v1792
    %v1871 = vpack.c.b16 %v1797, %v1795
    %v1872 = vpack.c.b16 %v1798, %v1796
    %v1873 = vpack.c.b16 %v1801, %v1799
    %v1874 = vpack.c.b16 %v1802, %v1800
    %v1875 = vpack.c.b16 %v1805, %v1803
    %v1876 = vpack.c.b16 %v1806, %v1804
    %v1877 = vpack.c.b16 %v1809, %v1807
    %v1878 = vpack.c.b16 %v1810, %v1808
    %v1879 = vpack.c.b16 %v1813, %v1811
    %v1880 = vpack.c.b16 %v1814, %v1812
    %v1881 = vpack.c.b16 %v1817, %v1815
    %v1882 = vpack.c.b16 %v1818, %v1816
    %1947 = vmatprep.subr.bf16.mxu0 %v1820
    %1948 = vmatpush1.bf16.msra.mxu0 %v1819
    %1949 = vmatprep.subr.bf16.mxu0 %v1822
    %1950 = vmatpush1.bf16.msra.mxu0 %v1821
    %1951 = vmatprep.subr.bf16.mxu0 %v1824
    %1952 = vmatpush1.bf16.msra.mxu0 %v1823
    %1953 = vmatprep.subr.bf16.mxu0 %v1826
    %1954 = vmatpush1.bf16.msra.mxu0 %v1825
    %1955 = vmatprep.subr.bf16.mxu0 %v1828
    %1956 = vmatpush1.bf16.msra.mxu0 %v1827
    %1957 = vmatprep.subr.bf16.mxu0 %v1830
    %1958 = vmatpush1.bf16.msra.mxu0 %v1829
    %1959 = vmatprep.subr.bf16.mxu0 %v1832
    %1960 = vmatpush1.bf16.msra.mxu0 %v1831
    %1961 = vmatprep.subr.bf16.mxu0 %v1834
    %1962 = vmatpush1.bf16.msra.mxu0 %v1833
    %1963 = vmatprep.subr.bf16.mxu0 %v1836
    %1964 = vmatpush1.bf16.msra.mxu0 %v1835
    %1965 = vmatprep.subr.bf16.mxu0 %v1838
    %1966 = vmatpush1.bf16.msra.mxu0 %v1837
    %1967 = vmatprep.subr.bf16.mxu0 %v1840
    %1968 = vmatpush1.bf16.msra.mxu0 %v1839
    %1969 = vmatprep.subr.bf16.mxu0 %v1842
    %1970 = vmatpush1.bf16.msra.mxu0 %v1841
    %1971 = vmatprep.subr.bf16.mxu0 %v1844
    %1972 = vmatpush1.bf16.msra.mxu0 %v1843
    %1973 = vmatprep.subr.bf16.mxu0 %v1846
    %1974 = vmatpush1.bf16.msra.mxu0 %v1845
    %1975 = vmatprep.subr.bf16.mxu0 %v1848
    %1976 = vmatpush1.bf16.msra.mxu0 %v1847
    %1977 = vmatprep.subr.bf16.mxu0 %v1850
    %1978 = vmatpush1.bf16.msra.mxu0 %v1849
    %1979 = vmatprep.mubr.bf16.mxu0 %v1560
    %1980 = vmatmul.mubr.bf16.gmra.mrb[0].mxu0 %v1559
    %v1981 = vpop.f32.mrb[0].mxu0
    %v1982 = vadd.f32 0.0, %v1981
    %v1983 = vpop.f32.mrb[0].mxu0
    %v1984 = vadd.f32 0.0, %v1983
    %v1985 = vpop.f32.mrb[0].mxu0
    %v1986 = vpop.f32.mrb[0].mxu0
    %1987 = vdwg.mxu0
    %1988 = vmatprep.subr.bf16.mxu0 %v1852
    %1989 = vmatpush1.bf16.msra.mxu0 %v1851
    %1990 = vmatprep.subr.bf16.mxu0 %v1854
    %1991 = vmatpush1.bf16.msra.mxu0 %v1853
    %1992 = vmatprep.subr.bf16.mxu0 %v1856
    %1993 = vmatpush1.bf16.msra.mxu0 %v1855
    %1994 = vmatprep.subr.bf16.mxu0 %v1858
    %1995 = vmatpush1.bf16.msra.mxu0 %v1857
    %1996 = vmatprep.subr.bf16.mxu0 %v1860
    %1997 = vmatpush1.bf16.msra.mxu0 %v1859
    %1998 = vmatprep.subr.bf16.mxu0 %v1862
    %1999 = vmatpush1.bf16.msra.mxu0 %v1861
    %2000 = vmatprep.subr.bf16.mxu0 %v1864
    %2001 = vmatpush1.bf16.msra.mxu0 %v1863
    %2002 = vmatprep.subr.bf16.mxu0 %v1866
    %2003 = vmatpush1.bf16.msra.mxu0 %v1865
    %2004 = vmatprep.subr.bf16.mxu0 %v1868
    %2005 = vmatpush1.bf16.msra.mxu0 %v1867
    %2006 = vmatprep.subr.bf16.mxu0 %v1870
    %2007 = vmatpush1.bf16.msra.mxu0 %v1869
    %2008 = vmatprep.subr.bf16.mxu0 %v1872
    %2009 = vmatpush1.bf16.msra.mxu0 %v1871
    %2010 = vmatprep.subr.bf16.mxu0 %v1874
    %2011 = vmatpush1.bf16.msra.mxu0 %v1873
    %2012 = vmatprep.subr.bf16.mxu0 %v1876
    %2013 = vmatpush1.bf16.msra.mxu0 %v1875
    %2014 = vmatprep.subr.bf16.mxu0 %v1878
    %2015 = vmatpush1.bf16.msra.mxu0 %v1877
    %2016 = vmatprep.subr.bf16.mxu0 %v1880
    %2017 = vmatpush1.bf16.msra.mxu0 %v1879
    %2018 = vmatprep.subr.bf16.mxu0 %v1882
    %2019 = vmatpush1.bf16.msra.mxu0 %v1881
    %2020 = vmatprep.mubr.bf16.mxu0 %v1562
    %2021 = vmatmul.mubr.bf16.gmra.mrb[0].mxu0 %v1561
    %v2022 = vpop.f32.mrb[0].mxu0
    %v2023 = vadd.f32 %v1982, %v2022
    %v2024 = vpop.f32.mrb[0].mxu0
    %v2025 = vadd.f32 %v1984, %v2024
    %v2026 = vpop.f32.mrb[0].mxu0
    %v2027 = vpop.f32.mrb[0].mxu0
    %2028 = vdwg.mxu0
    %vm2029 = vcmp.lt.f32.partialorder %v2023, 0.0
    %vm2030 = vcmp.lt.f32.partialorder %v2025, 0.0
    %v2031 = vmul.f32 %v2023, 0.2
    %v2032 = vmul.f32 %v2025, 0.2
    %v2033 = vsel %vm2029, %v2031, %v2023
    %v2034 = vsel %vm2030, %v2032, %v2025
    %v2035 = vpack.c.bf16 %v2033, %v2033
    %v2036 = vpack.c.bf16 %v2034, %v2034
    %v2037 = vld [vmem:[%s3] sm:$0xff]
    %v2038 = vld [vmem:[%s3 + $0x8] sm:$0xff]
    %v2039 = vld [vmem:[%s3 + $0x10] sm:$0xff]
    %v2040 = vld [vmem:[%s3 + $0x18] sm:$0xff]
    %v2041 = vld [vmem:[%s3 + $0x20] sm:$0xff]
    %v2042 = vld [vmem:[%s3 + $0x28] sm:$0xff]
    %v2043 = vld [vmem:[%s3 + $0x30] sm:$0xff]
    %v2044 = vld [vmem:[%s3 + $0x38] sm:$0xff]
    %v2045 = vld [vmem:[%s3 + $0x40] sm:$0xff]
    %v2046 = vld [vmem:[%s3 + $0x48] sm:$0xff]
    %v2047 = vld [vmem:[%s3 + $0x50] sm:$0xff]
    %v2048 = vld [vmem:[%s3 + $0x58] sm:$0xff]
    %v2049 = vld [vmem:[%s3 + $0x60] sm:$0xff]
    %v2050 = vld [vmem:[%s3 + $0x68] sm:$0xff]
    %v2051 = vld [vmem:[%s3 + $0x70] sm:$0xff]
    %v2052 = vld [vmem:[%s3 + $0x78] sm:$0xff]
    %v2053 = vld [vmem:[%s3 + $0x80] sm:$0xff]
    %v2054 = vld [vmem:[%s3 + $0x88] sm:$0xff]
    %v2055 = vld [vmem:[%s3 + $0x90] sm:$0xff]
    %v2056 = vld [vmem:[%s3 + $0x98] sm:$0xff]
    %v2057 = vld [vmem:[%s3 + $0xa0] sm:$0xff]
    %v2058 = vld [vmem:[%s3 + $0xa8] sm:$0xff]
    %v2059 = vld [vmem:[%s3 + $0xb0] sm:$0xff]
    %v2060 = vld [vmem:[%s3 + $0xb8] sm:$0xff]
    %v2061 = vld [vmem:[%s3 + $0xc0] sm:$0xff]
    %v2062 = vld [vmem:[%s3 + $0xc8] sm:$0xff]
    %v2063 = vld [vmem:[%s3 + $0xd0] sm:$0xff]
    %v2064 = vld [vmem:[%s3 + $0xd8] sm:$0xff]
    %v2065 = vld [vmem:[%s3 + $0xe0] sm:$0xff]
    %v2066 = vld [vmem:[%s3 + $0xe8] sm:$0xff]
    %v2067 = vld [vmem:[%s3 + $0xf0] sm:$0xff]
    %v2068 = vld [vmem:[%s3 + $0xf8] sm:$0xff]
    %v2101 = vunpack.c.l.b16 %v2037
    %v2102 = vunpack.c.h.b16 %v2037
    %v2103 = vunpack.c.l.b16 %v2038
    %v2104 = vunpack.c.h.b16 %v2038
    %v2105 = vunpack.c.l.b16 %v2039
    %v2106 = vunpack.c.h.b16 %v2039
    %v2107 = vunpack.c.l.b16 %v2040
    %v2108 = vunpack.c.h.b16 %v2040
    %v2109 = vunpack.c.l.b16 %v2041
    %v2110 = vunpack.c.h.b16 %v2041
    %v2111 = vunpack.c.l.b16 %v2042
    %v2112 = vunpack.c.h.b16 %v2042
    %v2113 = vunpack.c.l.b16 %v2043
    %v2114 = vunpack.c.h.b16 %v2043
    %v2115 = vunpack.c.l.b16 %v2044
    %v2116 = vunpack.c.h.b16 %v2044
    %v2117 = vunpack.c.l.b16 %v2045
    %v2118 = vunpack.c.h.b16 %v2045
    %v2119 = vunpack.c.l.b16 %v2046
    %v2120 = vunpack.c.h.b16 %v2046
    %v2121 = vunpack.c.l.b16 %v2047
    %v2122 = vunpack.c.h.b16 %v2047
    %v2123 = vunpack.c.l.b16 %v2048
    %v2124 = vunpack.c.h.b16 %v2048
    %v2125 = vunpack.c.l.b16 %v2049
    %v2126 = vunpack.c.h.b16 %v2049
    %v2127 = vunpack.c.l.b16 %v2050
    %v2128 = vunpack.c.h.b16 %v2050
    %v2129 = vunpack.c.l.b16 %v2051
    %v2130 = vunpack.c.h.b16 %v2051
    %v2131 = vunpack.c.l.b16 %v2052
    %v2132 = vunpack.c.h.b16 %v2052
    %v2133 = vunpack.c.l.b16 %v2053
    %v2134 = vunpack.c.h.b16 %v2053
    %v2135 = vunpack.c.l.b16 %v2054
    %v2136 = vunpack.c.h.b16 %v2054
    %v2137 = vunpack.c.l.b16 %v2055
    %v2138 = vunpack.c.h.b16 %v2055
    %v2139 = vunpack.c.l.b16 %v2056
    %v2140 = vunpack.c.h.b16 %v2056
    %v2141 = vunpack.c.l.b16 %v2057
    %v2142 = vunpack.c.h.b16 %v2057
    %v2143 = vunpack.c.l.b16 %v2058
    %v2144 = vunpack.c.h.b16 %v2058
    %v2145 = vunpack.c.l.b16 %v2059
    %v2146 = vunpack.c.h.b16 %v2059
    %v2147 = vunpack.c.l.b16 %v2060
    %v2148 = vunpack.c.h.b16 %v2060
    %v2149 = vunpack.c.l.b16 %v2061
    %v2150 = vunpack.c.h.b16 %v2061
    %v2151 = vunpack.c.l.b16 %v2062
    %v2152 = vunpack.c.h.b16 %v2062
    %v2153 = vunpack.c.l.b16 %v2063
    %v2154 = vunpack.c.h.b16 %v2063
    %v2155 = vunpack.c.l.b16 %v2064
    %v2156 = vunpack.c.h.b16 %v2064
    %v2157 = vunpack.c.l.b16 %v2065
    %v2158 = vunpack.c.h.b16 %v2065
    %v2159 = vunpack.c.l.b16 %v2066
    %v2160 = vunpack.c.h.b16 %v2066
    %v2161 = vunpack.c.l.b16 %v2067
    %v2162 = vunpack.c.h.b16 %v2067
    %v2163 = vunpack.c.l.b16 %v2068
    %v2164 = vunpack.c.h.b16 %v2068
    %v2165 = vpack.c.b16 %v2103, %v2101
    %v2166 = vpack.c.b16 %v2104, %v2102
    %v2167 = vpack.c.b16 %v2107, %v2105
    %v2168 = vpack.c.b16 %v2108, %v2106
    %v2169 = vpack.c.b16 %v2111, %v2109
    %v2170 = vpack.c.b16 %v2112, %v2110
    %v2171 = vpack.c.b16 %v2115, %v2113
    %v2172 = vpack.c.b16 %v2116, %v2114
    %v2173 = vpack.c.b16 %v2119, %v2117
    %v2174 = vpack.c.b16 %v2120, %v2118
    %v2175 = vpack.c.b16 %v2123, %v2121
    %v2176 = vpack.c.b16 %v2124, %v2122
    %v2177 = vpack.c.b16 %v2127, %v2125
    %v2178 = vpack.c.b16 %v2128, %v2126
    %v2179 = vpack.c.b16 %v2131, %v2129
    %v2180 = vpack.c.b16 %v2132, %v2130
    %v2181 = vpack.c.b16 %v2135, %v2133
    %v2182 = vpack.c.b16 %v2136, %v2134
    %v2183 = vpack.c.b16 %v2139, %v2137
    %v2184 = vpack.c.b16 %v2140, %v2138
    %v2185 = vpack.c.b16 %v2143, %v2141
    %v2186 = vpack.c.b16 %v2144, %v2142
    %v2187 = vpack.c.b16 %v2147, %v2145
    %v2188 = vpack.c.b16 %v2148, %v2146
    %v2189 = vpack.c.b16 %v2151, %v2149
    %v2190 = vpack.c.b16 %v2152, %v2150
    %v2191 = vpack.c.b16 %v2155, %v2153
    %v2192 = vpack.c.b16 %v2156, %v2154
    %v2193 = vpack.c.b16 %v2159, %v2157
    %v2194 = vpack.c.b16 %v2160, %v2158
    %v2195 = vpack.c.b16 %v2163, %v2161
    %v2196 = vpack.c.b16 %v2164, %v2162
    %2229 = vmatprep.subr.bf16.mxu0 %v2166
    %2230 = vmatpush1.bf16.msra.mxu0 %v2165
    %2231 = vmatprep.subr.bf16.mxu0 %v2168
    %2232 = vmatpush1.bf16.msra.mxu0 %v2167
    %2233 = vmatprep.subr.bf16.mxu0 %v2170
    %2234 = vmatpush1.bf16.msra.mxu0 %v2169
    %2235 = vmatprep.subr.bf16.mxu0 %v2172
    %2236 = vmatpush1.bf16.msra.mxu0 %v2171
    %2237 = vmatprep.subr.bf16.mxu0 %v2174
    %2238 = vmatpush1.bf16.msra.mxu0 %v2173
    %2239 = vmatprep.subr.bf16.mxu0 %v2176
    %2240 = vmatpush1.bf16.msra.mxu0 %v2175
    %2241 = vmatprep.subr.bf16.mxu0 %v2178
    %2242 = vmatpush1.bf16.msra.mxu0 %v2177
    %2243 = vmatprep.subr.bf16.mxu0 %v2180
    %2244 = vmatpush1.bf16.msra.mxu0 %v2179
    %2245 = vmatprep.subr.bf16.mxu0 %v2182
    %2246 = vmatpush1.bf16.msra.mxu0 %v2181
    %2247 = vmatprep.subr.bf16.mxu0 %v2184
    %2248 = vmatpush1.bf16.msra.mxu0 %v2183
    %2249 = vmatprep.subr.bf16.mxu0 %v2186
    %2250 = vmatpush1.bf16.msra.mxu0 %v2185
    %2251 = vmatprep.subr.bf16.mxu0 %v2188
    %2252 = vmatpush1.bf16.msra.mxu0 %v2187
    %2253 = vmatprep.subr.bf16.mxu0 %v2190
    %2254 = vmatpush1.bf16.msra.mxu0 %v2189
    %2255 = vmatprep.subr.bf16.mxu0 %v2192
    %2256 = vmatpush1.bf16.msra.mxu0 %v2191
    %2257 = vmatprep.subr.bf16.mxu0 %v2194
    %2258 = vmatpush1.bf16.msra.mxu0 %v2193
    %2259 = vmatprep.subr.bf16.mxu0 %v2196
    %2260 = vmatpush1.bf16.msra.mxu0 %v2195
    %2261 = vmatprep.mubr.bf16.mxu0 %v2036
    %2262 = vmatmul.mubr.bf16.gmra.mrb[0].mxu0 %v2035
    %v2263 = vpop.f32.mrb[0].mxu0
    %v2264 = vadd.f32 0.0, %v2263
    %v2265 = vpop.f32.mrb[0].mxu0
    %v2266 = vadd.f32 0.0, %v2265
    %v2267 = vpop.f32.mrb[0].mxu0
    %v2268 = vpop.f32.mrb[0].mxu0
    %2269 = vdwg.mxu0
    %vm2270 = vcmp.lt.f32.partialorder %v2264, 0.0
    %vm2271 = vcmp.lt.f32.partialorder %v2266, 0.0
    %v2272 = vmul.f32 %v2264, 5.0
    %v2273 = vmul.f32 %v2266, 5.0
    %v2274 = vsel %vm2270, %v2272, %v2264
    %v2275 = vsel %vm2271, %v2273, %v2266
    %v2276 = vpack.c.bf16 %v2274, %v2274
    %v2277 = vpack.c.bf16 %v2275, %v2275
    %v2278 = vld [vmem:[%s4] sm:$0xff]
    %v2279 = vld [vmem:[%s4 + $0x8] sm:$0xff]
    %v2280 = vld [vmem:[%s4 + $0x10] sm:$0xff]
    %v2281 = vld [vmem:[%s4 + $0x18] sm:$0xff]
    %v2282 = vld [vmem:[%s4 + $0x20] sm:$0xff]
    %v2283 = vld [vmem:[%s4 + $0x28] sm:$0xff]
    %v2284 = vld [vmem:[%s4 + $0x30] sm:$0xff]
    %v2285 = vld [vmem:[%s4 + $0x38] sm:$0xff]
    %v2286 = vld [vmem:[%s4 + $0x40] sm:$0xff]
    %v2287 = vld [vmem:[%s4 + $0x48] sm:$0xff]
    %v2288 = vld [vmem:[%s4 + $0x50] sm:$0xff]
    %v2289 = vld [vmem:[%s4 + $0x58] sm:$0xff]
    %v2290 = vld [vmem:[%s4 + $0x60] sm:$0xff]
    %v2291 = vld [vmem:[%s4 + $0x68] sm:$0xff]
    %v2292 = vld [vmem:[%s4 + $0x70] sm:$0xff]
    %v2293 = vld [vmem:[%s4 + $0x78] sm:$0xff]
    %v2294 = vld [vmem:[%s4 + $0x80] sm:$0xff]
    %v2295 = vld [vmem:[%s4 + $0x88] sm:$0xff]
    %v2296 = vld [vmem:[%s4 + $0x90] sm:$0xff]
    %v2297 = vld [vmem:[%s4 + $0x98] sm:$0xff]
    %v2298 = vld [vmem:[%s4 + $0xa0] sm:$0xff]
    %v2299 = vld [vmem:[%s4 + $0xa8] sm:$0xff]
    %v2300 = vld [vmem:[%s4 + $0xb0] sm:$0xff]
    %v2301 = vld [vmem:[%s4 + $0xb8] sm:$0xff]
    %v2302 = vld [vmem:[%s4 + $0xc0] sm:$0xff]
    %v2303 = vld [vmem:[%s4 + $0xc8] sm:$0xff]
    %v2304 = vld [vmem:[%s4 + $0xd0] sm:$0xff]
    %v2305 = vld [vmem:[%s4 + $0xd8] sm:$0xff]
    %v2306 = vld [vmem:[%s4 + $0xe0] sm:$0xff]
    %v2307 = vld [vmem:[%s4 + $0xe8] sm:$0xff]
    %v2308 = vld [vmem:[%s4 + $0xf0] sm:$0xff]
    %v2309 = vld [vmem:[%s4 + $0xf8] sm:$0xff]
    %v2310 = vld [vmem:[%s4 + $0x100] sm:$0xff]
    %v2311 = vld [vmem:[%s4 + $0x108] sm:$0xff]
    %v2312 = vld [vmem:[%s4 + $0x110] sm:$0xff]
    %v2313 = vld [vmem:[%s4 + $0x118] sm:$0xff]
    %v2314 = vld [vmem:[%s4 + $0x120] sm:$0xff]
    %v2315 = vld [vmem:[%s4 + $0x128] sm:$0xff]
    %v2316 = vld [vmem:[%s4 + $0x130] sm:$0xff]
    %v2317 = vld [vmem:[%s4 + $0x138] sm:$0xff]
    %v2318 = vld [vmem:[%s4 + $0x140] sm:$0xff]
    %v2319 = vld [vmem:[%s4 + $0x148] sm:$0xff]
    %v2320 = vld [vmem:[%s4 + $0x150] sm:$0xff]
    %v2321 = vld [vmem:[%s4 + $0x158] sm:$0xff]
    %v2322 = vld [vmem:[%s4 + $0x160] sm:$0xff]
    %v2323 = vld [vmem:[%s4 + $0x168] sm:$0xff]
    %v2324 = vld [vmem:[%s4 + $0x170] sm:$0xff]
    %v2325 = vld [vmem:[%s4 + $0x178] sm:$0xff]
    %v2326 = vld [vmem:[%s4 + $0x180] sm:$0xff]
    %v2327 = vld [vmem:[%s4 + $0x188] sm:$0xff]
    %v2328 = vld [vmem:[%s4 + $0x190] sm:$0xff]
    %v2329 = vld [vmem:[%s4 + $0x198] sm:$0xff]
    %v2330 = vld [vmem:[%s4 + $0x1a0] sm:$0xff]
    %v2331 = vld [vmem:[%s4 + $0x1a8] sm:$0xff]
    %v2332 = vld [vmem:[%s4 + $0x1b0] sm:$0xff]
    %v2333 = vld [vmem:[%s4 + $0x1b8] sm:$0xff]
    %v2334 = vld [vmem:[%s4 + $0x1c0] sm:$0xff]
    %v2335 = vld [vmem:[%s4 + $0x1c8] sm:$0xff]
    %v2336 = vld [vmem:[%s4 + $0x1d0] sm:$0xff]
    %v2337 = vld [vmem:[%s4 + $0x1d8] sm:$0xff]
    %v2338 = vld [vmem:[%s4 + $0x1e0] sm:$0xff]
    %v2339 = vld [vmem:[%s4 + $0x1e8] sm:$0xff]
    %v2340 = vld [vmem:[%s4 + $0x1f0] sm:$0xff]
    %v2341 = vld [vmem:[%s4 + $0x1f8] sm:$0xff]
    %v2406 = vunpack.c.l.b16 %v2278
    %v2407 = vunpack.c.h.b16 %v2278
    %v2408 = vunpack.c.l.b16 %v2279
    %v2409 = vunpack.c.h.b16 %v2279
    %v2410 = vunpack.c.l.b16 %v2280
    %v2411 = vunpack.c.h.b16 %v2280
    %v2412 = vunpack.c.l.b16 %v2281
    %v2413 = vunpack.c.h.b16 %v2281
    %v2414 = vunpack.c.l.b16 %v2282
    %v2415 = vunpack.c.h.b16 %v2282
    %v2416 = vunpack.c.l.b16 %v2283
    %v2417 = vunpack.c.h.b16 %v2283
    %v2418 = vunpack.c.l.b16 %v2284
    %v2419 = vunpack.c.h.b16 %v2284
    %v2420 = vunpack.c.l.b16 %v2285
    %v2421 = vunpack.c.h.b16 %v2285
    %v2422 = vunpack.c.l.b16 %v2286
    %v2423 = vunpack.c.h.b16 %v2286
    %v2424 = vunpack.c.l.b16 %v2287
    %v2425 = vunpack.c.h.b16 %v2287
    %v2426 = vunpack.c.l.b16 %v2288
    %v2427 = vunpack.c.h.b16 %v2288
    %v2428 = vunpack.c.l.b16 %v2289
    %v2429 = vunpack.c.h.b16 %v2289
    %v2430 = vunpack.c.l.b16 %v2290
    %v2431 = vunpack.c.h.b16 %v2290
    %v2432 = vunpack.c.l.b16 %v2291
    %v2433 = vunpack.c.h.b16 %v2291
    %v2434 = vunpack.c.l.b16 %v2292
    %v2435 = vunpack.c.h.b16 %v2292
    %v2436 = vunpack.c.l.b16 %v2293
    %v2437 = vunpack.c.h.b16 %v2293
    %v2438 = vunpack.c.l.b16 %v2294
    %v2439 = vunpack.c.h.b16 %v2294
    %v2440 = vunpack.c.l.b16 %v2295
    %v2441 = vunpack.c.h.b16 %v2295
    %v2442 = vunpack.c.l.b16 %v2296
    %v2443 = vunpack.c.h.b16 %v2296
    %v2444 = vunpack.c.l.b16 %v2297
    %v2445 = vunpack.c.h.b16 %v2297
    %v2446 = vunpack.c.l.b16 %v2298
    %v2447 = vunpack.c.h.b16 %v2298
    %v2448 = vunpack.c.l.b16 %v2299
    %v2449 = vunpack.c.h.b16 %v2299
    %v2450 = vunpack.c.l.b16 %v2300
    %v2451 = vunpack.c.h.b16 %v2300
    %v2452 = vunpack.c.l.b16 %v2301
    %v2453 = vunpack.c.h.b16 %v2301
    %v2454 = vunpack.c.l.b16 %v2302
    %v2455 = vunpack.c.h.b16 %v2302
    %v2456 = vunpack.c.l.b16 %v2303
    %v2457 = vunpack.c.h.b16 %v2303
    %v2458 = vunpack.c.l.b16 %v2304
    %v2459 = vunpack.c.h.b16 %v2304
    %v2460 = vunpack.c.l.b16 %v2305
    %v2461 = vunpack.c.h.b16 %v2305
    %v2462 = vunpack.c.l.b16 %v2306
    %v2463 = vunpack.c.h.b16 %v2306
    %v2464 = vunpack.c.l.b16 %v2307
    %v2465 = vunpack.c.h.b16 %v2307
    %v2466 = vunpack.c.l.b16 %v2308
    %v2467 = vunpack.c.h.b16 %v2308
    %v2468 = vunpack.c.l.b16 %v2309
    %v2469 = vunpack.c.h.b16 %v2309
    %v2470 = vunpack.c.l.b16 %v2310
    %v2471 = vunpack.c.h.b16 %v2310
    %v2472 = vunpack.c.l.b16 %v2311
    %v2473 = vunpack.c.h.b16 %v2311
    %v2474 = vunpack.c.l.b16 %v2312
    %v2475 = vunpack.c.h.b16 %v2312
    %v2476 = vunpack.c.l.b16 %v2313
    %v2477 = vunpack.c.h.b16 %v2313
    %v2478 = vunpack.c.l.b16 %v2314
    %v2479 = vunpack.c.h.b16 %v2314
    %v2480 = vunpack.c.l.b16 %v2315
    %v2481 = vunpack.c.h.b16 %v2315
    %v2482 = vunpack.c.l.b16 %v2316
    %v2483 = vunpack.c.h.b16 %v2316
    %v2484 = vunpack.c.l.b16 %v2317
    %v2485 = vunpack.c.h.b16 %v2317
    %v2486 = vunpack.c.l.b16 %v2318
    %v2487 = vunpack.c.h.b16 %v2318
    %v2488 = vunpack.c.l.b16 %v2319
    %v2489 = vunpack.c.h.b16 %v2319
    %v2490 = vunpack.c.l.b16 %v2320
    %v2491 = vunpack.c.h.b16 %v2320
    %v2492 = vunpack.c.l.b16 %v2321
    %v2493 = vunpack.c.h.b16 %v2321
    %v2494 = vunpack.c.l.b16 %v2322
    %v2495 = vunpack.c.h.b16 %v2322
    %v2496 = vunpack.c.l.b16 %v2323
    %v2497 = vunpack.c.h.b16 %v2323
    %v2498 = vunpack.c.l.b16 %v2324
    %v2499 = vunpack.c.h.b16 %v2324
    %v2500 = vunpack.c.l.b16 %v2325
    %v2501 = vunpack.c.h.b16 %v2325
    %v2502 = vunpack.c.l.b16 %v2326
    %v2503 = vunpack.c.h.b16 %v2326
    %v2504 = vunpack.c.l.b16 %v2327
    %v2505 = vunpack.c.h.b16 %v2327
    %v2506 = vunpack.c.l.b16 %v2328
    %v2507 = vunpack.c.h.b16 %v2328
    %v2508 = vunpack.c.l.b16 %v2329
    %v2509 = vunpack.c.h.b16 %v2329
    %v2510 = vunpack.c.l.b16 %v2330
    %v2511 = vunpack.c.h.b16 %v2330
    %v2512 = vunpack.c.l.b16 %v2331
    %v2513 = vunpack.c.h.b16 %v2331
    %v2514 = vunpack.c.l.b16 %v2332
    %v2515 = vunpack.c.h.b16 %v2332
    %v2516 = vunpack.c.l.b16 %v2333
    %v2517 = vunpack.c.h.b16 %v2333
    %v2518 = vunpack.c.l.b16 %v2334
    %v2519 = vunpack.c.h.b16 %v2334
    %v2520 = vunpack.c.l.b16 %v2335
    %v2521 = vunpack.c.h.b16 %v2335
    %v2522 = vunpack.c.l.b16 %v2336
    %v2523 = vunpack.c.h.b16 %v2336
    %v2524 = vunpack.c.l.b16 %v2337
    %v2525 = vunpack.c.h.b16 %v2337
    %v2526 = vunpack.c.l.b16 %v2338
    %v2527 = vunpack.c.h.b16 %v2338
    %v2528 = vunpack.c.l.b16 %v2339
    %v2529 = vunpack.c.h.b16 %v2339
    %v2530 = vunpack.c.l.b16 %v2340
    %v2531 = vunpack.c.h.b16 %v2340
    %v2532 = vunpack.c.l.b16 %v2341
    %v2533 = vunpack.c.h.b16 %v2341
    %v2534 = vpack.c.b16 %v2410, %v2406
    %v2535 = vpack.c.b16 %v2411, %v2407
    %v2536 = vpack.c.b16 %v2412, %v2408
    %v2537 = vpack.c.b16 %v2413, %v2409
    %v2538 = vpack.c.b16 %v2418, %v2414
    %v2539 = vpack.c.b16 %v2419, %v2415
    %v2540 = vpack.c.b16 %v2420, %v2416
    %v2541 = vpack.c.b16 %v2421, %v2417
    %v2542 = vpack.c.b16 %v2426, %v2422
    %v2543 = vpack.c.b16 %v2427, %v2423
    %v2544 = vpack.c.b16 %v2428, %v2424
    %v2545 = vpack.c.b16 %v2429, %v2425
    %v2546 = vpack.c.b16 %v2434, %v2430
    %v2547 = vpack.c.b16 %v2435, %v2431
    %v2548 = vpack.c.b16 %v2436, %v2432
    %v2549 = vpack.c.b16 %v2437, %v2433
    %v2550 = vpack.c.b16 %v2442, %v2438
    %v2551 = vpack.c.b16 %v2443, %v2439
    %v2552 = vpack.c.b16 %v2444, %v2440
    %v2553 = vpack.c.b16 %v2445, %v2441
    %v2554 = vpack.c.b16 %v2450, %v2446
    %v2555 = vpack.c.b16 %v2451, %v2447
    %v2556 = vpack.c.b16 %v2452, %v2448
    %v2557 = vpack.c.b16 %v2453, %v2449
    %v2558 = vpack.c.b16 %v2458, %v2454
    %v2559 = vpack.c.b16 %v2459, %v2455
    %v2560 = vpack.c.b16 %v2460, %v2456
    %v2561 = vpack.c.b16 %v2461, %v2457
    %v2562 = vpack.c.b16 %v2466, %v2462
    %v2563 = vpack.c.b16 %v2467, %v2463
    %v2564 = vpack.c.b16 %v2468, %v2464
    %v2565 = vpack.c.b16 %v2469, %v2465
    %v2566 = vpack.c.b16 %v2474, %v2470
    %v2567 = vpack.c.b16 %v2475, %v2471
    %v2568 = vpack.c.b16 %v2476, %v2472
    %v2569 = vpack.c.b16 %v2477, %v2473
    %v2570 = vpack.c.b16 %v2482, %v2478
    %v2571 = vpack.c.b16 %v2483, %v2479
    %v2572 = vpack.c.b16 %v2484, %v2480
    %v2573 = vpack.c.b16 %v2485, %v2481
    %v2574 = vpack.c.b16 %v2490, %v2486
    %v2575 = vpack.c.b16 %v2491, %v2487
    %v2576 = vpack.c.b16 %v2492, %v2488
    %v2577 = vpack.c.b16 %v2493, %v2489
    %v2578 = vpack.c.b16 %v2498, %v2494
    %v2579 = vpack.c.b16 %v2499, %v2495
    %v2580 = vpack.c.b16 %v2500, %v2496
    %v2581 = vpack.c.b16 %v2501, %v2497
    %v2582 = vpack.c.b16 %v2506, %v2502
    %v2583 = vpack.c.b16 %v2507, %v2503
    %v2584 = vpack.c.b16 %v2508, %v2504
    %v2585 = vpack.c.b16 %v2509, %v2505
    %v2586 = vpack.c.b16 %v2514, %v2510
    %v2587 = vpack.c.b16 %v2515, %v2511
    %v2588 = vpack.c.b16 %v2516, %v2512
    %v2589 = vpack.c.b16 %v2517, %v2513
    %v2590 = vpack.c.b16 %v2522, %v2518
    %v2591 = vpack.c.b16 %v2523, %v2519
    %v2592 = vpack.c.b16 %v2524, %v2520
    %v2593 = vpack.c.b16 %v2525, %v2521
    %v2594 = vpack.c.b16 %v2530, %v2526
    %v2595 = vpack.c.b16 %v2531, %v2527
    %v2596 = vpack.c.b16 %v2532, %v2528
    %v2597 = vpack.c.b16 %v2533, %v2529
    %2662 = vmatprep.subr.bf16.mxu0 %v2535
    %2663 = vmatpush1.bf16.msra.mxu0 %v2534
    %2664 = vmatprep.subr.bf16.mxu0 %v2539
    %2665 = vmatpush1.bf16.msra.mxu0 %v2538
    %2666 = vmatprep.subr.bf16.mxu0 %v2543
    %2667 = vmatpush1.bf16.msra.mxu0 %v2542
    %2668 = vmatprep.subr.bf16.mxu0 %v2547
    %2669 = vmatpush1.bf16.msra.mxu0 %v2546
    %2670 = vmatprep.subr.bf16.mxu0 %v2551
    %2671 = vmatpush1.bf16.msra.mxu0 %v2550
    %2672 = vmatprep.subr.bf16.mxu0 %v2555
    %2673 = vmatpush1.bf16.msra.mxu0 %v2554
    %2674 = vmatprep.subr.bf16.mxu0 %v2559
    %2675 = vmatpush1.bf16.msra.mxu0 %v2558
    %2676 = vmatprep.subr.bf16.mxu0 %v2563
    %2677 = vmatpush1.bf16.msra.mxu0 %v2562
    %2678 = vmatprep.subr.bf16.mxu0 %v2567
    %2679 = vmatpush1.bf16.msra.mxu0 %v2566
    %2680 = vmatprep.subr.bf16.mxu0 %v2571
    %2681 = vmatpush1.bf16.msra.mxu0 %v2570
    %2682 = vmatprep.subr.bf16.mxu0 %v2575
    %2683 = vmatpush1.bf16.msra.mxu0 %v2574
    %2684 = vmatprep.subr.bf16.mxu0 %v2579
    %2685 = vmatpush1.bf16.msra.mxu0 %v2578
    %2686 = vmatprep.subr.bf16.mxu0 %v2583
    %2687 = vmatpush1.bf16.msra.mxu0 %v2582
    %2688 = vmatprep.subr.bf16.mxu0 %v2587
    %2689 = vmatpush1.bf16.msra.mxu0 %v2586
    %2690 = vmatprep.subr.bf16.mxu0 %v2591
    %2691 = vmatpush1.bf16.msra.mxu0 %v2590
    %2692 = vmatprep.subr.bf16.mxu0 %v2595
    %2693 = vmatpush1.bf16.msra.mxu0 %v2594
    %2694 = vmatprep.mubr.bf16.mxu0 %v2277
    %2695 = vmatmul.mubr.bf16.gmra.mrb[0].mxu0 %v2276
    %v2696 = vpop.f32.mrb[0].mxu0
    %v2697 = vadd.f32 0.0, %v2696
    %v2698 = vpop.f32.mrb[0].mxu0
    %v2699 = vadd.f32 0.0, %v2698
    %v2700 = vpop.f32.mrb[0].mxu0
    %v2701 = vpop.f32.mrb[0].mxu0
    %2702 = vdwg.mxu0
    %2703 = vmatprep.subr.bf16.mxu0 %v2537
    %2704 = vmatpush1.bf16.msra.mxu0 %v2536
    %2705 = vmatprep.subr.bf16.mxu0 %v2541
    %2706 = vmatpush1.bf16.msra.mxu0 %v2540
    %2707 = vmatprep.subr.bf16.mxu0 %v2545
    %2708 = vmatpush1.bf16.msra.mxu0 %v2544
    %2709 = vmatprep.subr.bf16.mxu0 %v2549
    %2710 = vmatpush1.bf16.msra.mxu0 %v2548
    %2711 = vmatprep.subr.bf16.mxu0 %v2553
    %2712 = vmatpush1.bf16.msra.mxu0 %v2552
    %2713 = vmatprep.subr.bf16.mxu0 %v2557
    %2714 = vmatpush1.bf16.msra.mxu0 %v2556
    %2715 = vmatprep.subr.bf16.mxu0 %v2561
    %2716 = vmatpush1.bf16.msra.mxu0 %v2560
    %2717 = vmatprep.subr.bf16.mxu0 %v2565
    %2718 = vmatpush1.bf16.msra.mxu0 %v2564
    %2719 = vmatprep.subr.bf16.mxu0 %v2569
    %2720 = vmatpush1.bf16.msra.mxu0 %v2568
    %2721 = vmatprep.subr.bf16.mxu0 %v2573
    %2722 = vmatpush1.bf16.msra.mxu0 %v2572
    %2723 = vmatprep.subr.bf16.mxu0 %v2577
    %2724 = vmatpush1.bf16.msra.mxu0 %v2576
    %2725 = vmatprep.subr.bf16.mxu0 %v2581
    %2726 = vmatpush1.bf16.msra.mxu0 %v2580
    %2727 = vmatprep.subr.bf16.mxu0 %v2585
    %2728 = vmatpush1.bf16.msra.mxu0 %v2584
    %2729 = vmatprep.subr.bf16.mxu0 %v2589
    %2730 = vmatpush1.bf16.msra.mxu0 %v2588
    %2731 = vmatprep.subr.bf16.mxu0 %v2593
    %2732 = vmatpush1.bf16.msra.mxu0 %v2592
    %2733 = vmatprep.subr.bf16.mxu0 %v2597
    %2734 = vmatpush1.bf16.msra.mxu0 %v2596
    %2735 = vmatprep.mubr.bf16.mxu0 %v2277
    %2736 = vmatmul.mubr.bf16.gmra.mrb[0].mxu0 %v2276
    %v2737 = vpop.f32.mrb[0].mxu0
    %v2738 = vadd.f32 0.0, %v2737
    %v2739 = vpop.f32.mrb[0].mxu0
    %v2740 = vadd.f32 0.0, %v2739
    %v2741 = vpop.f32.mrb[0].mxu0
    %v2742 = vpop.f32.mrb[0].mxu0
    %2743 = vdwg.mxu0
    %vm2744 = vcmp.lt.f32.partialorder %v2697, 0.0
    %vm2745 = vcmp.lt.f32.partialorder %v2699, 0.0
    %vm2746 = vcmp.lt.f32.partialorder %v2738, 0.0
    %vm2747 = vcmp.lt.f32.partialorder %v2740, 0.0
    %v2748 = vmul.f32 %v2697, 5.0
    %v2749 = vmul.f32 %v2699, 5.0
    %v2750 = vmul.f32 %v2738, 5.0
    %v2751 = vmul.f32 %v2740, 5.0
    %v2752 = vsel %vm2744, %v2748, %v2697
    %v2753 = vsel %vm2745, %v2749, %v2699
    %v2754 = vsel %vm2746, %v2750, %v2738
    %v2755 = vsel %vm2747, %v2751, %v2740
    %v2756 = vpack.c.bf16 %v2752, %v2752
    %v2757 = vpack.c.bf16 %v2753, %v2753
    %v2758 = vpack.c.bf16 %v2754, %v2754
    %v2759 = vpack.c.bf16 %v2755, %v2755
    %v2760 = vld [vmem:[%s5] sm:$0xff]
    %v2761 = vld [vmem:[%s5 + $0x8] sm:$0xff]
    %v2762 = vld [vmem:[%s5 + $0x10] sm:$0xff]
    %v2763 = vld [vmem:[%s5 + $0x18] sm:$0xf]
    %v2764 = vld [vmem:[%s5 + $0x1c] sm:$0xff]
    %v2765 = vld [vmem:[%s5 + $0x24] sm:$0xff]
    %v2766 = vld [vmem:[%s5 + $0x2c] sm:$0xff]
    %v2767 = vld [vmem:[%s5 + $0x34] sm:$0xf]
    %v2768 = vld [vmem:[%s5 + $0x38] sm:$0xff]
    %v2769 = vld [vmem:[%s5 + $0x40] sm:$0xff]
    %v2770 = vld [vmem:[%s5 + $0x48] sm:$0xff]
    %v2771 = vld [vmem:[%s5 + $0x50] sm:$0xf]
    %v2772 = vld [vmem:[%s5 + $0x54] sm:$0xff]
    %v2773 = vld [vmem:[%s5 + $0x5c] sm:$0xff]
    %v2774 = vld [vmem:[%s5 + $0x64] sm:$0xff]
    %v2775 = vld [vmem:[%s5 + $0x6c] sm:$0xf]
    %v2776 = vld [vmem:[%s5 + $0x70] sm:$0xff]
    %v2777 = vld [vmem:[%s5 + $0x78] sm:$0xff]
    %v2778 = vld [vmem:[%s5 + $0x80] sm:$0xff]
    %v2779 = vld [vmem:[%s5 + $0x88] sm:$0xf]
    %v2780 = vld [vmem:[%s5 + $0x8c] sm:$0xff]
    %v2781 = vld [vmem:[%s5 + $0x94] sm:$0xff]
    %v2782 = vld [vmem:[%s5 + $0x9c] sm:$0xff]
    %v2783 = vld [vmem:[%s5 + $0xa4] sm:$0xf]
    %v2784 = vld [vmem:[%s5 + $0xa8] sm:$0xff]
    %v2785 = vld [vmem:[%s5 + $0xb0] sm:$0xff]
    %v2786 = vld [vmem:[%s5 + $0xb8] sm:$0xff]
    %v2787 = vld [vmem:[%s5 + $0xc0] sm:$0xf]
    %v2788 = vld [vmem:[%s5 + $0xc4] sm:$0xff]
    %v2789 = vld [vmem:[%s5 + $0xcc] sm:$0xff]
    %v2790 = vld [vmem:[%s5 + $0xd4] sm:$0xff]
    %v2791 = vld [vmem:[%s5 + $0xdc] sm:$0xf]
    %v2792 = vld [vmem:[%s5 + $0xe0] sm:$0xff]
    %v2793 = vld [vmem:[%s5 + $0xe8] sm:$0xff]
    %v2794 = vld [vmem:[%s5 + $0xf0] sm:$0xff]
    %v2795 = vld [vmem:[%s5 + $0xf8] sm:$0xf]
    %v2796 = vld [vmem:[%s5 + $0xfc] sm:$0xff]
    %v2797 = vld [vmem:[%s5 + $0x104] sm:$0xff]
    %v2798 = vld [vmem:[%s5 + $0x10c] sm:$0xff]
    %v2799 = vld [vmem:[%s5 + $0x114] sm:$0xf]
    %v2800 = vld [vmem:[%s5 + $0x118] sm:$0xff]
    %v2801 = vld [vmem:[%s5 + $0x120] sm:$0xff]
    %v2802 = vld [vmem:[%s5 + $0x128] sm:$0xff]
    %v2803 = vld [vmem:[%s5 + $0x130] sm:$0xf]
    %v2804 = vld [vmem:[%s5 + $0x134] sm:$0xff]
    %v2805 = vld [vmem:[%s5 + $0x13c] sm:$0xff]
    %v2806 = vld [vmem:[%s5 + $0x144] sm:$0xff]
    %v2807 = vld [vmem:[%s5 + $0x14c] sm:$0xf]
    %v2808 = vld [vmem:[%s5 + $0x150] sm:$0xff]
    %v2809 = vld [vmem:[%s5 + $0x158] sm:$0xff]
    %v2810 = vld [vmem:[%s5 + $0x160] sm:$0xff]
    %v2811 = vld [vmem:[%s5 + $0x168] sm:$0xf]
    %v2812 = vld [vmem:[%s5 + $0x16c] sm:$0xff]
    %v2813 = vld [vmem:[%s5 + $0x174] sm:$0xff]
    %v2814 = vld [vmem:[%s5 + $0x17c] sm:$0xff]
    %v2815 = vld [vmem:[%s5 + $0x184] sm:$0xf]
    %v2816 = vld [vmem:[%s5 + $0x188] sm:$0xff]
    %v2817 = vld [vmem:[%s5 + $0x190] sm:$0xff]
    %v2818 = vld [vmem:[%s5 + $0x198] sm:$0xff]
    %v2819 = vld [vmem:[%s5 + $0x1a0] sm:$0xf]
    %v2820 = vld [vmem:[%s5 + $0x1a4] sm:$0xff]
    %v2821 = vld [vmem:[%s5 + $0x1ac] sm:$0xff]
    %v2822 = vld [vmem:[%s5 + $0x1b4] sm:$0xff]
    %v2823 = vld [vmem:[%s5 + $0x1bc] sm:$0xf]
    %v2824 = vld [vmem:[%s5 + $0x1c0] sm:$0xff]
    %v2825 = vld [vmem:[%s5 + $0x1c8] sm:$0xff]
    %v2826 = vld [vmem:[%s5 + $0x1d0] sm:$0xff]
    %v2827 = vld [vmem:[%s5 + $0x1d8] sm:$0xf]
    %v2828 = vld [vmem:[%s5 + $0x1dc] sm:$0xff]
    %v2829 = vld [vmem:[%s5 + $0x1e4] sm:$0xff]
    %v2830 = vld [vmem:[%s5 + $0x1ec] sm:$0xff]
    %v2831 = vld [vmem:[%s5 + $0x1f4] sm:$0xf]
    %v2832 = vld [vmem:[%s5 + $0x1f8] sm:$0xff]
    %v2833 = vld [vmem:[%s5 + $0x200] sm:$0xff]
    %v2834 = vld [vmem:[%s5 + $0x208] sm:$0xff]
    %v2835 = vld [vmem:[%s5 + $0x210] sm:$0xf]
    %v2836 = vld [vmem:[%s5 + $0x214] sm:$0xff]
    %v2837 = vld [vmem:[%s5 + $0x21c] sm:$0xff]
    %v2838 = vld [vmem:[%s5 + $0x224] sm:$0xff]
    %v2839 = vld [vmem:[%s5 + $0x22c] sm:$0xf]
    %v2840 = vld [vmem:[%s5 + $0x230] sm:$0xff]
    %v2841 = vld [vmem:[%s5 + $0x238] sm:$0xff]
    %v2842 = vld [vmem:[%s5 + $0x240] sm:$0xff]
    %v2843 = vld [vmem:[%s5 + $0x248] sm:$0xf]
    %v2844 = vld [vmem:[%s5 + $0x24c] sm:$0xff]
    %v2845 = vld [vmem:[%s5 + $0x254] sm:$0xff]
    %v2846 = vld [vmem:[%s5 + $0x25c] sm:$0xff]
    %v2847 = vld [vmem:[%s5 + $0x264] sm:$0xf]
    %v2848 = vld [vmem:[%s5 + $0x268] sm:$0xff]
    %v2849 = vld [vmem:[%s5 + $0x270] sm:$0xff]
    %v2850 = vld [vmem:[%s5 + $0x278] sm:$0xff]
    %v2851 = vld [vmem:[%s5 + $0x280] sm:$0xf]
    %v2852 = vld [vmem:[%s5 + $0x284] sm:$0xff]
    %v2853 = vld [vmem:[%s5 + $0x28c] sm:$0xff]
    %v2854 = vld [vmem:[%s5 + $0x294] sm:$0xff]
    %v2855 = vld [vmem:[%s5 + $0x29c] sm:$0xf]
    %v2856 = vld [vmem:[%s5 + $0x2a0] sm:$0xff]
    %v2857 = vld [vmem:[%s5 + $0x2a8] sm:$0xff]
    %v2858 = vld [vmem:[%s5 + $0x2b0] sm:$0xff]
    %v2859 = vld [vmem:[%s5 + $0x2b8] sm:$0xf]
    %v2860 = vld [vmem:[%s5 + $0x2bc] sm:$0xff]
    %v2861 = vld [vmem:[%s5 + $0x2c4] sm:$0xff]
    %v2862 = vld [vmem:[%s5 + $0x2cc] sm:$0xff]
    %v2863 = vld [vmem:[%s5 + $0x2d4] sm:$0xf]
    %v2864 = vld [vmem:[%s5 + $0x2d8] sm:$0xff]
    %v2865 = vld [vmem:[%s5 + $0x2e0] sm:$0xff]
    %v2866 = vld [vmem:[%s5 + $0x2e8] sm:$0xff]
    %v2867 = vld [vmem:[%s5 + $0x2f0] sm:$0xf]
    %v2868 = vld [vmem:[%s5 + $0x2f4] sm:$0xff]
    %v2869 = vld [vmem:[%s5 + $0x2fc] sm:$0xff]
    %v2870 = vld [vmem:[%s5 + $0x304] sm:$0xff]
    %v2871 = vld [vmem:[%s5 + $0x30c] sm:$0xf]
    %v2872 = vld [vmem:[%s5 + $0x310] sm:$0xff]
    %v2873 = vld [vmem:[%s5 + $0x318] sm:$0xff]
    %v2874 = vld [vmem:[%s5 + $0x320] sm:$0xff]
    %v2875 = vld [vmem:[%s5 + $0x328] sm:$0xf]
    %v2876 = vld [vmem:[%s5 + $0x32c] sm:$0xff]
    %v2877 = vld [vmem:[%s5 + $0x334] sm:$0xff]
    %v2878 = vld [vmem:[%s5 + $0x33c] sm:$0xff]
    %v2879 = vld [vmem:[%s5 + $0x344] sm:$0xf]
    %v2880 = vld [vmem:[%s5 + $0x348] sm:$0xff]
    %v2881 = vld [vmem:[%s5 + $0x350] sm:$0xff]
    %v2882 = vld [vmem:[%s5 + $0x358] sm:$0xff]
    %v2883 = vld [vmem:[%s5 + $0x360] sm:$0xf]
    %v2884 = vld [vmem:[%s5 + $0x364] sm:$0xff]
    %v2885 = vld [vmem:[%s5 + $0x36c] sm:$0xff]
    %v2886 = vld [vmem:[%s5 + $0x374] sm:$0xff]
    %v2887 = vld [vmem:[%s5 + $0x37c] sm:$0xf]
    %v2888 = vld [vmem:[%s5 + $0x380] sm:$0xff]
    %v2889 = vld [vmem:[%s5 + $0x388] sm:$0xff]
    %v2890 = vld [vmem:[%s5 + $0x390] sm:$0xff]
    %v2891 = vld [vmem:[%s5 + $0x398] sm:$0xf]
    %v2892 = vld [vmem:[%s5 + $0x39c] sm:$0xff]
    %v2893 = vld [vmem:[%s5 + $0x3a4] sm:$0xff]
    %v2894 = vld [vmem:[%s5 + $0x3ac] sm:$0xff]
    %v2895 = vld [vmem:[%s5 + $0x3b4] sm:$0xf]
    %v2896 = vld [vmem:[%s5 + $0x3b8] sm:$0xff]
    %v2897 = vld [vmem:[%s5 + $0x3c0] sm:$0xff]
    %v2898 = vld [vmem:[%s5 + $0x3c8] sm:$0xff]
    %v2899 = vld [vmem:[%s5 + $0x3d0] sm:$0xf]
    %v2900 = vld [vmem:[%s5 + $0x3d4] sm:$0xff]
    %v2901 = vld [vmem:[%s5 + $0x3dc] sm:$0xff]
    %v2902 = vld [vmem:[%s5 + $0x3e4] sm:$0xff]
    %v2903 = vld [vmem:[%s5 + $0x3ec] sm:$0xf]
    %v2904 = vld [vmem:[%s5 + $0x3f0] sm:$0xff]
    %v2905 = vld [vmem:[%s5 + $0x3f8] sm:$0xff]
    %v2906 = vld [vmem:[%s5 + $0x400] sm:$0xff]
    %v2907 = vld [vmem:[%s5 + $0x408] sm:$0xf]
    %v2908 = vld [vmem:[%s5 + $0x40c] sm:$0xff]
    %v2909 = vld [vmem:[%s5 + $0x414] sm:$0xff]
    %v2910 = vld [vmem:[%s5 + $0x41c] sm:$0xff]
    %v2911 = vld [vmem:[%s5 + $0x424] sm:$0xf]
    %v2912 = vld [vmem:[%s5 + $0x428] sm:$0xff]
    %v2913 = vld [vmem:[%s5 + $0x430] sm:$0xff]
    %v2914 = vld [vmem:[%s5 + $0x438] sm:$0xff]
    %v2915 = vld [vmem:[%s5 + $0x440] sm:$0xf]
    %v2916 = vld [vmem:[%s5 + $0x444] sm:$0xff]
    %v2917 = vld [vmem:[%s5 + $0x44c] sm:$0xff]
    %v2918 = vld [vmem:[%s5 + $0x454] sm:$0xff]
    %v2919 = vld [vmem:[%s5 + $0x45c] sm:$0xf]
    %v2920 = vld [vmem:[%s5 + $0x460] sm:$0xff]
    %v2921 = vld [vmem:[%s5 + $0x468] sm:$0xff]
    %v2922 = vld [vmem:[%s5 + $0x470] sm:$0xff]
    %v2923 = vld [vmem:[%s5 + $0x478] sm:$0xf]
    %v2924 = vld [vmem:[%s5 + $0x47c] sm:$0xff]
    %v2925 = vld [vmem:[%s5 + $0x484] sm:$0xff]
    %v2926 = vld [vmem:[%s5 + $0x48c] sm:$0xff]
    %v2927 = vld [vmem:[%s5 + $0x494] sm:$0xf]
    %v2928 = vld [vmem:[%s5 + $0x498] sm:$0xff]
    %v2929 = vld [vmem:[%s5 + $0x4a0] sm:$0xff]
    %v2930 = vld [vmem:[%s5 + $0x4a8] sm:$0xff]
    %v2931 = vld [vmem:[%s5 + $0x4b0] sm:$0xf]
    %v2932 = vld [vmem:[%s5 + $0x4b4] sm:$0xff]
    %v2933 = vld [vmem:[%s5 + $0x4bc] sm:$0xff]
    %v2934 = vld [vmem:[%s5 + $0x4c4] sm:$0xff]
    %v2935 = vld [vmem:[%s5 + $0x4cc] sm:$0xf]
    %v2936 = vld [vmem:[%s5 + $0x4d0] sm:$0xff]
    %v2937 = vld [vmem:[%s5 + $0x4d8] sm:$0xff]
    %v2938 = vld [vmem:[%s5 + $0x4e0] sm:$0xff]
    %v2939 = vld [vmem:[%s5 + $0x4e8] sm:$0xf]
    %v2940 = vld [vmem:[%s5 + $0x4ec] sm:$0xff]
    %v2941 = vld [vmem:[%s5 + $0x4f4] sm:$0xff]
    %v2942 = vld [vmem:[%s5 + $0x4fc] sm:$0xff]
    %v2943 = vld [vmem:[%s5 + $0x504] sm:$0xf]
    %v2944 = vld [vmem:[%s5 + $0x508] sm:$0xff]
    %v2945 = vld [vmem:[%s5 + $0x510] sm:$0xff]
    %v2946 = vld [vmem:[%s5 + $0x518] sm:$0xff]
    %v2947 = vld [vmem:[%s5 + $0x520] sm:$0xf]
    %v2948 = vld [vmem:[%s5 + $0x524] sm:$0xff]
    %v2949 = vld [vmem:[%s5 + $0x52c] sm:$0xff]
    %v2950 = vld [vmem:[%s5 + $0x534] sm:$0xff]
    %v2951 = vld [vmem:[%s5 + $0x53c] sm:$0xf]
    %v2952 = vld [vmem:[%s5 + $0x540] sm:$0xff]
    %v2953 = vld [vmem:[%s5 + $0x548] sm:$0xff]
    %v2954 = vld [vmem:[%s5 + $0x550] sm:$0xff]
    %v2955 = vld [vmem:[%s5 + $0x558] sm:$0xf]
    %v2956 = vld [vmem:[%s5 + $0x55c] sm:$0xff]
    %v2957 = vld [vmem:[%s5 + $0x564] sm:$0xff]
    %v2958 = vld [vmem:[%s5 + $0x56c] sm:$0xff]
    %v2959 = vld [vmem:[%s5 + $0x574] sm:$0xf]
    %v2960 = vld [vmem:[%s5 + $0x578] sm:$0xff]
    %v2961 = vld [vmem:[%s5 + $0x580] sm:$0xff]
    %v2962 = vld [vmem:[%s5 + $0x588] sm:$0xff]
    %v2963 = vld [vmem:[%s5 + $0x590] sm:$0xf]
    %v2964 = vld [vmem:[%s5 + $0x594] sm:$0xff]
    %v2965 = vld [vmem:[%s5 + $0x59c] sm:$0xff]
    %v2966 = vld [vmem:[%s5 + $0x5a4] sm:$0xff]
    %v2967 = vld [vmem:[%s5 + $0x5ac] sm:$0xf]
    %v2968 = vld [vmem:[%s5 + $0x5b0] sm:$0xff]
    %v2969 = vld [vmem:[%s5 + $0x5b8] sm:$0xff]
    %v2970 = vld [vmem:[%s5 + $0x5c0] sm:$0xff]
    %v2971 = vld [vmem:[%s5 + $0x5c8] sm:$0xf]
    %v2972 = vld [vmem:[%s5 + $0x5cc] sm:$0xff]
    %v2973 = vld [vmem:[%s5 + $0x5d4] sm:$0xff]
    %v2974 = vld [vmem:[%s5 + $0x5dc] sm:$0xff]
    %v2975 = vld [vmem:[%s5 + $0x5e4] sm:$0xf]
    %v2976 = vld [vmem:[%s5 + $0x5e8] sm:$0xff]
    %v2977 = vld [vmem:[%s5 + $0x5f0] sm:$0xff]
    %v2978 = vld [vmem:[%s5 + $0x5f8] sm:$0xff]
    %v2979 = vld [vmem:[%s5 + $0x600] sm:$0xf]
    %v2980 = vld [vmem:[%s5 + $0x604] sm:$0xff]
    %v2981 = vld [vmem:[%s5 + $0x60c] sm:$0xff]
    %v2982 = vld [vmem:[%s5 + $0x614] sm:$0xff]
    %v2983 = vld [vmem:[%s5 + $0x61c] sm:$0xf]
    %v2984 = vld [vmem:[%s5 + $0x620] sm:$0xff]
    %v2985 = vld [vmem:[%s5 + $0x628] sm:$0xff]
    %v2986 = vld [vmem:[%s5 + $0x630] sm:$0xff]
    %v2987 = vld [vmem:[%s5 + $0x638] sm:$0xf]
    %v2988 = vld [vmem:[%s5 + $0x63c] sm:$0xff]
    %v2989 = vld [vmem:[%s5 + $0x644] sm:$0xff]
    %v2990 = vld [vmem:[%s5 + $0x64c] sm:$0xff]
    %v2991 = vld [vmem:[%s5 + $0x654] sm:$0xf]
    %v2992 = vld [vmem:[%s5 + $0x658] sm:$0xff]
    %v2993 = vld [vmem:[%s5 + $0x660] sm:$0xff]
    %v2994 = vld [vmem:[%s5 + $0x668] sm:$0xff]
    %v2995 = vld [vmem:[%s5 + $0x670] sm:$0xf]
    %v2996 = vld [vmem:[%s5 + $0x674] sm:$0xff]
    %v2997 = vld [vmem:[%s5 + $0x67c] sm:$0xff]
    %v2998 = vld [vmem:[%s5 + $0x684] sm:$0xff]
    %v2999 = vld [vmem:[%s5 + $0x68c] sm:$0xf]
    %v3000 = vld [vmem:[%s5 + $0x690] sm:$0xff]
    %v3001 = vld [vmem:[%s5 + $0x698] sm:$0xff]
    %v3002 = vld [vmem:[%s5 + $0x6a0] sm:$0xff]
    %v3003 = vld [vmem:[%s5 + $0x6a8] sm:$0xf]
    %v3004 = vld [vmem:[%s5 + $0x6ac] sm:$0xff]
    %v3005 = vld [vmem:[%s5 + $0x6b4] sm:$0xff]
    %v3006 = vld [vmem:[%s5 + $0x6bc] sm:$0xff]
    %v3007 = vld [vmem:[%s5 + $0x6c4] sm:$0xf]
    %v3008 = vld [vmem:[%s5 + $0x6c8] sm:$0xff]
    %v3009 = vld [vmem:[%s5 + $0x6d0] sm:$0xff]
    %v3010 = vld [vmem:[%s5 + $0x6d8] sm:$0xff]
    %v3011 = vld [vmem:[%s5 + $0x6e0] sm:$0xf]
    %v3012 = vld [vmem:[%s5 + $0x6e4] sm:$0xff]
    %v3013 = vld [vmem:[%s5 + $0x6ec] sm:$0xff]
    %v3014 = vld [vmem:[%s5 + $0x6f4] sm:$0xff]
    %v3015 = vld [vmem:[%s5 + $0x6fc] sm:$0xf]
    %v3272 = vunpack.c.l.b16 %v2760
    %v3273 = vunpack.c.h.b16 %v2760
    %v3274 = vunpack.c.l.b16 %v2761
    %v3275 = vunpack.c.h.b16 %v2761
    %v3276 = vunpack.c.l.b16 %v2762
    %v3277 = vunpack.c.h.b16 %v2762
    %v3278 = vunpack.c.l.b16 %v2763
    %v3279 = vunpack.c.l.b16 %v2764
    %v3280 = vunpack.c.h.b16 %v2764
    %v3281 = vunpack.c.l.b16 %v2765
    %v3282 = vunpack.c.h.b16 %v2765
    %v3283 = vunpack.c.l.b16 %v2766
    %v3284 = vunpack.c.h.b16 %v2766
    %v3285 = vunpack.c.l.b16 %v2767
    %v3286 = vunpack.c.l.b16 %v2768
    %v3287 = vunpack.c.h.b16 %v2768
    %v3288 = vunpack.c.l.b16 %v2769
    %v3289 = vunpack.c.h.b16 %v2769
    %v3290 = vunpack.c.l.b16 %v2770
    %v3291 = vunpack.c.h.b16 %v2770
    %v3292 = vunpack.c.l.b16 %v2771
    %v3293 = vunpack.c.l.b16 %v2772
    %v3294 = vunpack.c.h.b16 %v2772
    %v3295 = vunpack.c.l.b16 %v2773
    %v3296 = vunpack.c.h.b16 %v2773
    %v3297 = vunpack.c.l.b16 %v2774
    %v3298 = vunpack.c.h.b16 %v2774
    %v3299 = vunpack.c.l.b16 %v2775
    %v3300 = vunpack.c.l.b16 %v2776
    %v3301 = vunpack.c.h.b16 %v2776
    %v3302 = vunpack.c.l.b16 %v2777
    %v3303 = vunpack.c.h.b16 %v2777
    %v3304 = vunpack.c.l.b16 %v2778
    %v3305 = vunpack.c.h.b16 %v2778
    %v3306 = vunpack.c.l.b16 %v2779
    %v3307 = vunpack.c.l.b16 %v2780
    %v3308 = vunpack.c.h.b16 %v2780
    %v3309 = vunpack.c.l.b16 %v2781
    %v3310 = vunpack.c.h.b16 %v2781
    %v3311 = vunpack.c.l.b16 %v2782
    %v3312 = vunpack.c.h.b16 %v2782
    %v3313 = vunpack.c.l.b16 %v2783
    %v3314 = vunpack.c.l.b16 %v2784
    %v3315 = vunpack.c.h.b16 %v2784
    %v3316 = vunpack.c.l.b16 %v2785
    %v3317 = vunpack.c.h.b16 %v2785
    %v3318 = vunpack.c.l.b16 %v2786
    %v3319 = vunpack.c.h.b16 %v2786
    %v3320 = vunpack.c.l.b16 %v2787
    %v3321 = vunpack.c.l.b16 %v2788
    %v3322 = vunpack.c.h.b16 %v2788
    %v3323 = vunpack.c.l.b16 %v2789
    %v3324 = vunpack.c.h.b16 %v2789
    %v3325 = vunpack.c.l.b16 %v2790
    %v3326 = vunpack.c.h.b16 %v2790
    %v3327 = vunpack.c.l.b16 %v2791
    %v3328 = vunpack.c.l.b16 %v2792
    %v3329 = vunpack.c.h.b16 %v2792
    %v3330 = vunpack.c.l.b16 %v2793
    %v3331 = vunpack.c.h.b16 %v2793
    %v3332 = vunpack.c.l.b16 %v2794
    %v3333 = vunpack.c.h.b16 %v2794
    %v3334 = vunpack.c.l.b16 %v2795
    %v3335 = vunpack.c.l.b16 %v2796
    %v3336 = vunpack.c.h.b16 %v2796
    %v3337 = vunpack.c.l.b16 %v2797
    %v3338 = vunpack.c.h.b16 %v2797
    %v3339 = vunpack.c.l.b16 %v2798
    %v3340 = vunpack.c.h.b16 %v2798
    %v3341 = vunpack.c.l.b16 %v2799
    %v3342 = vunpack.c.l.b16 %v2800
    %v3343 = vunpack.c.h.b16 %v2800
    %v3344 = vunpack.c.l.b16 %v2801
    %v3345 = vunpack.c.h.b16 %v2801
    %v3346 = vunpack.c.l.b16 %v2802
    %v3347 = vunpack.c.h.b16 %v2802
    %v3348 = vunpack.c.l.b16 %v2803
    %v3349 = vunpack.c.l.b16 %v2804
    %v3350 = vunpack.c.h.b16 %v2804
    %v3351 = vunpack.c.l.b16 %v2805
    %v3352 = vunpack.c.h.b16 %v2805
    %v3353 = vunpack.c.l.b16 %v2806
    %v3354 = vunpack.c.h.b16 %v2806
    %v3355 = vunpack.c.l.b16 %v2807
    %v3356 = vunpack.c.l.b16 %v2808
    %v3357 = vunpack.c.h.b16 %v2808
    %v3358 = vunpack.c.l.b16 %v2809
    %v3359 = vunpack.c.h.b16 %v2809
    %v3360 = vunpack.c.l.b16 %v2810
    %v3361 = vunpack.c.h.b16 %v2810
    %v3362 = vunpack.c.l.b16 %v2811
    %v3363 = vunpack.c.l.b16 %v2812
    %v3364 = vunpack.c.h.b16 %v2812
    %v3365 = vunpack.c.l.b16 %v2813
    %v3366 = vunpack.c.h.b16 %v2813
    %v3367 = vunpack.c.l.b16 %v2814
    %v3368 = vunpack.c.h.b16 %v2814
    %v3369 = vunpack.c.l.b16 %v2815
    %v3370 = vunpack.c.l.b16 %v2816
    %v3371 = vunpack.c.h.b16 %v2816
    %v3372 = vunpack.c.l.b16 %v2817
    %v3373 = vunpack.c.h.b16 %v2817
    %v3374 = vunpack.c.l.b16 %v2818
    %v3375 = vunpack.c.h.b16 %v2818
    %v3376 = vunpack.c.l.b16 %v2819
    %v3377 = vunpack.c.l.b16 %v2820
    %v3378 = vunpack.c.h.b16 %v2820
    %v3379 = vunpack.c.l.b16 %v2821
    %v3380 = vunpack.c.h.b16 %v2821
    %v3381 = vunpack.c.l.b16 %v2822
    %v3382 = vunpack.c.h.b16 %v2822
    %v3383 = vunpack.c.l.b16 %v2823
    %v3384 = vunpack.c.l.b16 %v2824
    %v3385 = vunpack.c.h.b16 %v2824
    %v3386 = vunpack.c.l.b16 %v2825
    %v3387 = vunpack.c.h.b16 %v2825
    %v3388 = vunpack.c.l.b16 %v2826
    %v3389 = vunpack.c.h.b16 %v2826
    %v3390 = vunpack.c.l.b16 %v2827
    %v3391 = vunpack.c.l.b16 %v2828
    %v3392 = vunpack.c.h.b16 %v2828
    %v3393 = vunpack.c.l.b16 %v2829
    %v3394 = vunpack.c.h.b16 %v2829
    %v3395 = vunpack.c.l.b16 %v2830
    %v3396 = vunpack.c.h.b16 %v2830
    %v3397 = vunpack.c.l.b16 %v2831
    %v3398 = vunpack.c.l.b16 %v2832
    %v3399 = vunpack.c.h.b16 %v2832
    %v3400 = vunpack.c.l.b16 %v2833
    %v3401 = vunpack.c.h.b16 %v2833
    %v3402 = vunpack.c.l.b16 %v2834
    %v3403 = vunpack.c.h.b16 %v2834
    %v3404 = vunpack.c.l.b16 %v2835
    %v3405 = vunpack.c.l.b16 %v2836
    %v3406 = vunpack.c.h.b16 %v2836
    %v3407 = vunpack.c.l.b16 %v2837
    %v3408 = vunpack.c.h.b16 %v2837
    %v3409 = vunpack.c.l.b16 %v2838
    %v3410 = vunpack.c.h.b16 %v2838
    %v3411 = vunpack.c.l.b16 %v2839
    %v3412 = vunpack.c.l.b16 %v2840
    %v3413 = vunpack.c.h.b16 %v2840
    %v3414 = vunpack.c.l.b16 %v2841
    %v3415 = vunpack.c.h.b16 %v2841
    %v3416 = vunpack.c.l.b16 %v2842
    %v3417 = vunpack.c.h.b16 %v2842
    %v3418 = vunpack.c.l.b16 %v2843
    %v3419 = vunpack.c.l.b16 %v2844
    %v3420 = vunpack.c.h.b16 %v2844
    %v3421 = vunpack.c.l.b16 %v2845
    %v3422 = vunpack.c.h.b16 %v2845
    %v3423 = vunpack.c.l.b16 %v2846
    %v3424 = vunpack.c.h.b16 %v2846
    %v3425 = vunpack.c.l.b16 %v2847
    %v3426 = vunpack.c.l.b16 %v2848
    %v3427 = vunpack.c.h.b16 %v2848
    %v3428 = vunpack.c.l.b16 %v2849
    %v3429 = vunpack.c.h.b16 %v2849
    %v3430 = vunpack.c.l.b16 %v2850
    %v3431 = vunpack.c.h.b16 %v2850
    %v3432 = vunpack.c.l.b16 %v2851
    %v3433 = vunpack.c.l.b16 %v2852
    %v3434 = vunpack.c.h.b16 %v2852
    %v3435 = vunpack.c.l.b16 %v2853
    %v3436 = vunpack.c.h.b16 %v2853
    %v3437 = vunpack.c.l.b16 %v2854
    %v3438 = vunpack.c.h.b16 %v2854
    %v3439 = vunpack.c.l.b16 %v2855
    %v3440 = vunpack.c.l.b16 %v2856
    %v3441 = vunpack.c.h.b16 %v2856
    %v3442 = vunpack.c.l.b16 %v2857
    %v3443 = vunpack.c.h.b16 %v2857
    %v3444 = vunpack.c.l.b16 %v2858
    %v3445 = vunpack.c.h.b16 %v2858
    %v3446 = vunpack.c.l.b16 %v2859
    %v3447 = vunpack.c.l.b16 %v2860
    %v3448 = vunpack.c.h.b16 %v2860
    %v3449 = vunpack.c.l.b16 %v2861
    %v3450 = vunpack.c.h.b16 %v2861
    %v3451 = vunpack.c.l.b16 %v2862
    %v3452 = vunpack.c.h.b16 %v2862
    %v3453 = vunpack.c.l.b16 %v2863
    %v3454 = vunpack.c.l.b16 %v2864
    %v3455 = vunpack.c.h.b16 %v2864
    %v3456 = vunpack.c.l.b16 %v2865
    %v3457 = vunpack.c.h.b16 %v2865
    %v3458 = vunpack.c.l.b16 %v2866
    %v3459 = vunpack.c.h.b16 %v2866
    %v3460 = vunpack.c.l.b16 %v2867
    %v3461 = vunpack.c.l.b16 %v2868
    %v3462 = vunpack.c.h.b16 %v2868
    %v3463 = vunpack.c.l.b16 %v2869
    %v3464 = vunpack.c.h.b16 %v2869
    %v3465 = vunpack.c.l.b16 %v2870
    %v3466 = vunpack.c.h.b16 %v2870
    %v3467 = vunpack.c.l.b16 %v2871
    %v3468 = vunpack.c.l.b16 %v2872
    %v3469 = vunpack.c.h.b16 %v2872
    %v3470 = vunpack.c.l.b16 %v2873
    %v3471 = vunpack.c.h.b16 %v2873
    %v3472 = vunpack.c.l.b16 %v2874
    %v3473 = vunpack.c.h.b16 %v2874
    %v3474 = vunpack.c.l.b16 %v2875
    %v3475 = vunpack.c.l.b16 %v2876
    %v3476 = vunpack.c.h.b16 %v2876
    %v3477 = vunpack.c.l.b16 %v2877
    %v3478 = vunpack.c.h.b16 %v2877
    %v3479 = vunpack.c.l.b16 %v2878
    %v3480 = vunpack.c.h.b16 %v2878
    %v3481 = vunpack.c.l.b16 %v2879
    %v3482 = vunpack.c.l.b16 %v2880
    %v3483 = vunpack.c.h.b16 %v2880
    %v3484 = vunpack.c.l.b16 %v2881
    %v3485 = vunpack.c.h.b16 %v2881
    %v3486 = vunpack.c.l.b16 %v2882
    %v3487 = vunpack.c.h.b16 %v2882
    %v3488 = vunpack.c.l.b16 %v2883
    %v3489 = vunpack.c.l.b16 %v2884
    %v3490 = vunpack.c.h.b16 %v2884
    %v3491 = vunpack.c.l.b16 %v2885
    %v3492 = vunpack.c.h.b16 %v2885
    %v3493 = vunpack.c.l.b16 %v2886
    %v3494 = vunpack.c.h.b16 %v2886
    %v3495 = vunpack.c.l.b16 %v2887
    %v3496 = vunpack.c.l.b16 %v2888
    %v3497 = vunpack.c.h.b16 %v2888
    %v3498 = vunpack.c.l.b16 %v2889
    %v3499 = vunpack.c.h.b16 %v2889
    %v3500 = vunpack.c.l.b16 %v2890
    %v3501 = vunpack.c.h.b16 %v2890
    %v3502 = vunpack.c.l.b16 %v2891
    %v3503 = vunpack.c.l.b16 %v2892
    %v3504 = vunpack.c.h.b16 %v2892
    %v3505 = vunpack.c.l.b16 %v2893
    %v3506 = vunpack.c.h.b16 %v2893
    %v3507 = vunpack.c.l.b16 %v2894
    %v3508 = vunpack.c.h.b16 %v2894
    %v3509 = vunpack.c.l.b16 %v2895
    %v3510 = vunpack.c.l.b16 %v2896
    %v3511 = vunpack.c.h.b16 %v2896
    %v3512 = vunpack.c.l.b16 %v2897
    %v3513 = vunpack.c.h.b16 %v2897
    %v3514 = vunpack.c.l.b16 %v2898
    %v3515 = vunpack.c.h.b16 %v2898
    %v3516 = vunpack.c.l.b16 %v2899
    %v3517 = vunpack.c.l.b16 %v2900
    %v3518 = vunpack.c.h.b16 %v2900
    %v3519 = vunpack.c.l.b16 %v2901
    %v3520 = vunpack.c.h.b16 %v2901
    %v3521 = vunpack.c.l.b16 %v2902
    %v3522 = vunpack.c.h.b16 %v2902
    %v3523 = vunpack.c.l.b16 %v2903
    %v3524 = vunpack.c.l.b16 %v2904
    %v3525 = vunpack.c.h.b16 %v2904
    %v3526 = vunpack.c.l.b16 %v2905
    %v3527 = vunpack.c.h.b16 %v2905
    %v3528 = vunpack.c.l.b16 %v2906
    %v3529 = vunpack.c.h.b16 %v2906
    %v3530 = vunpack.c.l.b16 %v2907
    %v3531 = vunpack.c.l.b16 %v2908
    %v3532 = vunpack.c.h.b16 %v2908
    %v3533 = vunpack.c.l.b16 %v2909
    %v3534 = vunpack.c.h.b16 %v2909
    %v3535 = vunpack.c.l.b16 %v2910
    %v3536 = vunpack.c.h.b16 %v2910
    %v3537 = vunpack.c.l.b16 %v2911
    %v3538 = vunpack.c.l.b16 %v2912
    %v3539 = vunpack.c.h.b16 %v2912
    %v3540 = vunpack.c.l.b16 %v2913
    %v3541 = vunpack.c.h.b16 %v2913
    %v3542 = vunpack.c.l.b16 %v2914
    %v3543 = vunpack.c.h.b16 %v2914
    %v3544 = vunpack.c.l.b16 %v2915
    %v3545 = vunpack.c.l.b16 %v2916
    %v3546 = vunpack.c.h.b16 %v2916
    %v3547 = vunpack.c.l.b16 %v2917
    %v3548 = vunpack.c.h.b16 %v2917
    %v3549 = vunpack.c.l.b16 %v2918
    %v3550 = vunpack.c.h.b16 %v2918
    %v3551 = vunpack.c.l.b16 %v2919
    %v3552 = vunpack.c.l.b16 %v2920
    %v3553 = vunpack.c.h.b16 %v2920
    %v3554 = vunpack.c.l.b16 %v2921
    %v3555 = vunpack.c.h.b16 %v2921
    %v3556 = vunpack.c.l.b16 %v2922
    %v3557 = vunpack.c.h.b16 %v2922
    %v3558 = vunpack.c.l.b16 %v2923
    %v3559 = vunpack.c.l.b16 %v2924
    %v3560 = vunpack.c.h.b16 %v2924
    %v3561 = vunpack.c.l.b16 %v2925
    %v3562 = vunpack.c.h.b16 %v2925
    %v3563 = vunpack.c.l.b16 %v2926
    %v3564 = vunpack.c.h.b16 %v2926
    %v3565 = vunpack.c.l.b16 %v2927
    %v3566 = vunpack.c.l.b16 %v2928
    %v3567 = vunpack.c.h.b16 %v2928
    %v3568 = vunpack.c.l.b16 %v2929
    %v3569 = vunpack.c.h.b16 %v2929
    %v3570 = vunpack.c.l.b16 %v2930
    %v3571 = vunpack.c.h.b16 %v2930
    %v3572 = vunpack.c.l.b16 %v2931
    %v3573 = vunpack.c.l.b16 %v2932
    %v3574 = vunpack.c.h.b16 %v2932
    %v3575 = vunpack.c.l.b16 %v2933
    %v3576 = vunpack.c.h.b16 %v2933
    %v3577 = vunpack.c.l.b16 %v2934
    %v3578 = vunpack.c.h.b16 %v2934
    %v3579 = vunpack.c.l.b16 %v2935
    %v3580 = vunpack.c.l.b16 %v2936
    %v3581 = vunpack.c.h.b16 %v2936
    %v3582 = vunpack.c.l.b16 %v2937
    %v3583 = vunpack.c.h.b16 %v2937
    %v3584 = vunpack.c.l.b16 %v2938
    %v3585 = vunpack.c.h.b16 %v2938
    %v3586 = vunpack.c.l.b16 %v2939
    %v3587 = vunpack.c.l.b16 %v2940
    %v3588 = vunpack.c.h.b16 %v2940
    %v3589 = vunpack.c.l.b16 %v2941
    %v3590 = vunpack.c.h.b16 %v2941
    %v3591 = vunpack.c.l.b16 %v2942
    %v3592 = vunpack.c.h.b16 %v2942
    %v3593 = vunpack.c.l.b16 %v2943
    %v3594 = vunpack.c.l.b16 %v2944
    %v3595 = vunpack.c.h.b16 %v2944
    %v3596 = vunpack.c.l.b16 %v2945
    %v3597 = vunpack.c.h.b16 %v2945
    %v3598 = vunpack.c.l.b16 %v2946
    %v3599 = vunpack.c.h.b16 %v2946
    %v3600 = vunpack.c.l.b16 %v2947
    %v3601 = vunpack.c.l.b16 %v2948
    %v3602 = vunpack.c.h.b16 %v2948
    %v3603 = vunpack.c.l.b16 %v2949
    %v3604 = vunpack.c.h.b16 %v2949
    %v3605 = vunpack.c.l.b16 %v2950
    %v3606 = vunpack.c.h.b16 %v2950
    %v3607 = vunpack.c.l.b16 %v2951
    %v3608 = vunpack.c.l.b16 %v2952
    %v3609 = vunpack.c.h.b16 %v2952
    %v3610 = vunpack.c.l.b16 %v2953
    %v3611 = vunpack.c.h.b16 %v2953
    %v3612 = vunpack.c.l.b16 %v2954
    %v3613 = vunpack.c.h.b16 %v2954
    %v3614 = vunpack.c.l.b16 %v2955
    %v3615 = vunpack.c.l.b16 %v2956
    %v3616 = vunpack.c.h.b16 %v2956
    %v3617 = vunpack.c.l.b16 %v2957
    %v3618 = vunpack.c.h.b16 %v2957
    %v3619 = vunpack.c.l.b16 %v2958
    %v3620 = vunpack.c.h.b16 %v2958
    %v3621 = vunpack.c.l.b16 %v2959
    %v3622 = vunpack.c.l.b16 %v2960
    %v3623 = vunpack.c.h.b16 %v2960
    %v3624 = vunpack.c.l.b16 %v2961
    %v3625 = vunpack.c.h.b16 %v2961
    %v3626 = vunpack.c.l.b16 %v2962
    %v3627 = vunpack.c.h.b16 %v2962
    %v3628 = vunpack.c.l.b16 %v2963
    %v3629 = vunpack.c.l.b16 %v2964
    %v3630 = vunpack.c.h.b16 %v2964
    %v3631 = vunpack.c.l.b16 %v2965
    %v3632 = vunpack.c.h.b16 %v2965
    %v3633 = vunpack.c.l.b16 %v2966
    %v3634 = vunpack.c.h.b16 %v2966
    %v3635 = vunpack.c.l.b16 %v2967
    %v3636 = vunpack.c.l.b16 %v2968
    %v3637 = vunpack.c.h.b16 %v2968
    %v3638 = vunpack.c.l.b16 %v2969
    %v3639 = vunpack.c.h.b16 %v2969
    %v3640 = vunpack.c.l.b16 %v2970
    %v3641 = vunpack.c.h.b16 %v2970
    %v3642 = vunpack.c.l.b16 %v2971
    %v3643 = vunpack.c.l.b16 %v2972
    %v3644 = vunpack.c.h.b16 %v2972
    %v3645 = vunpack.c.l.b16 %v2973
    %v3646 = vunpack.c.h.b16 %v2973
    %v3647 = vunpack.c.l.b16 %v2974
    %v3648 = vunpack.c.h.b16 %v2974
    %v3649 = vunpack.c.l.b16 %v2975
    %v3650 = vunpack.c.l.b16 %v2976
    %v3651 = vunpack.c.h.b16 %v2976
    %v3652 = vunpack.c.l.b16 %v2977
    %v3653 = vunpack.c.h.b16 %v2977
    %v3654 = vunpack.c.l.b16 %v2978
    %v3655 = vunpack.c.h.b16 %v2978
    %v3656 = vunpack.c.l.b16 %v2979
    %v3657 = vunpack.c.l.b16 %v2980
    %v3658 = vunpack.c.h.b16 %v2980
    %v3659 = vunpack.c.l.b16 %v2981
    %v3660 = vunpack.c.h.b16 %v2981
    %v3661 = vunpack.c.l.b16 %v2982
    %v3662 = vunpack.c.h.b16 %v2982
    %v3663 = vunpack.c.l.b16 %v2983
    %v3664 = vunpack.c.l.b16 %v2984
    %v3665 = vunpack.c.h.b16 %v2984
    %v3666 = vunpack.c.l.b16 %v2985
    %v3667 = vunpack.c.h.b16 %v2985
    %v3668 = vunpack.c.l.b16 %v2986
    %v3669 = vunpack.c.h.b16 %v2986
    %v3670 = vunpack.c.l.b16 %v2987
    %v3671 = vunpack.c.l.b16 %v2988
    %v3672 = vunpack.c.h.b16 %v2988
    %v3673 = vunpack.c.l.b16 %v2989
    %v3674 = vunpack.c.h.b16 %v2989
    %v3675 = vunpack.c.l.b16 %v2990
    %v3676 = vunpack.c.h.b16 %v2990
    %v3677 = vunpack.c.l.b16 %v2991
    %v3678 = vunpack.c.l.b16 %v2992
    %v3679 = vunpack.c.h.b16 %v2992
    %v3680 = vunpack.c.l.b16 %v2993
    %v3681 = vunpack.c.h.b16 %v2993
    %v3682 = vunpack.c.l.b16 %v2994
    %v3683 = vunpack.c.h.b16 %v2994
    %v3684 = vunpack.c.l.b16 %v2995
    %v3685 = vunpack.c.l.b16 %v2996
    %v3686 = vunpack.c.h.b16 %v2996
    %v3687 = vunpack.c.l.b16 %v2997
    %v3688 = vunpack.c.h.b16 %v2997
    %v3689 = vunpack.c.l.b16 %v2998
    %v3690 = vunpack.c.h.b16 %v2998
    %v3691 = vunpack.c.l.b16 %v2999
    %v3692 = vunpack.c.l.b16 %v3000
    %v3693 = vunpack.c.h.b16 %v3000
    %v3694 = vunpack.c.l.b16 %v3001
    %v3695 = vunpack.c.h.b16 %v3001
    %v3696 = vunpack.c.l.b16 %v3002
    %v3697 = vunpack.c.h.b16 %v3002
    %v3698 = vunpack.c.l.b16 %v3003
    %v3699 = vunpack.c.l.b16 %v3004
    %v3700 = vunpack.c.h.b16 %v3004
    %v3701 = vunpack.c.l.b16 %v3005
    %v3702 = vunpack.c.h.b16 %v3005
    %v3703 = vunpack.c.l.b16 %v3006
    %v3704 = vunpack.c.h.b16 %v3006
    %v3705 = vunpack.c.l.b16 %v3007
    %v3706 = vunpack.c.l.b16 %v3008
    %v3707 = vunpack.c.h.b16 %v3008
    %v3708 = vunpack.c.l.b16 %v3009
    %v3709 = vunpack.c.h.b16 %v3009
    %v3710 = vunpack.c.l.b16 %v3010
    %v3711 = vunpack.c.h.b16 %v3010
    %v3712 = vunpack.c.l.b16 %v3011
    %v3713 = vunpack.c.l.b16 %v3012
    %v3714 = vunpack.c.h.b16 %v3012
    %v3715 = vunpack.c.l.b16 %v3013
    %v3716 = vunpack.c.h.b16 %v3013
    %v3717 = vunpack.c.l.b16 %v3014
    %v3718 = vunpack.c.h.b16 %v3014
    %v3719 = vunpack.c.l.b16 %v3015
    %v3720 = vpack.c.b16 %v3279, %v3272
    %v3721 = vpack.c.b16 %v3280, %v3273
    %v3722 = vpack.c.b16 %v3281, %v3274
    %v3723 = vpack.c.b16 %v3282, %v3275
    %v3724 = vpack.c.b16 %v3283, %v3276
    %v3725 = vpack.c.b16 %v3284, %v3277
    %v3726 = vpack.c.b16 %v3285, %v3278
    %v3727 = vpack.c.b16 %v3293, %v3286
    %v3728 = vpack.c.b16 %v3294, %v3287
    %v3729 = vpack.c.b16 %v3295, %v3288
    %v3730 = vpack.c.b16 %v3296, %v3289
    %v3731 = vpack.c.b16 %v3297, %v3290
    %v3732 = vpack.c.b16 %v3298, %v3291
    %v3733 = vpack.c.b16 %v3299, %v3292
    %v3734 = vpack.c.b16 %v3307, %v3300
    %v3735 = vpack.c.b16 %v3308, %v3301
    %v3736 = vpack.c.b16 %v3309, %v3302
    %v3737 = vpack.c.b16 %v3310, %v3303
    %v3738 = vpack.c.b16 %v3311, %v3304
    %v3739 = vpack.c.b16 %v3312, %v3305
    %v3740 = vpack.c.b16 %v3313, %v3306
    %v3741 = vpack.c.b16 %v3321, %v3314
    %v3742 = vpack.c.b16 %v3322, %v3315
    %v3743 = vpack.c.b16 %v3323, %v3316
    %v3744 = vpack.c.b16 %v3324, %v3317
    %v3745 = vpack.c.b16 %v3325, %v3318
    %v3746 = vpack.c.b16 %v3326, %v3319
    %v3747 = vpack.c.b16 %v3327, %v3320
    %v3748 = vpack.c.b16 %v3335, %v3328
    %v3749 = vpack.c.b16 %v3336, %v3329
    %v3750 = vpack.c.b16 %v3337, %v3330
    %v3751 = vpack.c.b16 %v3338, %v3331
    %v3752 = vpack.c.b16 %v3339, %v3332
    %v3753 = vpack.c.b16 %v3340, %v3333
    %v3754 = vpack.c.b16 %v3341, %v3334
    %v3755 = vpack.c.b16 %v3349, %v3342
    %v3756 = vpack.c.b16 %v3350, %v3343
    %v3757 = vpack.c.b16 %v3351, %v3344
    %v3758 = vpack.c.b16 %v3352, %v3345
    %v3759 = vpack.c.b16 %v3353, %v3346
    %v3760 = vpack.c.b16 %v3354, %v3347
    %v3761 = vpack.c.b16 %v3355, %v3348
    %v3762 = vpack.c.b16 %v3363, %v3356
    %v3763 = vpack.c.b16 %v3364, %v3357
    %v3764 = vpack.c.b16 %v3365, %v3358
    %v3765 = vpack.c.b16 %v3366, %v3359
    %v3766 = vpack.c.b16 %v3367, %v3360
    %v3767 = vpack.c.b16 %v3368, %v3361
    %v3768 = vpack.c.b16 %v3369, %v3362
    %v3769 = vpack.c.b16 %v3377, %v3370
    %v3770 = vpack.c.b16 %v3378, %v3371
    %v3771 = vpack.c.b16 %v3379, %v3372
    %v3772 = vpack.c.b16 %v3380, %v3373
    %v3773 = vpack.c.b16 %v3381, %v3374
    %v3774 = vpack.c.b16 %v3382, %v3375
    %v3775 = vpack.c.b16 %v3383, %v3376
    %v3776 = vpack.c.b16 %v3391, %v3384
    %v3777 = vpack.c.b16 %v3392, %v3385
    %v3778 = vpack.c.b16 %v3393, %v3386
    %v3779 = vpack.c.b16 %v3394, %v3387
    %v3780 = vpack.c.b16 %v3395, %v3388
    %v3781 = vpack.c.b16 %v3396, %v3389
    %v3782 = vpack.c.b16 %v3397, %v3390
    %v3783 = vpack.c.b16 %v3405, %v3398
    %v3784 = vpack.c.b16 %v3406, %v3399
    %v3785 = vpack.c.b16 %v3407, %v3400
    %v3786 = vpack.c.b16 %v3408, %v3401
    %v3787 = vpack.c.b16 %v3409, %v3402
    %v3788 = vpack.c.b16 %v3410, %v3403
    %v3789 = vpack.c.b16 %v3411, %v3404
    %v3790 = vpack.c.b16 %v3419, %v3412
    %v3791 = vpack.c.b16 %v3420, %v3413
    %v3792 = vpack.c.b16 %v3421, %v3414
    %v3793 = vpack.c.b16 %v3422, %v3415
    %v3794 = vpack.c.b16 %v3423, %v3416
    %v3795 = vpack.c.b16 %v3424, %v3417
    %v3796 = vpack.c.b16 %v3425, %v3418
    %v3797 = vpack.c.b16 %v3433, %v3426
    %v3798 = vpack.c.b16 %v3434, %v3427
    %v3799 = vpack.c.b16 %v3435, %v3428
    %v3800 = vpack.c.b16 %v3436, %v3429
    %v3801 = vpack.c.b16 %v3437, %v3430
    %v3802 = vpack.c.b16 %v3438, %v3431
    %v3803 = vpack.c.b16 %v3439, %v3432
    %v3804 = vpack.c.b16 %v3447, %v3440
    %v3805 = vpack.c.b16 %v3448, %v3441
    %v3806 = vpack.c.b16 %v3449, %v3442
    %v3807 = vpack.c.b16 %v3450, %v3443
    %v3808 = vpack.c.b16 %v3451, %v3444
    %v3809 = vpack.c.b16 %v3452, %v3445
    %v3810 = vpack.c.b16 %v3453, %v3446
    %v3811 = vpack.c.b16 %v3461, %v3454
    %v3812 = vpack.c.b16 %v3462, %v3455
    %v3813 = vpack.c.b16 %v3463, %v3456
    %v3814 = vpack.c.b16 %v3464, %v3457
    %v3815 = vpack.c.b16 %v3465, %v3458
    %v3816 = vpack.c.b16 %v3466, %v3459
    %v3817 = vpack.c.b16 %v3467, %v3460
    %v3818 = vpack.c.b16 %v3475, %v3468
    %v3819 = vpack.c.b16 %v3476, %v3469
    %v3820 = vpack.c.b16 %v3477, %v3470
    %v3821 = vpack.c.b16 %v3478, %v3471
    %v3822 = vpack.c.b16 %v3479, %v3472
    %v3823 = vpack.c.b16 %v3480, %v3473
    %v3824 = vpack.c.b16 %v3481, %v3474
    %v3825 = vpack.c.b16 %v3489, %v3482
    %v3826 = vpack.c.b16 %v3490, %v3483
    %v3827 = vpack.c.b16 %v3491, %v3484
    %v3828 = vpack.c.b16 %v3492, %v3485
    %v3829 = vpack.c.b16 %v3493, %v3486
    %v3830 = vpack.c.b16 %v3494, %v3487
    %v3831 = vpack.c.b16 %v3495, %v3488
    %v3832 = vpack.c.b16 %v3503, %v3496
    %v3833 = vpack.c.b16 %v3504, %v3497
    %v3834 = vpack.c.b16 %v3505, %v3498
    %v3835 = vpack.c.b16 %v3506, %v3499
    %v3836 = vpack.c.b16 %v3507, %v3500
    %v3837 = vpack.c.b16 %v3508, %v3501
    %v3838 = vpack.c.b16 %v3509, %v3502
    %v3839 = vpack.c.b16 %v3517, %v3510
    %v3840 = vpack.c.b16 %v3518, %v3511
    %v3841 = vpack.c.b16 %v3519, %v3512
    %v3842 = vpack.c.b16 %v3520, %v3513
    %v3843 = vpack.c.b16 %v3521, %v3514
    %v3844 = vpack.c.b16 %v3522, %v3515
    %v3845 = vpack.c.b16 %v3523, %v3516
    %v3846 = vpack.c.b16 %v3531, %v3524
    %v3847 = vpack.c.b16 %v3532, %v3525
    %v3848 = vpack.c.b16 %v3533, %v3526
    %v3849 = vpack.c.b16 %v3534, %v3527
    %v3850 = vpack.c.b16 %v3535, %v3528
    %v3851 = vpack.c.b16 %v3536, %v3529
    %v3852 = vpack.c.b16 %v3537, %v3530
    %v3853 = vpack.c.b16 %v3545, %v3538
    %v3854 = vpack.c.b16 %v3546, %v3539
    %v3855 = vpack.c.b16 %v3547, %v3540
    %v3856 = vpack.c.b16 %v3548, %v3541
    %v3857 = vpack.c.b16 %v3549, %v3542
    %v3858 = vpack.c.b16 %v3550, %v3543
    %v3859 = vpack.c.b16 %v3551, %v3544
    %v3860 = vpack.c.b16 %v3559, %v3552
    %v3861 = vpack.c.b16 %v3560, %v3553
    %v3862 = vpack.c.b16 %v3561, %v3554
    %v3863 = vpack.c.b16 %v3562, %v3555
    %v3864 = vpack.c.b16 %v3563, %v3556
    %v3865 = vpack.c.b16 %v3564, %v3557
    %v3866 = vpack.c.b16 %v3565, %v3558
    %v3867 = vpack.c.b16 %v3573, %v3566
    %v3868 = vpack.c.b16 %v3574, %v3567
    %v3869 = vpack.c.b16 %v3575, %v3568
    %v3870 = vpack.c.b16 %v3576, %v3569
    %v3871 = vpack.c.b16 %v3577, %v3570
    %v3872 = vpack.c.b16 %v3578, %v3571
    %v3873 = vpack.c.b16 %v3579, %v3572
    %v3874 = vpack.c.b16 %v3587, %v3580
    %v3875 = vpack.c.b16 %v3588, %v3581
    %v3876 = vpack.c.b16 %v3589, %v3582
    %v3877 = vpack.c.b16 %v3590, %v3583
    %v3878 = vpack.c.b16 %v3591, %v3584
    %v3879 = vpack.c.b16 %v3592, %v3585
    %v3880 = vpack.c.b16 %v3593, %v3586
    %v3881 = vpack.c.b16 %v3601, %v3594
    %v3882 = vpack.c.b16 %v3602, %v3595
    %v3883 = vpack.c.b16 %v3603, %v3596
    %v3884 = vpack.c.b16 %v3604, %v3597
    %v3885 = vpack.c.b16 %v3605, %v3598
    %v3886 = vpack.c.b16 %v3606, %v3599
    %v3887 = vpack.c.b16 %v3607, %v3600
    %v3888 = vpack.c.b16 %v3615, %v3608
    %v3889 = vpack.c.b16 %v3616, %v3609
    %v3890 = vpack.c.b16 %v3617, %v3610
    %v3891 = vpack.c.b16 %v3618, %v3611
    %v3892 = vpack.c.b16 %v3619, %v3612
    %v3893 = vpack.c.b16 %v3620, %v3613
    %v3894 = vpack.c.b16 %v3621, %v3614
    %v3895 = vpack.c.b16 %v3629, %v3622
    %v3896 = vpack.c.b16 %v3630, %v3623
    %v3897 = vpack.c.b16 %v3631, %v3624
    %v3898 = vpack.c.b16 %v3632, %v3625
    %v3899 = vpack.c.b16 %v3633, %v3626
    %v3900 = vpack.c.b16 %v3634, %v3627
    %v3901 = vpack.c.b16 %v3635, %v3628
    %v3902 = vpack.c.b16 %v3643, %v3636
    %v3903 = vpack.c.b16 %v3644, %v3637
    %v3904 = vpack.c.b16 %v3645, %v3638
    %v3905 = vpack.c.b16 %v3646, %v3639
    %v3906 = vpack.c.b16 %v3647, %v3640
    %v3907 = vpack.c.b16 %v3648, %v3641
    %v3908 = vpack.c.b16 %v3649, %v3642
    %v3909 = vpack.c.b16 %v3657, %v3650
    %v3910 = vpack.c.b16 %v3658, %v3651
    %v3911 = vpack.c.b16 %v3659, %v3652
    %v3912 = vpack.c.b16 %v3660, %v3653
    %v3913 = vpack.c.b16 %v3661, %v3654
    %v3914 = vpack.c.b16 %v3662, %v3655
    %v3915 = vpack.c.b16 %v3663, %v3656
    %v3916 = vpack.c.b16 %v3671, %v3664
    %v3917 = vpack.c.b16 %v3672, %v3665
    %v3918 = vpack.c.b16 %v3673, %v3666
    %v3919 = vpack.c.b16 %v3674, %v3667
    %v3920 = vpack.c.b16 %v3675, %v3668
    %v3921 = vpack.c.b16 %v3676, %v3669
    %v3922 = vpack.c.b16 %v3677, %v3670
    %v3923 = vpack.c.b16 %v3685, %v3678
    %v3924 = vpack.c.b16 %v3686, %v3679
    %v3925 = vpack.c.b16 %v3687, %v3680
    %v3926 = vpack.c.b16 %v3688, %v3681
    %v3927 = vpack.c.b16 %v3689, %v3682
    %v3928 = vpack.c.b16 %v3690, %v3683
    %v3929 = vpack.c.b16 %v3691, %v3684
    %v3930 = vpack.c.b16 %v3699, %v3692
    %v3931 = vpack.c.b16 %v3700, %v3693
    %v3932 = vpack.c.b16 %v3701, %v3694
    %v3933 = vpack.c.b16 %v3702, %v3695
    %v3934 = vpack.c.b16 %v3703, %v3696
    %v3935 = vpack.c.b16 %v3704, %v3697
    %v3936 = vpack.c.b16 %v3705, %v3698
    %v3937 = vpack.c.b16 %v3713, %v3706
    %v3938 = vpack.c.b16 %v3714, %v3707
    %v3939 = vpack.c.b16 %v3715, %v3708
    %v3940 = vpack.c.b16 %v3716, %v3709
    %v3941 = vpack.c.b16 %v3717, %v3710
    %v3942 = vpack.c.b16 %v3718, %v3711
    %v3943 = vpack.c.b16 %v3719, %v3712
    %4168 = vmatprep.subr.bf16.mxu0 %v3721
    %4169 = vmatpush1.bf16.msra.mxu0 %v3720
    %4170 = vmatprep.subr.bf16.mxu0 %v3728
    %4171 = vmatpush1.bf16.msra.mxu0 %v3727
    %4172 = vmatprep.subr.bf16.mxu0 %v3735
    %4173 = vmatpush1.bf16.msra.mxu0 %v3734
    %4174 = vmatprep.subr.bf16.mxu0 %v3742
    %4175 = vmatpush1.bf16.msra.mxu0 %v3741
    %4176 = vmatprep.subr.bf16.mxu0 %v3749
    %4177 = vmatpush1.bf16.msra.mxu0 %v3748
    %4178 = vmatprep.subr.bf16.mxu0 %v3756
    %4179 = vmatpush1.bf16.msra.mxu0 %v3755
    %4180 = vmatprep.subr.bf16.mxu0 %v3763
    %4181 = vmatpush1.bf16.msra.mxu0 %v3762
    %4182 = vmatprep.subr.bf16.mxu0 %v3770
    %4183 = vmatpush1.bf16.msra.mxu0 %v3769
    %4184 = vmatprep.subr.bf16.mxu0 %v3777
    %4185 = vmatpush1.bf16.msra.mxu0 %v3776
    %4186 = vmatprep.subr.bf16.mxu0 %v3784
    %4187 = vmatpush1.bf16.msra.mxu0 %v3783
    %4188 = vmatprep.subr.bf16.mxu0 %v3791
    %4189 = vmatpush1.bf16.msra.mxu0 %v3790
    %4190 = vmatprep.subr.bf16.mxu0 %v3798
    %4191 = vmatpush1.bf16.msra.mxu0 %v3797
    %4192 = vmatprep.subr.bf16.mxu0 %v3805
    %4193 = vmatpush1.bf16.msra.mxu0 %v3804
    %4194 = vmatprep.subr.bf16.mxu0 %v3812
    %4195 = vmatpush1.bf16.msra.mxu0 %v3811
    %4196 = vmatprep.subr.bf16.mxu0 %v3819
    %4197 = vmatpush1.bf16.msra.mxu0 %v3818
    %4198 = vmatprep.subr.bf16.mxu0 %v3826
    %4199 = vmatpush1.bf16.msra.mxu0 %v3825
    %4200 = vmatprep.mubr.bf16.mxu0 %v2757
    %4201 = vmatmul.mubr.bf16.gmra.mrb[0].mxu0 %v2756
    %v4202 = vpop.f32.mrb[0].mxu0
    %v4203 = vadd.f32 0.0, %v4202
    %v4204 = vpop.f32.mrb[0].mxu0
    %v4205 = vadd.f32 0.0, %v4204
    %v4206 = vpop.f32.mrb[0].mxu0
    %v4207 = vpop.f32.mrb[0].mxu0
    %4208 = vdwg.mxu0
    %4209 = vmatprep.subr.bf16.mxu0 %v3833
    %4210 = vmatpush1.bf16.msra.mxu0 %v3832
    %4211 = vmatprep.subr.bf16.mxu0 %v3840
    %4212 = vmatpush1.bf16.msra.mxu0 %v3839
    %4213 = vmatprep.subr.bf16.mxu0 %v3847
    %4214 = vmatpush1.bf16.msra.mxu0 %v3846
    %4215 = vmatprep.subr.bf16.mxu0 %v3854
    %4216 = vmatpush1.bf16.msra.mxu0 %v3853
    %4217 = vmatprep.subr.bf16.mxu0 %v3861
    %4218 = vmatpush1.bf16.msra.mxu0 %v3860
    %4219 = vmatprep.subr.bf16.mxu0 %v3868
    %4220 = vmatpush1.bf16.msra.mxu0 %v3867
    %4221 = vmatprep.subr.bf16.mxu0 %v3875
    %4222 = vmatpush1.bf16.msra.mxu0 %v3874
    %4223 = vmatprep.subr.bf16.mxu0 %v3882
    %4224 = vmatpush1.bf16.msra.mxu0 %v3881
    %4225 = vmatprep.subr.bf16.mxu0 %v3889
    %4226 = vmatpush1.bf16.msra.mxu0 %v3888
    %4227 = vmatprep.subr.bf16.mxu0 %v3896
    %4228 = vmatpush1.bf16.msra.mxu0 %v3895
    %4229 = vmatprep.subr.bf16.mxu0 %v3903
    %4230 = vmatpush1.bf16.msra.mxu0 %v3902
    %4231 = vmatprep.subr.bf16.mxu0 %v3910
    %4232 = vmatpush1.bf16.msra.mxu0 %v3909
    %4233 = vmatprep.subr.bf16.mxu0 %v3917
    %4234 = vmatpush1.bf16.msra.mxu0 %v3916
    %4235 = vmatprep.subr.bf16.mxu0 %v3924
    %4236 = vmatpush1.bf16.msra.mxu0 %v3923
    %4237 = vmatprep.subr.bf16.mxu0 %v3931
    %4238 = vmatpush1.bf16.msra.mxu0 %v3930
    %4239 = vmatprep.subr.bf16.mxu0 %v3938
    %4240 = vmatpush1.bf16.msra.mxu0 %v3937
    %4241 = vmatprep.mubr.bf16.mxu0 %v2759
    %4242 = vmatmul.mubr.bf16.gmra.mrb[0].mxu0 %v2758
    %v4243 = vpop.f32.mrb[0].mxu0
    %v4244 = vadd.f32 %v4203, %v4243
    %v4245 = vpop.f32.mrb[0].mxu0
    %v4246 = vadd.f32 %v4205, %v4245
    %v4247 = vpop.f32.mrb[0].mxu0
    %v4248 = vpop.f32.mrb[0].mxu0
    %4249 = vdwg.mxu0
    %4250 = vmatprep.subr.bf16.mxu0 %v3723
    %4251 = vmatpush1.bf16.msra.mxu0 %v3722
    %4252 = vmatprep.subr.bf16.mxu0 %v3730
    %4253 = vmatpush1.bf16.msra.mxu0 %v3729
    %4254 = vmatprep.subr.bf16.mxu0 %v3737
    %4255 = vmatpush1.bf16.msra.mxu0 %v3736
    %4256 = vmatprep.subr.bf16.mxu0 %v3744
    %4257 = vmatpush1.bf16.msra.mxu0 %v3743
    %4258 = vmatprep.subr.bf16.mxu0 %v3751
    %4259 = vmatpush1.bf16.msra.mxu0 %v3750
    %4260 = vmatprep.subr.bf16.mxu0 %v3758
    %4261 = vmatpush1.bf16.msra.mxu0 %v3757
    %4262 = vmatprep.subr.bf16.mxu0 %v3765
    %4263 = vmatpush1.bf16.msra.mxu0 %v3764
    %4264 = vmatprep.subr.bf16.mxu0 %v3772
    %4265 = vmatpush1.bf16.msra.mxu0 %v3771
    %4266 = vmatprep.subr.bf16.mxu0 %v3779
    %4267 = vmatpush1.bf16.msra.mxu0 %v3778
    %4268 = vmatprep.subr.bf16.mxu0 %v3786
    %4269 = vmatpush1.bf16.msra.mxu0 %v3785
    %4270 = vmatprep.subr.bf16.mxu0 %v3793
    %4271 = vmatpush1.bf16.msra.mxu0 %v3792
    %4272 = vmatprep.subr.bf16.mxu0 %v3800
    %4273 = vmatpush1.bf16.msra.mxu0 %v3799
    %4274 = vmatprep.subr.bf16.mxu0 %v3807
    %4275 = vmatpush1.bf16.msra.mxu0 %v3806
    %4276 = vmatprep.subr.bf16.mxu0 %v3814
    %4277 = vmatpush1.bf16.msra.mxu0 %v3813
    %4278 = vmatprep.subr.bf16.mxu0 %v3821
    %4279 = vmatpush1.bf16.msra.mxu0 %v3820
    %4280 = vmatprep.subr.bf16.mxu0 %v3828
    %4281 = vmatpush1.bf16.msra.mxu0 %v3827
    %4282 = vmatprep.mubr.bf16.mxu0 %v2757
    %4283 = vmatmul.mubr.bf16.gmra.mrb[0].mxu0 %v2756
    %v4284 = vpop.f32.mrb[0].mxu0
    %v4285 = vadd.f32 0.0, %v4284
    %v4286 = vpop.f32.mrb[0].mxu0
    %v4287 = vadd.f32 0.0, %v4286
    %v4288 = vpop.f32.mrb[0].mxu0
    %v4289 = vpop.f32.mrb[0].mxu0
    %4290 = vdwg.mxu0
    %4291 = vmatprep.subr.bf16.mxu0 %v3835
    %4292 = vmatpush1.bf16.msra.mxu0 %v3834
    %4293 = vmatprep.subr.bf16.mxu0 %v3842
    %4294 = vmatpush1.bf16.msra.mxu0 %v3841
    %4295 = vmatprep.subr.bf16.mxu0 %v3849
    %4296 = vmatpush1.bf16.msra.mxu0 %v3848
    %4297 = vmatprep.subr.bf16.mxu0 %v3856
    %4298 = vmatpush1.bf16.msra.mxu0 %v3855
    %4299 = vmatprep.subr.bf16.mxu0 %v3863
    %4300 = vmatpush1.bf16.msra.mxu0 %v3862
    %4301 = vmatprep.subr.bf16.mxu0 %v3870
    %4302 = vmatpush1.bf16.msra.mxu0 %v3869
    %4303 = vmatprep.subr.bf16.mxu0 %v3877
    %4304 = vmatpush1.bf16.msra.mxu0 %v3876
    %4305 = vmatprep.subr.bf16.mxu0 %v3884
    %4306 = vmatpush1.bf16.msra.mxu0 %v3883
    %4307 = vmatprep.subr.bf16.mxu0 %v3891
    %4308 = vmatpush1.bf16.msra.mxu0 %v3890
    %4309 = vmatprep.subr.bf16.mxu0 %v3898
    %4310 = vmatpush1.bf16.msra.mxu0 %v3897
    %4311 = vmatprep.subr.bf16.mxu0 %v3905
    %4312 = vmatpush1.bf16.msra.mxu0 %v3904
    %4313 = vmatprep.subr.bf16.mxu0 %v3912
    %4314 = vmatpush1.bf16.msra.mxu0 %v3911
    %4315 = vmatprep.subr.bf16.mxu0 %v3919
    %4316 = vmatpush1.bf16.msra.mxu0 %v3918
    %4317 = vmatprep.subr.bf16.mxu0 %v3926
    %4318 = vmatpush1.bf16.msra.mxu0 %v3925
    %4319 = vmatprep.subr.bf16.mxu0 %v3933
    %4320 = vmatpush1.bf16.msra.mxu0 %v3932
    %4321 = vmatprep.subr.bf16.mxu0 %v3940
    %4322 = vmatpush1.bf16.msra.mxu0 %v3939
    %4323 = vmatprep.mubr.bf16.mxu0 %v2759
    %4324 = vmatmul.mubr.bf16.gmra.mrb[0].mxu0 %v2758
    %v4325 = vpop.f32.mrb[0].mxu0
    %v4326 = vadd.f32 %v4285, %v4325
    %v4327 = vpop.f32.mrb[0].mxu0
    %v4328 = vadd.f32 %v4287, %v4327
    %v4329 = vpop.f32.mrb[0].mxu0
    %v4330 = vpop.f32.mrb[0].mxu0
    %4331 = vdwg.mxu0
    %4332 = vmatprep.subr.bf16.mxu0 %v3725
    %4333 = vmatpush1.bf16.msra.mxu0 %v3724
    %4334 = vmatprep.subr.bf16.mxu0 %v3732
    %4335 = vmatpush1.bf16.msra.mxu0 %v3731
    %4336 = vmatprep.subr.bf16.mxu0 %v3739
    %4337 = vmatpush1.bf16.msra.mxu0 %v3738
    %4338 = vmatprep.subr.bf16.mxu0 %v3746
    %4339 = vmatpush1.bf16.msra.mxu0 %v3745
    %4340 = vmatprep.subr.bf16.mxu0 %v3753
    %4341 = vmatpush1.bf16.msra.mxu0 %v3752
    %4342 = vmatprep.subr.bf16.mxu0 %v3760
    %4343 = vmatpush1.bf16.msra.mxu0 %v3759
    %4344 = vmatprep.subr.bf16.mxu0 %v3767
    %4345 = vmatpush1.bf16.msra.mxu0 %v3766
    %4346 = vmatprep.subr.bf16.mxu0 %v3774
    %4347 = vmatpush1.bf16.msra.mxu0 %v3773
    %4348 = vmatprep.subr.bf16.mxu0 %v3781
    %4349 = vmatpush1.bf16.msra.mxu0 %v3780
    %4350 = vmatprep.subr.bf16.mxu0 %v3788
    %4351 = vmatpush1.bf16.msra.mxu0 %v3787
    %4352 = vmatprep.subr.bf16.mxu0 %v3795
    %4353 = vmatpush1.bf16.msra.mxu0 %v3794
    %4354 = vmatprep.subr.bf16.mxu0 %v3802
    %4355 = vmatpush1.bf16.msra.mxu0 %v3801
    %4356 = vmatprep.subr.bf16.mxu0 %v3809
    %4357 = vmatpush1.bf16.msra.mxu0 %v3808
    %4358 = vmatprep.subr.bf16.mxu0 %v3816
    %4359 = vmatpush1.bf16.msra.mxu0 %v3815
    %4360 = vmatprep.subr.bf16.mxu0 %v3823
    %4361 = vmatpush1.bf16.msra.mxu0 %v3822
    %4362 = vmatprep.subr.bf16.mxu0 %v3830
    %4363 = vmatpush1.bf16.msra.mxu0 %v3829
    %4364 = vmatprep.mubr.bf16.mxu0 %v2757
    %4365 = vmatmul.mubr.bf16.gmra.mrb[0].mxu0 %v2756
    %v4366 = vpop.f32.mrb[0].mxu0
    %v4367 = vadd.f32 0.0, %v4366
    %v4368 = vpop.f32.mrb[0].mxu0
    %v4369 = vadd.f32 0.0, %v4368
    %v4370 = vpop.f32.mrb[0].mxu0
    %v4371 = vpop.f32.mrb[0].mxu0
    %4372 = vdwg.mxu0
    %4373 = vmatprep.subr.bf16.mxu0 %v3837
    %4374 = vmatpush1.bf16.msra.mxu0 %v3836
    %4375 = vmatprep.subr.bf16.mxu0 %v3844
    %4376 = vmatpush1.bf16.msra.mxu0 %v3843
    %4377 = vmatprep.subr.bf16.mxu0 %v3851
    %4378 = vmatpush1.bf16.msra.mxu0 %v3850
    %4379 = vmatprep.subr.bf16.mxu0 %v3858
    %4380 = vmatpush1.bf16.msra.mxu0 %v3857
    %4381 = vmatprep.subr.bf16.mxu0 %v3865
    %4382 = vmatpush1.bf16.msra.mxu0 %v3864
    %4383 = vmatprep.subr.bf16.mxu0 %v3872
    %4384 = vmatpush1.bf16.msra.mxu0 %v3871
    %4385 = vmatprep.subr.bf16.mxu0 %v3879
    %4386 = vmatpush1.bf16.msra.mxu0 %v3878
    %4387 = vmatprep.subr.bf16.mxu0 %v3886
    %4388 = vmatpush1.bf16.msra.mxu0 %v3885
    %4389 = vmatprep.subr.bf16.mxu0 %v3893
    %4390 = vmatpush1.bf16.msra.mxu0 %v3892
    %4391 = vmatprep.subr.bf16.mxu0 %v3900
    %4392 = vmatpush1.bf16.msra.mxu0 %v3899
    %4393 = vmatprep.subr.bf16.mxu0 %v3907
    %4394 = vmatpush1.bf16.msra.mxu0 %v3906
    %4395 = vmatprep.subr.bf16.mxu0 %v3914
    %4396 = vmatpush1.bf16.msra.mxu0 %v3913
    %4397 = vmatprep.subr.bf16.mxu0 %v3921
    %4398 = vmatpush1.bf16.msra.mxu0 %v3920
    %4399 = vmatprep.subr.bf16.mxu0 %v3928
    %4400 = vmatpush1.bf16.msra.mxu0 %v3927
    %4401 = vmatprep.subr.bf16.mxu0 %v3935
    %4402 = vmatpush1.bf16.msra.mxu0 %v3934
    %4403 = vmatprep.subr.bf16.mxu0 %v3942
    %4404 = vmatpush1.bf16.msra.mxu0 %v3941
    %4405 = vmatprep.mubr.bf16.mxu0 %v2759
    %4406 = vmatmul.mubr.bf16.gmra.mrb[0].mxu0 %v2758
    %v4407 = vpop.f32.mrb[0].mxu0
    %v4408 = vadd.f32 %v4367, %v4407
    %v4409 = vpop.f32.mrb[0].mxu0
    %v4410 = vadd.f32 %v4369, %v4409
    %v4411 = vpop.f32.mrb[0].mxu0
    %v4412 = vpop.f32.mrb[0].mxu0
    %4413 = vdwg.mxu0
    %4414 = vmatprep.subr.bf16.mxu0 0
    %4415 = vmatpush1.bf16.msra.mxu0 %v3726
    %4416 = vmatprep.subr.bf16.mxu0 0
    %4417 = vmatpush1.bf16.msra.mxu0 %v3733
    %4418 = vmatprep.subr.bf16.mxu0 0
    %4419 = vmatpush1.bf16.msra.mxu0 %v3740
    %4420 = vmatprep.subr.bf16.mxu0 0
    %4421 = vmatpush1.bf16.msra.mxu0 %v3747
    %4422 = vmatprep.subr.bf16.mxu0 0
    %4423 = vmatpush1.bf16.msra.mxu0 %v3754
    %4424 = vmatprep.subr.bf16.mxu0 0
    %4425 = vmatpush1.bf16.msra.mxu0 %v3761
    %4426 = vmatprep.subr.bf16.mxu0 0
    %4427 = vmatpush1.bf16.msra.mxu0 %v3768
    %4428 = vmatprep.subr.bf16.mxu0 0
    %4429 = vmatpush1.bf16.msra.mxu0 %v3775
    %4430 = vmatprep.subr.bf16.mxu0 0
    %4431 = vmatpush1.bf16.msra.mxu0 %v3782
    %4432 = vmatprep.subr.bf16.mxu0 0
    %4433 = vmatpush1.bf16.msra.mxu0 %v3789
    %4434 = vmatprep.subr.bf16.mxu0 0
    %4435 = vmatpush1.bf16.msra.mxu0 %v3796
    %4436 = vmatprep.subr.bf16.mxu0 0
    %4437 = vmatpush1.bf16.msra.mxu0 %v3803
    %4438 = vmatprep.subr.bf16.mxu0 0
    %4439 = vmatpush1.bf16.msra.mxu0 %v3810
    %4440 = vmatprep.subr.bf16.mxu0 0
    %4441 = vmatpush1.bf16.msra.mxu0 %v3817
    %4442 = vmatprep.subr.bf16.mxu0 0
    %4443 = vmatpush1.bf16.msra.mxu0 %v3824
    %4444 = vmatprep.subr.bf16.mxu0 0
    %4445 = vmatpush1.bf16.msra.mxu0 %v3831
    %4446 = vmatprep.mubr.bf16.mxu0 %v2757
    %4447 = vmatmul.mubr.bf16.gmra.mrb[0].mxu0 %v2756
    %v4448 = vpop.f32.mrb[0].mxu0
    %v4449 = vadd.f32 0.0, %v4448
    %v4450 = vpop.f32.mrb[0].mxu0
    %v4451 = vpop.f32.mrb[0].mxu0
    %v4452 = vpop.f32.mrb[0].mxu0
    %4453 = vdwg.mxu0
    %4454 = vmatprep.subr.bf16.mxu0 0
    %4455 = vmatpush1.bf16.msra.mxu0 %v3838
    %4456 = vmatprep.subr.bf16.mxu0 0
    %4457 = vmatpush1.bf16.msra.mxu0 %v3845
    %4458 = vmatprep.subr.bf16.mxu0 0
    %4459 = vmatpush1.bf16.msra.mxu0 %v3852
    %4460 = vmatprep.subr.bf16.mxu0 0
    %4461 = vmatpush1.bf16.msra.mxu0 %v3859
    %4462 = vmatprep.subr.bf16.mxu0 0
    %4463 = vmatpush1.bf16.msra.mxu0 %v3866
    %4464 = vmatprep.subr.bf16.mxu0 0
    %4465 = vmatpush1.bf16.msra.mxu0 %v3873
    %4466 = vmatprep.subr.bf16.mxu0 0
    %4467 = vmatpush1.bf16.msra.mxu0 %v3880
    %4468 = vmatprep.subr.bf16.mxu0 0
    %4469 = vmatpush1.bf16.msra.mxu0 %v3887
    %4470 = vmatprep.subr.bf16.mxu0 0
    %4471 = vmatpush1.bf16.msra.mxu0 %v3894
    %4472 = vmatprep.subr.bf16.mxu0 0
    %4473 = vmatpush1.bf16.msra.mxu0 %v3901
    %4474 = vmatprep.subr.bf16.mxu0 0
    %4475 = vmatpush1.bf16.msra.mxu0 %v3908
    %4476 = vmatprep.subr.bf16.mxu0 0
    %4477 = vmatpush1.bf16.msra.mxu0 %v3915
    %4478 = vmatprep.subr.bf16.mxu0 0
    %4479 = vmatpush1.bf16.msra.mxu0 %v3922
    %4480 = vmatprep.subr.bf16.mxu0 0
    %4481 = vmatpush1.bf16.msra.mxu0 %v3929
    %4482 = vmatprep.subr.bf16.mxu0 0
    %4483 = vmatpush1.bf16.msra.mxu0 %v3936
    %4484 = vmatprep.subr.bf16.mxu0 0
    %4485 = vmatpush1.bf16.msra.mxu0 %v3943
    %4486 = vmatprep.mubr.bf16.mxu0 %v2759
    %4487 = vmatmul.mubr.bf16.gmra.mrb[0].mxu0 %v2758
    %v4488 = vpop.f32.mrb[0].mxu0
    %v4489 = vadd.f32 %v4449, %v4488
    %v4490 = vpop.f32.mrb[0].mxu0
    %v4491 = vpop.f32.mrb[0].mxu0
    %v4492 = vpop.f32.mrb[0].mxu0
    %4493 = vdwg.mxu0
    %v4494 = vsub.f32 0.0, %v4244
    %v4495 = vsub.f32 0.0, %v4246
    %v4496 = vsub.f32 0.0, %v4326
    %v4497 = vsub.f32 0.0, %v4328
    %v4498 = vsub.f32 0.0, %v4408
    %v4499 = vsub.f32 0.0, %v4410
    %v4500 = vsub.f32 0.0, %v4489
    %v4501 = vmul.f32 %v4494, 1.442695
    %v4502 = vpow.pop %v4501
    %v4503 = vmul.f32 %v4495, 1.442695
    %v4504 = vpow.pop %v4503
    %v4505 = vmul.f32 %v4496, 1.442695
    %v4506 = vpow.pop %v4505
    %v4507 = vmul.f32 %v4497, 1.442695
    %v4508 = vpow.pop %v4507
    %v4509 = vmul.f32 %v4498, 1.442695
    %v4510 = vpow.pop %v4509
    %v4511 = vmul.f32 %v4499, 1.442695
    %v4512 = vpow.pop %v4511
    %v4513 = vmul.f32 %v4500, 1.442695
    %v4514 = vpow.pop %v4513
    %v4515 = vadd.f32 %v4502, 1.0
    %v4516 = vadd.f32 %v4504, 1.0
    %v4517 = vadd.f32 %v4506, 1.0
    %v4518 = vadd.f32 %v4508, 1.0
    %v4519 = vadd.f32 %v4510, 1.0
    %v4520 = vadd.f32 %v4512, 1.0
    %v4521 = vadd.f32 %v4514, 1.0
    %v4522 = vrcp.pop %v4515
    %v4523 = vrcp.pop %v4516
    %v4524 = vrcp.pop %v4517
    %v4525 = vrcp.pop %v4518
    %v4526 = vrcp.pop %v4519
    %v4527 = vrcp.pop %v4520
    %v4528 = vrcp.pop %v4521
    %4529 = vst [vmem:[#allocation2] sm:$0xff] %v4522
    %4530 = vst [vmem:[#allocation2 + $0x8] sm:$0xff] %v4523
    %4531 = vst [vmem:[#allocation2 + $0x10] sm:$0xff] %v4524
    %4532 = vst [vmem:[#allocation2 + $0x18] sm:$0xff] %v4525
    %4533 = vst [vmem:[#allocation2 + $0x20] sm:$0xff] %v4526
    %4534 = vst [vmem:[#allocation2 + $0x28] sm:$0xff] %v4527
    %4535 = vst.msk [vmem:[#allocation2 + $0x30] sm:$0xff] %vm1215, %v4528
    // Predicated region
    $region26: #{_forward_blocked.1} parent=1 // pred_check
      _
    $region27: #{_forward_blocked.1} parent=1 // pred_check_branch
      %4537 = sbr.rel (0) target = $region29
    $region28: #{_forward_blocked.1} parent=1 // pred_region
      %s4539 = ssub.s32 896, 896
      %4540 = vsyncadd [#allocation3], %s4539
      %s4542 = sshll.u32 [#allocation2], 4
      %s4543 = int_to_ptr.vmem [resolvable:$true] %s4542
      %4545 = dma.vmem_to_hbm [thread:$0]  %s4543, 896, %s6, [#allocation3]
    $region29: #{_forward_blocked.1} parent=1 // pred_fallthru
      _
    // Predicated region
    $region30: #{_forward_blocked.1} parent=1 // pred_check
      _
    $region31: #{_forward_blocked.1} parent=1 // pred_check_branch
      %4547 = sbr.rel (0) target = $region33
    $region32: #{_forward_blocked.1} parent=1 // pred_region
      %4548 = dma.done [#allocation3], 896
    $region33: #{_forward_blocked.1} parent=1 // pred_fallthru
      _
    %4549 = vsyncpa [#allocation3], 1

</llo_original>
